<compile_context>
chip_gen: v6e
topology: v6e:2x2x1
jax: 0.10.0
libtpu: 0.0.40
codegen_flags: <defaults>
</compile_context>

<pallas_src>
import functools

import jax
import jax.numpy as jnp
from jax import lax
from jax.experimental import pallas as pl
from jax.experimental.pallas import tpu as pltpu


# ---------------------------------------------------------------------------
# in-kernel helpers
# ---------------------------------------------------------------------------
def _layernorm(x, w, b, eps=1e-5):
    # x: (M, C) f32, w/b: (1, C)  (PyTorch nn.LayerNorm default eps=1e-5)
    mu = jnp.mean(x, axis=-1, keepdims=True)
    xc = x - mu
    var = jnp.mean(xc * xc, axis=-1, keepdims=True)
    return xc * lax.rsqrt(var + eps) * w + b


def _gelu_exact(x):
    # PyTorch nn.GELU() default: exact erf-based GELU
    return 0.5 * x * (1.0 + lax.erf(x * 0.7071067811865476))


# ---------------------------------------------------------------------------
# fused encoder kernel: one (bt*N, C) row slab x one layer per grid step
#   residual stream kept resident in VMEM scratch across the depth axis
# ---------------------------------------------------------------------------
def encoder_kernel(x_ref, pos_ref, ln1w_ref, ln1b_ref, qkvw_ref, projw_ref,
                   projb_ref, ln2w_ref, ln2b_ref, fc1w_ref, fc1b_ref,
                   fc2w_ref, fc2b_ref, o_ref, res_ref, *, num_heads, bt, n):
    C = x_ref.shape[-1]
    hd = C // num_heads
    bh = bt * num_heads
    scale = float(hd) ** (-0.5)
    cdt = qkvw_ref.dtype                     # matmul compute dtype (bf16)
    d = pl.program_id(1)

    # first layer: initialize the resident residual stream from the input slab
    @pl.when(d == 0)
    def _():
        res_ref[...] = x_ref[...].astype(jnp.float32)

    # block input = residual + pos (pos is re-added every layer, per the reference)
    x = res_ref[...] + pos_ref[...].astype(jnp.float32)        # (M, C) f32

    # ---- attention branch: y = x + attn(norm1(x)) ----
    xn = _layernorm(x, ln1w_ref[0], ln1b_ref[0])
    qkv = jnp.dot(xn.astype(cdt), qkvw_ref[0],
                  preferred_element_type=jnp.float32)           # (M, 3C)

    def heads(t):  # (bt*n, C) -> (bt*H, n, hd), heads as an einsum batch dim
        return (t.reshape(bt, n, num_heads, hd)
                 .transpose(0, 2, 1, 3)
                 .reshape(bh, n, hd))

    q = heads(qkv[:, 0:C] * scale).astype(cdt)                  # pre-scaled q
    k = heads(qkv[:, C:2 * C]).astype(cdt)
    v = heads(qkv[:, 2 * C:3 * C]).astype(cdt)

    s = jnp.einsum('bnd,bmd->bnm', q, k,
                   preferred_element_type=jnp.float32)          # (bt*H, n, n)
    s = s - jnp.max(s, axis=-1, keepdims=True)
    p = jnp.exp(s)
    p = p * pl.reciprocal(jnp.sum(p, axis=-1, keepdims=True), approx=True)
    ctx = jnp.einsum('bnm,bmd->bnd', p.astype(cdt), v,
                     preferred_element_type=jnp.float32)        # (bt*H, n, hd)
    ctx = (ctx.reshape(bt, num_heads, n, hd)
              .transpose(0, 2, 1, 3)
              .reshape(bt * n, C))

    # single K=C output projection (no per-head matmuls)
    attn_out = jnp.dot(ctx.astype(cdt), projw_ref[0],
                       preferred_element_type=jnp.float32) + projb_ref[0]
    y = x + attn_out                                            # drop_path = identity

    # ---- MLP branch: out = y + mlp(norm2(y)) ----
    yn = _layernorm(y, ln2w_ref[0], ln2b_ref[0])
    h1 = jnp.dot(yn.astype(cdt), fc1w_ref[0],
                 preferred_element_type=jnp.float32) + fc1b_ref[0]
    h1 = _gelu_exact(h1)
    mlp_out = jnp.dot(h1.astype(cdt), fc2w_ref[0],
                      preferred_element_type=jnp.float32) + fc2b_ref[0]

    out = y + mlp_out
    res_ref[...] = out                                          # carry to next layer

    @pl.when(d == pl.num_programs(1) - 1)
    def _():
        o_ref[...] = out.astype(o_ref.dtype)


# ---------------------------------------------------------------------------
# wrapper helpers
# ---------------------------------------------------------------------------
def _row_target():
    # ~MXU depth worth of rows per slab: 256 on v6e/v7x, 128 on v4/v5e-class chips.
    try:
        kind = jax.devices()[0].device_kind.lower()
        if ("v5 lite" in kind) or ("v5e" in kind) or ("v5litepod" in kind) or ("v4" in kind):
            return 128
    except Exception:
        pass
    return 256


def _choose_bt(B, N):
    """Pick batch-tile bt: B % bt == 0, (bt*N) % 8 == 0 (or bt == B),
    prefer >= 2 grid row steps (dual TC / pipelining), rows near the MXU target."""
    target = _row_target()
    divisors = [d for d in range(1, B + 1) if B % d == 0]
    cands = [d for d in divisors if (d * N) % 8 == 0 or d == B] or [B]

    def score(bt):
        steps = B // bt
        rows = bt * N
        step_pen = 0 if steps >= 4 else (1 if steps >= 2 else 2)
        row_pen = (target - rows) / target if rows <= target else 0.5 * (rows - target) / target
        return (step_pen, row_pen)

    return min(cands, key=score)


def _vmem_budget(bt, n, C, H, num_heads):
    """Computed VMEM need (slabs + double-buffered layer weights + intermediates),
    with margin; clamped so it never exceeds ~56 MiB (safe on v7x's 64 MiB VMEM)."""
    f32, bf16 = 4, 2
    M = bt * n
    slab = M * C * f32
    io = 3 * 2 * slab                                            # x, pos, out (double-buffered)
    wts = 2 * (bf16 * (3 * C * C + C * C + C * H + H * C) + f32 * (6 * C + H))
    scratch = slab
    inter = M * 3 * C * f32 + M * H * f32 + bt * num_heads * n * n * f32 + 6 * slab
    need = int((io + wts + scratch + inter) * 1.5)
    return min(max(need, 32 * 1024 * 1024), 56 * 1024 * 1024)


def transformer_encoder_forward(x, pos, params_list, *, num_heads,
                                compute_dtype=jnp.bfloat16):
    """TransformerEncoder.forward: x = block_i(x + pos) for each block.
    U / sub_U / idx feed only the (undefined) PCSA adapter and are not needed."""
    B, N, C = x.shape
    assert C % num_heads == 0
    depth = len(params_list)
    H = params_list[0]["fc1_w"].shape[1]
    bt = _choose_bt(B, N)
    M = B * N
    rows = M // (bt * N)

    x2d = x.reshape(M, C)
    pos2d = pos.reshape(M, C)

    # Stack per-layer params along a leading depth axis; cast matmul weights to bf16 ONCE.
    stack_w = lambda name: jnp.stack([p[name] for p in params_list]).astype(compute_dtype)
    stack_p = lambda name: jnp.stack([p[name] for p in params_list])
    qkv_w, proj_w = stack_w("qkv_w"), stack_w("proj_w")
    fc1_w, fc2_w = stack_w("fc1_w"), stack_w("fc2_w")
    ln1_w, ln1_b = stack_p("ln1_w"), stack_p("ln1_b")
    proj_b = stack_p("proj_b")
    ln2_w, ln2_b = stack_p("ln2_w"), stack_p("ln2_b")
    fc1_b, fc2_b = stack_p("fc1_b"), stack_p("fc2_b")

    row_spec = lambda: pl.BlockSpec((bt * N, C), lambda r, d: (r, 0))

    def layer_spec(*tail):
        nt = len(tail)
        return pl.BlockSpec((1,) + tail, lambda r, d, _nt=nt: (d,) + (0,) * _nt)

    out2d = pl.pallas_call(
        functools.partial(encoder_kernel, num_heads=num_heads, bt=bt, n=N),
        out_shape=jax.ShapeDtypeStruct((M, C), x2d.dtype),
        grid_spec=pltpu.PrefetchScalarGridSpec(
            num_scalar_prefetch=0,
            grid=(rows, depth),
            in_specs=[
                row_spec(), row_spec(),                 # x, pos (resident across depth)
                layer_spec(1, C), layer_spec(1, C),     # ln1 w, b
                layer_spec(C, 3 * C),                   # qkv weight (qkv_bias=False)
                layer_spec(C, C), layer_spec(1, C),     # proj weight, bias
                layer_spec(1, C), layer_spec(1, C),     # ln2 w, b
                layer_spec(C, H), layer_spec(1, H),     # fc1 weight, bias
                layer_spec(H, C), layer_spec(1, C),     # fc2 weight, bias
            ],
            out_specs=pl.BlockSpec((bt * N, C), lambda r, d: (r, 0)),
            scratch_shapes=[pltpu.VMEM((bt * N, C), jnp.float32)],   # residual stream
        ),
        compiler_params=pltpu.CompilerParams(
            dimension_semantics=("parallel", "arbitrary"),
            vmem_limit_bytes=_vmem_budget(bt, N, C, H, num_heads)),
    )(x2d, pos2d,
      ln1_w, ln1_b, qkv_w, proj_w, proj_b,
      ln2_w, ln2_b, fc1_w, fc1_b, fc2_w, fc2_b)

    return out2d.reshape(B, N, C)


# ---------------------------------------------------------------------------
# parameter init + pure-JAX reference
# ---------------------------------------------------------------------------
def init_params(key, dim, num_heads, mlp_ratio=4.0, dtype=jnp.float32):
    hidden = int(dim * mlp_ratio)
    ks = jax.random.split(key, 7)
    scl = 0.02
    # Linear weights stored as (in_features, out_features), i.e. W.T of the PyTorch layer.
    return {
        "ln1_w": jnp.ones((1, dim), dtype),
        "ln1_b": jnp.zeros((1, dim), dtype),
        "qkv_w": (scl * jax.random.normal(ks[0], (dim, 3 * dim))).astype(dtype),
        "proj_w": (scl * jax.random.normal(ks[1], (dim, dim))).astype(dtype),
        "proj_b": (scl * jax.random.normal(ks[2], (1, dim))).astype(dtype),
        "ln2_w": jnp.ones((1, dim), dtype),
        "ln2_b": jnp.zeros((1, dim), dtype),
        "fc1_w": (scl * jax.random.normal(ks[3], (dim, hidden))).astype(dtype),
        "fc1_b": (scl * jax.random.normal(ks[4], (1, hidden))).astype(dtype),
        "fc2_w": (scl * jax.random.normal(ks[5], (hidden, dim))).astype(dtype),
        "fc2_b": (scl * jax.random.normal(ks[6], (1, dim))).astype(dtype),
    }


def _reference_forward(x, pos, params_list, num_heads):
    def ln(t, w, b):
        mu = t.mean(-1, keepdims=True)
        var = ((t - mu) ** 2).mean(-1, keepdims=True)
        return (t - mu) / jnp.sqrt(var + 1e-5) * w.reshape(-1) + b.reshape(-1)

    def block(xb, p):
        B, N, C = xb.shape
        hd = C // num_heads
        xn = ln(xb, p["ln1_w"], p["ln1_b"])
        qkv = xn @ p["qkv_w"]
        qkv = qkv.reshape(B, N, 3, num_heads, hd).transpose(2, 0, 3, 1, 4)
        q, k, v = qkv[0], qkv[1], qkv[2]
        att = (q @ jnp.swapaxes(k, -1, -2)) * (hd ** -0.5)
        att = jax.nn.softmax(att, axis=-1)
        o = (att @ v).transpose(0, 2, 1, 3).reshape(B, N, C)
        o = o @ p["proj_w"] + p["proj_b"].reshape(-1)
        y = xb + o
        yn = ln(y, p["ln2_w"], p["ln2_b"])
        h = yn @ p["fc1_w"] + p["fc1_b"].reshape(-1)
        h = jax.nn.gelu(h, approximate=False)
        m = h @ p["fc2_w"] + p["fc2_b"].reshape(-1)
        return y + m

    for p in params_list:
        x = block(x + pos, p)
    return x


if __name__ == "__main__":
    B, N, C = 2, 16, 128        # small but lane-dense (C >= 128) token/channel sizes
    num_heads, depth = 4, 2

    key = jax.random.PRNGKey(0)
    kx, kpos, kp = jax.random.split(key, 3)
    x = jax.random.normal(kx, (B, N, C), jnp.float32)
    pos = jax.random.normal(kpos, (B, N, C), jnp.float32)

    # U / sub_U / idx are only consumed by the (undefined) PCSA adapter; unused here.
    params_list = [init_params(k, C, num_heads)
                   for k in jax.random.split(kp, depth)]

    out = transformer_encoder_forward(x, pos, params_list, num_heads=num_heads)
    out = jax.block_until_ready(out)
    assert out.shape == (B, N, C)

    ref = _reference_forward(x, pos, params_list, num_heads)
    max_err = float(jnp.max(jnp.abs(out - ref)))
    assert jnp.allclose(out, ref, atol=3e-2, rtol=3e-2), f"max abs err {max_err}"
    print("KERNEL_OK")
</pallas_src>

<mosaic_0001>
module attributes {stable_mosaic.version = 11 : i64} {
  func.func @encoder_kernel(%arg0: i32, %arg1: i32, %arg2: memref<16x128xf32, #tpu.memory_space<vmem>>, %arg3: memref<16x128xf32, #tpu.memory_space<vmem>>, %arg4: memref<1x1x128xf32, #tpu.memory_space<vmem>>, %arg5: memref<1x1x128xf32, #tpu.memory_space<vmem>>, %arg6: memref<1x128x384xbf16, #tpu.memory_space<vmem>>, %arg7: memref<1x128x128xbf16, #tpu.memory_space<vmem>>, %arg8: memref<1x1x128xf32, #tpu.memory_space<vmem>>, %arg9: memref<1x1x128xf32, #tpu.memory_space<vmem>>, %arg10: memref<1x1x128xf32, #tpu.memory_space<vmem>>, %arg11: memref<1x128x512xbf16, #tpu.memory_space<vmem>>, %arg12: memref<1x1x512xf32, #tpu.memory_space<vmem>>, %arg13: memref<1x512x128xbf16, #tpu.memory_space<vmem>>, %arg14: memref<1x1x128xf32, #tpu.memory_space<vmem>>, %arg15: memref<16x128xf32, #tpu.memory_space<vmem>>, %arg16: memref<16x128xf32, #tpu.memory_space<vmem>>) attributes {dimension_semantics = [#tpu.dimension_semantics<parallel>, #tpu.dimension_semantics<arbitrary>], iteration_bounds = array<i64: 2, 2>, scalar_prefetch = 0 : i64, scratch_operands = 1 : i64, tpu.core_type = #tpu.core_type<tc>, window_params = [{transform_indices = @transform_0, window_bounds = array<i64: 16, 128>}, {transform_indices = @transform_1, window_bounds = array<i64: 16, 128>}, {transform_indices = @transform_2, window_bounds = array<i64: 1, 1, 128>}, {transform_indices = @transform_3, window_bounds = array<i64: 1, 1, 128>}, {transform_indices = @transform_4, window_bounds = array<i64: 1, 128, 384>}, {transform_indices = @transform_5, window_bounds = array<i64: 1, 128, 128>}, {transform_indices = @transform_6, window_bounds = array<i64: 1, 1, 128>}, {transform_indices = @transform_7, window_bounds = array<i64: 1, 1, 128>}, {transform_indices = @transform_8, window_bounds = array<i64: 1, 1, 128>}, {transform_indices = @transform_9, window_bounds = array<i64: 1, 128, 512>}, {transform_indices = @transform_10, window_bounds = array<i64: 1, 1, 512>}, {transform_indices = @transform_11, window_bounds = array<i64: 1, 512, 128>}, {transform_indices = @transform_12, window_bounds = array<i64: 1, 1, 128>}, {transform_indices = @transform_13, window_bounds = array<i64: 16, 128>}]} {
    %c0_i32 = arith.constant 0 : i32
    %0 = arith.cmpi eq, %arg1, %c0_i32 : i32
    %1 = arith.extui %0 : i1 to i32
    %c0_i32_0 = arith.constant 0 : i32
    %2 = arith.cmpi ne, %1, %c0_i32_0 : i32
    scf.if %2 {
      %c0_61 = arith.constant 0 : index
      %c0_62 = arith.constant 0 : index
      %129 = vector.load %arg2[%c0_61, %c0_62] : memref<16x128xf32, #tpu.memory_space<vmem>>, vector<16x128xf32>
      %c0_63 = arith.constant 0 : index
      %c0_64 = arith.constant 0 : index
      %130 = vector.load %arg16[%c0_63, %c0_64] : memref<16x128xf32, #tpu.memory_space<vmem>>, vector<16x128xf32>
      tpu.vector_store %arg16[%c0_63, %c0_64], %129 {strides = array<i32>} : memref<16x128xf32, #tpu.memory_space<vmem>>, vector<16x128xf32>,
    } else {
    }
    %c0 = arith.constant 0 : index
    %c0_1 = arith.constant 0 : index
    %3 = vector.load %arg16[%c0, %c0_1] : memref<16x128xf32, #tpu.memory_space<vmem>>, vector<16x128xf32>
    %c0_2 = arith.constant 0 : index
    %c0_3 = arith.constant 0 : index
    %4 = vector.load %arg3[%c0_2, %c0_3] : memref<16x128xf32, #tpu.memory_space<vmem>>, vector<16x128xf32>
    %5 = arith.addf %3, %4 : vector<16x128xf32>
    %c0_4 = arith.constant 0 : index
    %c0_5 = arith.constant 0 : index
    %c0_6 = arith.constant 0 : index
    %6 = vector.load %arg4[%c0_4, %c0_5, %c0_6] : memref<1x1x128xf32, #tpu.memory_space<vmem>>, vector<1x1x128xf32>
    %7 = vector.shape_cast %6 : vector<1x1x128xf32> to vector<1x128xf32>
    %c0_7 = arith.constant 0 : index
    %c0_8 = arith.constant 0 : index
    %c0_9 = arith.constant 0 : index
    %8 = vector.load %arg5[%c0_7, %c0_8, %c0_9] : memref<1x1x128xf32, #tpu.memory_space<vmem>>, vector<1x1x128xf32>
    %9 = vector.shape_cast %8 : vector<1x1x128xf32> to vector<1x128xf32>
    %cst = arith.constant dense<0.000000e+00> : vector<16xf32>
    %10 = vector.multi_reduction <add>, %5, %cst [1] : vector<16x128xf32> to vector<16xf32>
    %11 = vector.shape_cast %10 : vector<16xf32> to vector<16x1xf32>
    %cst_10 = arith.constant 1.280000e+02 : f32
    %12 = vector.broadcast %cst_10 : f32 to vector<16x1xf32>
    %13 = arith.divf %11, %12 : vector<16x1xf32>
    %14 = vector.broadcast %13 : vector<16x1xf32> to vector<16x128xf32>
    %15 = arith.subf %5, %14 : vector<16x128xf32>
    %16 = arith.mulf %15, %15 : vector<16x128xf32>
    %cst_11 = arith.constant dense<0.000000e+00> : vector<16xf32>
    %17 = vector.multi_reduction <add>, %16, %cst_11 [1] : vector<16x128xf32> to vector<16xf32>
    %18 = vector.shape_cast %17 : vector<16xf32> to vector<16x1xf32>
    %cst_12 = arith.constant 1.280000e+02 : f32
    %19 = vector.broadcast %cst_12 : f32 to vector<16x1xf32>
    %20 = arith.divf %18, %19 : vector<16x1xf32>
    %cst_13 = arith.constant 9.99999974E-6 : f32
    %21 = vector.broadcast %cst_13 : f32 to vector<16x1xf32>
    %22 = arith.addf %20, %21 : vector<16x1xf32>
    %23 = math.rsqrt %22 : vector<16x1xf32>
    %24 = vector.broadcast %23 : vector<16x1xf32> to vector<16x128xf32>
    %25 = arith.mulf %15, %24 : vector<16x128xf32>
    %26 = vector.broadcast %7 : vector<1x128xf32> to vector<16x128xf32>
    %27 = arith.mulf %25, %26 : vector<16x128xf32>
    %28 = vector.broadcast %9 : vector<1x128xf32> to vector<16x128xf32>
    %29 = arith.addf %27, %28 : vector<16x128xf32>
    %30 = arith.truncf %29 : vector<16x128xf32> to vector<16x128xbf16>
    %c0_14 = arith.constant 0 : index
    %c0_15 = arith.constant 0 : index
    %c0_16 = arith.constant 0 : index
    %31 = vector.load %arg6[%c0_14, %c0_15, %c0_16] : memref<1x128x384xbf16, #tpu.memory_space<vmem>>, vector<1x128x384xbf16>
    %32 = vector.shape_cast %31 : vector<1x128x384xbf16> to vector<128x384xbf16>
    %cst_17 = arith.constant dense<0.000000e+00> : vector<16x384xf32>
    %33 = tpu.matmul %30, %32, %cst_17 {dimension_numbers = #tpu.dot_dimension_numbers<[1], [0], [0], [1], [0, 0, 1, 1], [], []>} : vector<16x128xbf16>, vector<128x384xbf16>, vector<16x384xf32> -> vector<16x384xf32>
    %34 = vector.extract_strided_slice %33 {offsets = [0, 0], sizes = [16, 128], strides = [1, 1]} : vector<16x384xf32> to vector<16x128xf32>
    %cst_18 = arith.constant 0.176776692 : f32
    %35 = vector.broadcast %cst_18 : f32 to vector<16x128xf32>
    %36 = arith.mulf %34, %35 : vector<16x128xf32>
    %37 = vector.shape_cast %36 : vector<16x128xf32> to vector<1x16x4x32xf32>
    %38 = tpu.transpose %37, [0, 2, 1, 3] : vector<1x16x4x32xf32> -> vector<1x4x16x32xf32>
    %39 = vector.shape_cast %38 : vector<1x4x16x32xf32> to vector<4x16x32xf32>
    %40 = arith.truncf %39 : vector<4x16x32xf32> to vector<4x16x32xbf16>
    %41 = vector.extract_strided_slice %33 {offsets = [0, 128], sizes = [16, 128], strides = [1, 1]} : vector<16x384xf32> to vector<16x128xf32>
    %42 = vector.shape_cast %41 : vector<16x128xf32> to vector<1x16x4x32xf32>
    %43 = tpu.transpose %42, [0, 2, 1, 3] : vector<1x16x4x32xf32> -> vector<1x4x16x32xf32>
    %44 = vector.shape_cast %43 : vector<1x4x16x32xf32> to vector<4x16x32xf32>
    %45 = arith.truncf %44 : vector<4x16x32xf32> to vector<4x16x32xbf16>
    %46 = vector.extract_strided_slice %33 {offsets = [0, 256], sizes = [16, 128], strides = [1, 1]} : vector<16x384xf32> to vector<16x128xf32>
    %47 = vector.shape_cast %46 : vector<16x128xf32> to vector<1x16x4x32xf32>
    %48 = tpu.transpose %47, [0, 2, 1, 3] : vector<1x16x4x32xf32> -> vector<1x4x16x32xf32>
    %49 = vector.shape_cast %48 : vector<1x4x16x32xf32> to vector<4x16x32xf32>
    %50 = arith.truncf %49 : vector<4x16x32xf32> to vector<4x16x32xbf16>
    "tpu.trace_start"() <{level = 10 : i32, message = "bnd,bmd->bnm"}> : () -> ()
    %cst_19 = arith.constant dense<0.000000e+00> : vector<4x16x16xf32>
    %51 = tpu.matmul %40, %45, %cst_19 {dimension_numbers = #tpu.dot_dimension_numbers<[2], [2], [1], [1], [0, 0, 0, 1, 1, 1], [0], [0]>} : vector<4x16x32xbf16>, vector<4x16x32xbf16>, vector<4x16x16xf32> -> vector<4x16x16xf32>
    "tpu.trace_stop"() : () -> ()
    %cst_20 = arith.constant dense<0xFF800000> : vector<4x16xf32>
    %52 = vector.multi_reduction <maximumf>, %51, %cst_20 [2] : vector<4x16x16xf32> to vector<4x16xf32>
    %53 = vector.shape_cast %52 : vector<4x16xf32> to vector<4x16x1xf32>
    %54 = vector.broadcast %53 : vector<4x16x1xf32> to vector<4x16x16xf32>
    %55 = arith.subf %51, %54 : vector<4x16x16xf32>
    %56 = math.exp %55 : vector<4x16x16xf32>
    %cst_21 = arith.constant dense<0.000000e+00> : vector<4x16xf32>
    %57 = vector.multi_reduction <add>, %56, %cst_21 [2] : vector<4x16x16xf32> to vector<4x16xf32>
    %58 = vector.shape_cast %57 : vector<4x16xf32> to vector<4x16x1xf32>
    %59 = tpu.reciprocal %58 {approx = true} : vector<4x16x1xf32> -> vector<4x16x1xf32>
    %60 = vector.broadcast %59 : vector<4x16x1xf32> to vector<4x16x16xf32>
    %61 = arith.mulf %56, %60 : vector<4x16x16xf32>
    %62 = arith.truncf %61 : vector<4x16x16xf32> to vector<4x16x16xbf16>
    "tpu.trace_start"() <{level = 10 : i32, message = "bnm,bmd->bnd"}> : () -> ()
    %cst_22 = arith.constant dense<0.000000e+00> : vector<4x16x32xf32>
    %63 = tpu.matmul %62, %50, %cst_22 {dimension_numbers = #tpu.dot_dimension_numbers<[2], [1], [1], [2], [0, 0, 0, 1, 1, 2], [0], [0]>} : vector<4x16x16xbf16>, vector<4x16x32xbf16>, vector<4x16x32xf32> -> vector<4x16x32xf32>
    "tpu.trace_stop"() : () -> ()
    %64 = vector.shape_cast %63 : vector<4x16x32xf32> to vector<1x4x16x32xf32>
    %65 = tpu.transpose %64, [0, 2, 1, 3] : vector<1x4x16x32xf32> -> vector<1x16x4x32xf32>
    %66 = vector.shape_cast %65 : vector<1x16x4x32xf32> to vector<16x128xf32>
    %67 = arith.truncf %66 : vector<16x128xf32> to vector<16x128xbf16>
    %c0_23 = arith.constant 0 : index
    %c0_24 = arith.constant 0 : index
    %c0_25 = arith.constant 0 : index
    %68 = vector.load %arg7[%c0_23, %c0_24, %c0_25] : memref<1x128x128xbf16, #tpu.memory_space<vmem>>, vector<1x128x128xbf16>
    %69 = vector.shape_cast %68 : vector<1x128x128xbf16> to vector<128x128xbf16>
    %cst_26 = arith.constant dense<0.000000e+00> : vector<16x128xf32>
    %70 = tpu.matmul %67, %69, %cst_26 {dimension_numbers = #tpu.dot_dimension_numbers<[1], [0], [0], [1], [0, 0, 1, 1], [], []>} : vector<16x128xbf16>, vector<128x128xbf16>, vector<16x128xf32> -> vector<16x128xf32>
    %c0_27 = arith.constant 0 : index
    %c0_28 = arith.constant 0 : index
    %c0_29 = arith.constant 0 : index
    %71 = vector.load %arg8[%c0_27, %c0_28, %c0_29] : memref<1x1x128xf32, #tpu.memory_space<vmem>>, vector<1x1x128xf32>
    %72 = vector.shape_cast %71 : vector<1x1x128xf32> to vector<1x128xf32>
    %73 = vector.broadcast %72 : vector<1x128xf32> to vector<16x128xf32>
    %74 = arith.addf %70, %73 : vector<16x128xf32>
    %75 = arith.addf %5, %74 : vector<16x128xf32>
    %c0_30 = arith.constant 0 : index
    %c0_31 = arith.constant 0 : index
    %c0_32 = arith.constant 0 : index
    %76 = vector.load %arg9[%c0_30, %c0_31, %c0_32] : memref<1x1x128xf32, #tpu.memory_space<vmem>>, vector<1x1x128xf32>
    %77 = vector.shape_cast %76 : vector<1x1x128xf32> to vector<1x128xf32>
    %c0_33 = arith.constant 0 : index
    %c0_34 = arith.constant 0 : index
    %c0_35 = arith.constant 0 : index
    %78 = vector.load %arg10[%c0_33, %c0_34, %c0_35] : memref<1x1x128xf32, #tpu.memory_space<vmem>>, vector<1x1x128xf32>
    %79 = vector.shape_cast %78 : vector<1x1x128xf32> to vector<1x128xf32>
    %cst_36 = arith.constant dense<0.000000e+00> : vector<16xf32>
    %80 = vector.multi_reduction <add>, %75, %cst_36 [1] : vector<16x128xf32> to vector<16xf32>
    %81 = vector.shape_cast %80 : vector<16xf32> to vector<16x1xf32>
    %cst_37 = arith.constant 1.280000e+02 : f32
    %82 = vector.broadcast %cst_37 : f32 to vector<16x1xf32>
    %83 = arith.divf %81, %82 : vector<16x1xf32>
    %84 = vector.broadcast %83 : vector<16x1xf32> to vector<16x128xf32>
    %85 = arith.subf %75, %84 : vector<16x128xf32>
    %86 = arith.mulf %85, %85 : vector<16x128xf32>
    %cst_38 = arith.constant dense<0.000000e+00> : vector<16xf32>
    %87 = vector.multi_reduction <add>, %86, %cst_38 [1] : vector<16x128xf32> to vector<16xf32>
    %88 = vector.shape_cast %87 : vector<16xf32> to vector<16x1xf32>
    %cst_39 = arith.constant 1.280000e+02 : f32
    %89 = vector.broadcast %cst_39 : f32 to vector<16x1xf32>
    %90 = arith.divf %88, %89 : vector<16x1xf32>
    %cst_40 = arith.constant 9.99999974E-6 : f32
    %91 = vector.broadcast %cst_40 : f32 to vector<16x1xf32>
    %92 = arith.addf %90, %91 : vector<16x1xf32>
    %93 = math.rsqrt %92 : vector<16x1xf32>
    %94 = vector.broadcast %93 : vector<16x1xf32> to vector<16x128xf32>
    %95 = arith.mulf %85, %94 : vector<16x128xf32>
    %96 = vector.broadcast %77 : vector<1x128xf32> to vector<16x128xf32>
    %97 = arith.mulf %95, %96 : vector<16x128xf32>
    %98 = vector.broadcast %79 : vector<1x128xf32> to vector<16x128xf32>
    %99 = arith.addf %97, %98 : vector<16x128xf32>
    %100 = arith.truncf %99 : vector<16x128xf32> to vector<16x128xbf16>
    %c0_41 = arith.constant 0 : index
    %c0_42 = arith.constant 0 : index
    %c0_43 = arith.constant 0 : index
    %101 = vector.load %arg11[%c0_41, %c0_42, %c0_43] : memref<1x128x512xbf16, #tpu.memory_space<vmem>>, vector<1x128x512xbf16>
    %102 = vector.shape_cast %101 : vector<1x128x512xbf16> to vector<128x512xbf16>
    %cst_44 = arith.constant dense<0.000000e+00> : vector<16x512xf32>
    %103 = tpu.matmul %100, %102, %cst_44 {dimension_numbers = #tpu.dot_dimension_numbers<[1], [0], [0], [1], [0, 0, 1, 1], [], []>} : vector<16x128xbf16>, vector<128x512xbf16>, vector<16x512xf32> -> vector<16x512xf32>
    %c0_45 = arith.constant 0 : index
    %c0_46 = arith.constant 0 : index
    %c0_47 = arith.constant 0 : index
    %104 = vector.load %arg12[%c0_45, %c0_46, %c0_47] : memref<1x1x512xf32, #tpu.memory_space<vmem>>, vector<1x1x512xf32>
    %105 = vector.shape_cast %104 : vector<1x1x512xf32> to vector<1x512xf32>
    %106 = vector.broadcast %105 : vector<1x512xf32> to vector<16x512xf32>
    %107 = arith.addf %103, %106 : vector<16x512xf32>
    %cst_48 = arith.constant 5.000000e-01 : f32
    %108 = vector.broadcast %cst_48 : f32 to vector<16x512xf32>
    %109 = arith.mulf %108, %107 : vector<16x512xf32>
    %cst_49 = arith.constant 0.707106769 : f32
    %110 = vector.broadcast %cst_49 : f32 to vector<16x512xf32>
    %111 = arith.mulf %107, %110 : vector<16x512xf32>
    %112 = math.erf %111 : vector<16x512xf32>
    %cst_50 = arith.constant 1.000000e+00 : f32
    %113 = vector.broadcast %cst_50 : f32 to vector<16x512xf32>
    %114 = arith.addf %113, %112 : vector<16x512xf32>
    %115 = arith.mulf %109, %114 : vector<16x512xf32>
    %116 = arith.truncf %115 : vector<16x512xf32> to vector<16x512xbf16>
    %c0_51 = arith.constant 0 : index
    %c0_52 = arith.constant 0 : index
    %c0_53 = arith.constant 0 : index
    %117 = vector.load %arg13[%c0_51, %c0_52, %c0_53] : memref<1x512x128xbf16, #tpu.memory_space<vmem>>, vector<1x512x128xbf16>
    %118 = vector.shape_cast %117 : vector<1x512x128xbf16> to vector<512x128xbf16>
    %cst_54 = arith.constant dense<0.000000e+00> : vector<16x128xf32>
    %119 = tpu.matmul %116, %118, %cst_54 {dimension_numbers = #tpu.dot_dimension_numbers<[1], [0], [0], [1], [0, 0, 1, 1], [], []>} : vector<16x512xbf16>, vector<512x128xbf16>, vector<16x128xf32> -> vector<16x128xf32>
    %c0_55 = arith.constant 0 : index
    %c0_56 = arith.constant 0 : index
    %c0_57 = arith.constant 0 : index
    %120 = vector.load %arg14[%c0_55, %c0_56, %c0_57] : memref<1x1x128xf32, #tpu.memory_space<vmem>>, vector<1x1x128xf32>
    %121 = vector.shape_cast %120 : vector<1x1x128xf32> to vector<1x128xf32>
    %122 = vector.broadcast %121 : vector<1x128xf32> to vector<16x128xf32>
    %123 = arith.addf %119, %122 : vector<16x128xf32>
    %124 = arith.addf %75, %123 : vector<16x128xf32>
    %c0_58 = arith.constant 0 : index
    %c0_59 = arith.constant 0 : index
    %125 = vector.load %arg16[%c0_58, %c0_59] : memref<16x128xf32, #tpu.memory_space<vmem>>, vector<16x128xf32>
    tpu.vector_store %arg16[%c0_58, %c0_59], %124 {strides = array<i32>} : memref<16x128xf32, #tpu.memory_space<vmem>>, vector<16x128xf32>,
    %c1_i32 = arith.constant 1 : i32
    %126 = arith.cmpi eq, %arg1, %c1_i32 : i32
    %127 = arith.extui %126 : i1 to i32
    %c0_i32_60 = arith.constant 0 : i32
    %128 = arith.cmpi ne, %127, %c0_i32_60 : i32
    scf.if %128 {
      %c0_61 = arith.constant 0 : index
      %c0_62 = arith.constant 0 : index
      %129 = vector.load %arg15[%c0_61, %c0_62] : memref<16x128xf32, #tpu.memory_space<vmem>>, vector<16x128xf32>
      tpu.vector_store %arg15[%c0_61, %c0_62], %124 {strides = array<i32>} : memref<16x128xf32, #tpu.memory_space<vmem>>, vector<16x128xf32>,
    } else {
    }
    return
  }
  func.func @transform_0(%arg0: i32, %arg1: i32) -> (i32, i32) {
    %c0_i32 = arith.constant 0 : i32
    %c0_i32_0 = arith.constant 0 : i32
    return %arg0, %c0_i32 : i32, i32
  }
  func.func @transform_1(%arg0: i32, %arg1: i32) -> (i32, i32) {
    %c0_i32 = arith.constant 0 : i32
    %c0_i32_0 = arith.constant 0 : i32
    return %arg0, %c0_i32 : i32, i32
  }
  func.func @transform_2(%arg0: i32, %arg1: i32) -> (i32, i32, i32) {
    %c0_i32 = arith.constant 0 : i32
    %c0_i32_0 = arith.constant 0 : i32
    %c0_i32_1 = arith.constant 0 : i32
    return %arg1, %c0_i32, %c0_i32_0 : i32, i32, i32
  }
  func.func @transform_3(%arg0: i32, %arg1: i32) -> (i32, i32, i32) {
    %c0_i32 = arith.constant 0 : i32
    %c0_i32_0 = arith.constant 0 : i32
    %c0_i32_1 = arith.constant 0 : i32
    return %arg1, %c0_i32, %c0_i32_0 : i32, i32, i32
  }
  func.func @transform_4(%arg0: i32, %arg1: i32) -> (i32, i32, i32) {
    %c0_i32 = arith.constant 0 : i32
    %c0_i32_0 = arith.constant 0 : i32
    %c0_i32_1 = arith.constant 0 : i32
    return %arg1, %c0_i32, %c0_i32_0 : i32, i32, i32
  }
  func.func @transform_5(%arg0: i32, %arg1: i32) -> (i32, i32, i32) {
    %c0_i32 = arith.constant 0 : i32
    %c0_i32_0 = arith.constant 0 : i32
    %c0_i32_1 = arith.constant 0 : i32
    return %arg1, %c0_i32, %c0_i32_0 : i32, i32, i32
  }
  func.func @transform_6(%arg0: i32, %arg1: i32) -> (i32, i32, i32) {
    %c0_i32 = arith.constant 0 : i32
    %c0_i32_0 = arith.constant 0 : i32
    %c0_i32_1 = arith.constant 0 : i32
    return %arg1, %c0_i32, %c0_i32_0 : i32, i32, i32
  }
  func.func @transform_7(%arg0: i32, %arg1: i32) -> (i32, i32, i32) {
    %c0_i32 = arith.constant 0 : i32
    %c0_i32_0 = arith.constant 0 : i32
    %c0_i32_1 = arith.constant 0 : i32
    return %arg1, %c0_i32, %c0_i32_0 : i32, i32, i32
  }
  func.func @transform_8(%arg0: i32, %arg1: i32) -> (i32, i32, i32) {
    %c0_i32 = arith.constant 0 : i32
    %c0_i32_0 = arith.constant 0 : i32
    %c0_i32_1 = arith.constant 0 : i32
    return %arg1, %c0_i32, %c0_i32_0 : i32, i32, i32
  }
  func.func @transform_9(%arg0: i32, %arg1: i32) -> (i32, i32, i32) {
    %c0_i32 = arith.constant 0 : i32
    %c0_i32_0 = arith.constant 0 : i32
    %c0_i32_1 = arith.constant 0 : i32
    return %arg1, %c0_i32, %c0_i32_0 : i32, i32, i32
  }
  func.func @transform_10(%arg0: i32, %arg1: i32) -> (i32, i32, i32) {
    %c0_i32 = arith.constant 0 : i32
    %c0_i32_0 = arith.constant 0 : i32
    %c0_i32_1 = arith.constant 0 : i32
    return %arg1, %c0_i32, %c0_i32_0 : i32, i32, i32
  }
  func.func @transform_11(%arg0: i32, %arg1: i32) -> (i32, i32, i32) {
    %c0_i32 = arith.constant 0 : i32
    %c0_i32_0 = arith.constant 0 : i32
    %c0_i32_1 = arith.constant 0 : i32
    return %arg1, %c0_i32, %c0_i32_0 : i32, i32, i32
  }
  func.func @transform_12(%arg0: i32, %arg1: i32) -> (i32, i32, i32) {
    %c0_i32 = arith.constant 0 : i32
    %c0_i32_0 = arith.constant 0 : i32
    %c0_i32_1 = arith.constant 0 : i32
    return %arg1, %c0_i32, %c0_i32_0 : i32, i32, i32
  }
  func.func @transform_13(%arg0: i32, %arg1: i32) -> (i32, i32) {
    %c0_i32 = arith.constant 0 : i32
    %c0_i32_0 = arith.constant 0 : i32
    return %arg0, %c0_i32 : i32, i32
  }
}

</mosaic_0001>

<llo_original>
// kernel: tpu_custom_call.1
$region0: #{tpu_custom_call.1}
  #allocation0 [shape = 'u32[]', space=smem, size = 0x4, offset = 0x4, fixed_abs, tag = 'smem constant byte address 0x4 - core index']
  #allocation1 [shape = 'u32[144,128]{1,0:T(1,128)}', space=vmem, size = 0x12000, scoped, tag = 'internal scratch']
  #allocation2 [shape = 'f32[16,128]{1,0:T(8,128)}', space=vmem, size = 0x2000, scoped, tag = 'scratch operand']
  %s0 = inlined_call_operand.hbm [shape: f32[32,128], index: 0, kind: input, shape index: {}]
  %s1 = inlined_call_operand.hbm [shape: f32[32,128], index: 1, kind: input, shape index: {}]
  %s2 = inlined_call_operand.vmem [shape: f32[2,1,128], index: 2, kind: input, shape index: {}]
  %s3 = inlined_call_operand.vmem [shape: f32[2,1,128], index: 3, kind: input, shape index: {}]
  %s4 = inlined_call_operand.hbm [shape: bf16[2,128,384], index: 4, kind: input, shape index: {}]
  %s5 = inlined_call_operand.hbm [shape: bf16[2,128,128], index: 5, kind: input, shape index: {}]
  %s6 = inlined_call_operand.vmem [shape: f32[2,1,128], index: 6, kind: input, shape index: {}]
  %s7 = inlined_call_operand.vmem [shape: f32[2,1,128], index: 7, kind: input, shape index: {}]
  %s8 = inlined_call_operand.hbm [shape: f32[2,1,128], index: 8, kind: input, shape index: {}]
  %s9 = inlined_call_operand.hbm [shape: bf16[2,128,512], index: 9, kind: input, shape index: {}]
  %s10 = inlined_call_operand.vmem [shape: f32[2,1,512], index: 10, kind: input, shape index: {}]
  %s11 = inlined_call_operand.hbm [shape: bf16[2,512,128], index: 11, kind: input, shape index: {}]
  %s12 = inlined_call_operand.vmem [shape: f32[2,1,128], index: 12, kind: input, shape index: {}]
  %s13 = inlined_call_operand.hbm [shape: f32[32,128], index: 13, kind: output, shape index: {}]
  %s14 = sld [smem:[#allocation0]]
  $region121: #{tpu_custom_call.1} parent=0
    _
  %s16 = ssub.s32 1, %s14
  %s17 = scalar_select 0, %s16, %s14
  $region1: #{tpu_custom_call.1} parent=0
    #allocation3 [shape = 'u8[16384]{0}', space=vmem, size = 0x4000, scoped, tag = 'input window, operand 0']
    #allocation4 [shape = 's32[2]{0}', space=sflag, size = 0x8, scoped, tag = 'scoped memory for tpu_custom_call.1']
    #allocation5 [shape = 's32[2]{0}', space=sflag, size = 0x8, scoped, tag = 'scoped memory for tpu_custom_call.1']
    #allocation6 [shape = 'u8[16384]{0}', space=vmem, size = 0x4000, scoped, tag = 'input window, operand 1']
    #allocation7 [shape = 's32[2]{0}', space=sflag, size = 0x8, scoped, tag = 'scoped memory for tpu_custom_call.1']
    #allocation8 [shape = 'u8[196608]{0}', space=vmem, size = 0x30000, scoped, tag = 'input window, operand 4']
    #allocation9 [shape = 'u8[65536]{0}', space=vmem, size = 0x10000, scoped, tag = 'input window, operand 5']
    #allocation10 [shape = 's32[2]{0}', space=sflag, size = 0x8, scoped, tag = 'scoped memory for tpu_custom_call.1']
    #allocation11 [shape = 'u8[1024]{0}', space=vmem, size = 0x400, scoped, tag = 'input window, operand 8']
    #allocation12 [shape = 'u8[262144]{0}', space=vmem, size = 0x40000, scoped, tag = 'input window, operand 9']
    #allocation13 [shape = 's32[2]{0}', space=sflag, size = 0x8, scoped, tag = 'scoped memory for tpu_custom_call.1']
    #allocation14 [shape = 'u8[262144]{0}', space=vmem, size = 0x40000, scoped, tag = 'input window, operand 11']
    #allocation15 [shape = 'u8[16384]{0}', space=vmem, size = 0x4000, scoped, tag = 'output window, operand 0']
    %18 = vsyncpa [#allocation4], 0
    %s19 = scalar_lea.sflag [#allocation4], 1
    %20 = vsyncpa %s19, 0
    %21 = vsyncpa [#allocation7], 0
    %s22 = scalar_lea.sflag [#allocation7], 1
    %23 = vsyncpa %s22, 0
    %24 = vsyncpa [#allocation10], 0
    %s25 = scalar_lea.sflag [#allocation10], 1
    %26 = vsyncpa %s25, 0
    %27 = vsyncpa [#allocation13], 0
    %s28 = scalar_lea.sflag [#allocation13], 1
    %29 = vsyncpa %s28, 0
    %30 = vsyncpa [#allocation5], 0
    %s31 = scalar_lea.sflag [#allocation5], 1
    %32 = vsyncpa %s31, 0
    loop: start=0, step=1, limit=6
    $region2: #{tpu_custom_call.1} parent=1 // loop_pre_header
      _
    $region3: #{tpu_custom_call.1} parent=1 // loop_header
      %s34 = sphi 0, %s38
      %p35 = scmp.ge.s32.totalorder %s34, 6
      %s41 = sphi 0, %s53
      %s42 = sphi 0, %s49
      %s43 = sphi 0, %s41
      %s44 = sphi 0, %s42
      %s45 = sphi 0, %s43
      %s46 = sphi 0, %s44
      %s56 = sphi 0, %s58
      %s59 = sphi 0, %s56
      %s60 = sphi 0, %s59
      %s76 = sphi 0, %s60
      %s82 = sphi 0, %s84
      %s85 = sphi 0, %s82
      %s86 = sphi 0, %s85
      %s102 = sphi 0, %s86
      %s108 = sphi 0, %s110
      %s111 = sphi 0, %s108
      %s112 = sphi 0, %s111
      %s128 = sphi 0, %s112
      %s134 = sphi 0, %s136
      %s137 = sphi 0, %s134
      %s138 = sphi 0, %s137
      %s154 = sphi 0, %s138
      %s160 = sphi 0, %s162
      %s163 = sphi 0, %s160
      %s164 = sphi 0, %s163
      %s180 = sphi 0, %s164
      %s186 = sphi 0, %s188
      %s189 = sphi 0, %s186
      %s190 = sphi 0, %s189
      %s206 = sphi 0, %s190
      %s212 = sphi 0, %s214
      %s215 = sphi 0, %s212
      %s216 = sphi 0, %s215
      %s232 = sphi 0, %s216
      %s238 = sphi 0, %s240
      %s241 = sphi 0, %s238
      %s242 = sphi 0, %s241
      %s258 = sphi 0, %s242
      %s264 = sphi 0, %s266
      %s267 = sphi 0, %s264
      %s268 = sphi 0, %s267
      %s284 = sphi 0, %s268
      %s290 = sphi 0, %s292
      %s293 = sphi 0, %s290
      %s294 = sphi 0, %s293
      %s310 = sphi 0, %s294
      %s316 = sphi 0, %s318
      %s319 = sphi 0, %s316
      %s320 = sphi 0, %s319
      %s336 = sphi 0, %s320
      %s342 = sphi 0, %s344
      %s345 = sphi 0, %s342
      %s346 = sphi 0, %s345
      %s362 = sphi 0, %s346
      %s368 = sphi 0, %s370
      %s371 = sphi 0, %s368
      %s372 = sphi 0, %s371
      %s388 = sphi 0, %s372
      %s394 = sphi 0, %s396
      %s397 = sphi 0, %s394
      %s398 = sphi 0, %s397
      %s414 = sphi 0, %s398
    $region4: #{tpu_custom_call.1} parent=1 // loop_header_branch
      %37 = sbr.rel (%p35) target = $region8
    $region5: #{tpu_custom_call.1} parent=1 // loop_body
      %s39 = ssub.s32 %s34, 1
      %s40 = ssub.s32 %s34, 2
      %s47 = sadd.s32 1, %s42
      %p48 = scmp.ge.s32.totalorder %s47, 2
      %s49 = scalar_select %p48, 0, %s47
      %s50 = sadd.s32 1, %s41
      %s51 = scalar_select %p48, %s50, %s41
      %p52 = scmp.ge.s32.totalorder %s51, 2
      %s53 = scalar_select %p52, 0, %s51
      %s54 = ssub.s32 %s41, %s53
      %p55 = scmp.eq.s32.totalorder %s54, 0
      %s57 = sadd.s32 %s56, 1
      %s58 = scalar_select %p55, %s56, %s57
      %p61 = pneg %p55
      %p62 = scmp.eq.s32.totalorder %s34, 3
      %p63 = por %p61, %p62
      %p64 = scmp.ne.s32.totalorder %s56, %s59
      %p65 = scmp.eq.s32.totalorder %s34, 0
      %p66 = por %p64, %p65
      %p67 = scmp.ne.s32.totalorder %s56, %s59
      %p68 = scmp.eq.s32.totalorder %s39, 3
      %p69 = por %p67, %p68
      %p70 = scmp.ne.s32.totalorder %s59, %s60
      %p71 = scmp.eq.s32.totalorder %s39, 0
      %p72 = por %p70, %p71
      %p73 = scmp.ne.s32.totalorder %s59, %s60
      %p74 = scmp.eq.s32.totalorder %s40, 3
      %p75 = por %p73, %p74
      %p77 = scmp.ne.s32.totalorder %s60, %s76
      %p78 = scmp.eq.s32.totalorder %s40, 0
      %p79 = por %p77, %p78
      %s80 = ssub.s32 %s41, %s53
      %p81 = scmp.eq.s32.totalorder %s80, 0
      %s83 = sadd.s32 %s82, 1
      %s84 = scalar_select %p81, %s82, %s83
      %p87 = pneg %p81
      %p88 = scmp.eq.s32.totalorder %s34, 3
      %p89 = por %p87, %p88
      %p90 = scmp.ne.s32.totalorder %s82, %s85
      %p91 = scmp.eq.s32.totalorder %s34, 0
      %p92 = por %p90, %p91
      %p93 = scmp.ne.s32.totalorder %s82, %s85
      %p94 = scmp.eq.s32.totalorder %s39, 3
      %p95 = por %p93, %p94
      %p96 = scmp.ne.s32.totalorder %s85, %s86
      %p97 = scmp.eq.s32.totalorder %s39, 0
      %p98 = por %p96, %p97
      %p99 = scmp.ne.s32.totalorder %s85, %s86
      %p100 = scmp.eq.s32.totalorder %s40, 3
      %p101 = por %p99, %p100
      %p103 = scmp.ne.s32.totalorder %s86, %s102
      %p104 = scmp.eq.s32.totalorder %s40, 0
      %p105 = por %p103, %p104
      %s106 = ssub.s32 %s42, %s49
      %p107 = scmp.eq.s32.totalorder %s106, 0
      %s109 = sadd.s32 %s108, 1
      %s110 = scalar_select %p107, %s108, %s109
      %p113 = pneg %p107
      %p114 = scmp.eq.s32.totalorder %s34, 3
      %p115 = por %p113, %p114
      %p116 = scmp.ne.s32.totalorder %s108, %s111
      %p117 = scmp.eq.s32.totalorder %s34, 0
      %p118 = por %p116, %p117
      %p119 = scmp.ne.s32.totalorder %s108, %s111
      %p120 = scmp.eq.s32.totalorder %s39, 3
      %p121 = por %p119, %p120
      %p122 = scmp.ne.s32.totalorder %s111, %s112
      %p123 = scmp.eq.s32.totalorder %s39, 0
      %p124 = por %p122, %p123
      %p125 = scmp.ne.s32.totalorder %s111, %s112
      %p126 = scmp.eq.s32.totalorder %s40, 3
      %p127 = por %p125, %p126
      %p129 = scmp.ne.s32.totalorder %s112, %s128
      %p130 = scmp.eq.s32.totalorder %s40, 0
      %p131 = por %p129, %p130
      %s132 = ssub.s32 %s42, %s49
      %p133 = scmp.eq.s32.totalorder %s132, 0
      %s135 = sadd.s32 %s134, 1
      %s136 = scalar_select %p133, %s134, %s135
      %p139 = pneg %p133
      %p140 = scmp.eq.s32.totalorder %s34, 3
      %p141 = por %p139, %p140
      %p142 = scmp.ne.s32.totalorder %s134, %s137
      %p143 = scmp.eq.s32.totalorder %s34, 0
      %p144 = por %p142, %p143
      %p145 = scmp.ne.s32.totalorder %s134, %s137
      %p146 = scmp.eq.s32.totalorder %s39, 3
      %p147 = por %p145, %p146
      %p148 = scmp.ne.s32.totalorder %s137, %s138
      %p149 = scmp.eq.s32.totalorder %s39, 0
      %p150 = por %p148, %p149
      %p151 = scmp.ne.s32.totalorder %s137, %s138
      %p152 = scmp.eq.s32.totalorder %s40, 3
      %p153 = por %p151, %p152
      %p155 = scmp.ne.s32.totalorder %s138, %s154
      %p156 = scmp.eq.s32.totalorder %s40, 0
      %p157 = por %p155, %p156
      %s158 = ssub.s32 %s42, %s49
      %p159 = scmp.eq.s32.totalorder %s158, 0
      %s161 = sadd.s32 %s160, 1
      %s162 = scalar_select %p159, %s160, %s161
      %p165 = pneg %p159
      %p166 = scmp.eq.s32.totalorder %s34, 3
      %p167 = por %p165, %p166
      %p168 = scmp.ne.s32.totalorder %s160, %s163
      %p169 = scmp.eq.s32.totalorder %s34, 0
      %p170 = por %p168, %p169
      %p171 = scmp.ne.s32.totalorder %s160, %s163
      %p172 = scmp.eq.s32.totalorder %s39, 3
      %p173 = por %p171, %p172
      %p174 = scmp.ne.s32.totalorder %s163, %s164
      %p175 = scmp.eq.s32.totalorder %s39, 0
      %p176 = por %p174, %p175
      %p177 = scmp.ne.s32.totalorder %s163, %s164
      %p178 = scmp.eq.s32.totalorder %s40, 3
      %p179 = por %p177, %p178
      %p181 = scmp.ne.s32.totalorder %s164, %s180
      %p182 = scmp.eq.s32.totalorder %s40, 0
      %p183 = por %p181, %p182
      %s184 = ssub.s32 %s42, %s49
      %p185 = scmp.eq.s32.totalorder %s184, 0
      %s187 = sadd.s32 %s186, 1
      %s188 = scalar_select %p185, %s186, %s187
      %p191 = pneg %p185
      %p192 = scmp.eq.s32.totalorder %s34, 3
      %p193 = por %p191, %p192
      %p194 = scmp.ne.s32.totalorder %s186, %s189
      %p195 = scmp.eq.s32.totalorder %s34, 0
      %p196 = por %p194, %p195
      %p197 = scmp.ne.s32.totalorder %s186, %s189
      %p198 = scmp.eq.s32.totalorder %s39, 3
      %p199 = por %p197, %p198
      %p200 = scmp.ne.s32.totalorder %s189, %s190
      %p201 = scmp.eq.s32.totalorder %s39, 0
      %p202 = por %p200, %p201
      %p203 = scmp.ne.s32.totalorder %s189, %s190
      %p204 = scmp.eq.s32.totalorder %s40, 3
      %p205 = por %p203, %p204
      %p207 = scmp.ne.s32.totalorder %s190, %s206
      %p208 = scmp.eq.s32.totalorder %s40, 0
      %p209 = por %p207, %p208
      %s210 = ssub.s32 %s42, %s49
      %p211 = scmp.eq.s32.totalorder %s210, 0
      %s213 = sadd.s32 %s212, 1
      %s214 = scalar_select %p211, %s212, %s213
      %p217 = pneg %p211
      %p218 = scmp.eq.s32.totalorder %s34, 3
      %p219 = por %p217, %p218
      %p220 = scmp.ne.s32.totalorder %s212, %s215
      %p221 = scmp.eq.s32.totalorder %s34, 0
      %p222 = por %p220, %p221
      %p223 = scmp.ne.s32.totalorder %s212, %s215
      %p224 = scmp.eq.s32.totalorder %s39, 3
      %p225 = por %p223, %p224
      %p226 = scmp.ne.s32.totalorder %s215, %s216
      %p227 = scmp.eq.s32.totalorder %s39, 0
      %p228 = por %p226, %p227
      %p229 = scmp.ne.s32.totalorder %s215, %s216
      %p230 = scmp.eq.s32.totalorder %s40, 3
      %p231 = por %p229, %p230
      %p233 = scmp.ne.s32.totalorder %s216, %s232
      %p234 = scmp.eq.s32.totalorder %s40, 0
      %p235 = por %p233, %p234
      %s236 = ssub.s32 %s42, %s49
      %p237 = scmp.eq.s32.totalorder %s236, 0
      %s239 = sadd.s32 %s238, 1
      %s240 = scalar_select %p237, %s238, %s239
      %p243 = pneg %p237
      %p244 = scmp.eq.s32.totalorder %s34, 3
      %p245 = por %p243, %p244
      %p246 = scmp.ne.s32.totalorder %s238, %s241
      %p247 = scmp.eq.s32.totalorder %s34, 0
      %p248 = por %p246, %p247
      %p249 = scmp.ne.s32.totalorder %s238, %s241
      %p250 = scmp.eq.s32.totalorder %s39, 3
      %p251 = por %p249, %p250
      %p252 = scmp.ne.s32.totalorder %s241, %s242
      %p253 = scmp.eq.s32.totalorder %s39, 0
      %p254 = por %p252, %p253
      %p255 = scmp.ne.s32.totalorder %s241, %s242
      %p256 = scmp.eq.s32.totalorder %s40, 3
      %p257 = por %p255, %p256
      %p259 = scmp.ne.s32.totalorder %s242, %s258
      %p260 = scmp.eq.s32.totalorder %s40, 0
      %p261 = por %p259, %p260
      %s262 = ssub.s32 %s42, %s49
      %p263 = scmp.eq.s32.totalorder %s262, 0
      %s265 = sadd.s32 %s264, 1
      %s266 = scalar_select %p263, %s264, %s265
      %p269 = pneg %p263
      %p270 = scmp.eq.s32.totalorder %s34, 3
      %p271 = por %p269, %p270
      %p272 = scmp.ne.s32.totalorder %s264, %s267
      %p273 = scmp.eq.s32.totalorder %s34, 0
      %p274 = por %p272, %p273
      %p275 = scmp.ne.s32.totalorder %s264, %s267
      %p276 = scmp.eq.s32.totalorder %s39, 3
      %p277 = por %p275, %p276
      %p278 = scmp.ne.s32.totalorder %s267, %s268
      %p279 = scmp.eq.s32.totalorder %s39, 0
      %p280 = por %p278, %p279
      %p281 = scmp.ne.s32.totalorder %s267, %s268
      %p282 = scmp.eq.s32.totalorder %s40, 3
      %p283 = por %p281, %p282
      %p285 = scmp.ne.s32.totalorder %s268, %s284
      %p286 = scmp.eq.s32.totalorder %s40, 0
      %p287 = por %p285, %p286
      %s288 = ssub.s32 %s42, %s49
      %p289 = scmp.eq.s32.totalorder %s288, 0
      %s291 = sadd.s32 %s290, 1
      %s292 = scalar_select %p289, %s290, %s291
      %p295 = pneg %p289
      %p296 = scmp.eq.s32.totalorder %s34, 3
      %p297 = por %p295, %p296
      %p298 = scmp.ne.s32.totalorder %s290, %s293
      %p299 = scmp.eq.s32.totalorder %s34, 0
      %p300 = por %p298, %p299
      %p301 = scmp.ne.s32.totalorder %s290, %s293
      %p302 = scmp.eq.s32.totalorder %s39, 3
      %p303 = por %p301, %p302
      %p304 = scmp.ne.s32.totalorder %s293, %s294
      %p305 = scmp.eq.s32.totalorder %s39, 0
      %p306 = por %p304, %p305
      %p307 = scmp.ne.s32.totalorder %s293, %s294
      %p308 = scmp.eq.s32.totalorder %s40, 3
      %p309 = por %p307, %p308
      %p311 = scmp.ne.s32.totalorder %s294, %s310
      %p312 = scmp.eq.s32.totalorder %s40, 0
      %p313 = por %p311, %p312
      %s314 = ssub.s32 %s42, %s49
      %p315 = scmp.eq.s32.totalorder %s314, 0
      %s317 = sadd.s32 %s316, 1
      %s318 = scalar_select %p315, %s316, %s317
      %p321 = pneg %p315
      %p322 = scmp.eq.s32.totalorder %s34, 3
      %p323 = por %p321, %p322
      %p324 = scmp.ne.s32.totalorder %s316, %s319
      %p325 = scmp.eq.s32.totalorder %s34, 0
      %p326 = por %p324, %p325
      %p327 = scmp.ne.s32.totalorder %s316, %s319
      %p328 = scmp.eq.s32.totalorder %s39, 3
      %p329 = por %p327, %p328
      %p330 = scmp.ne.s32.totalorder %s319, %s320
      %p331 = scmp.eq.s32.totalorder %s39, 0
      %p332 = por %p330, %p331
      %p333 = scmp.ne.s32.totalorder %s319, %s320
      %p334 = scmp.eq.s32.totalorder %s40, 3
      %p335 = por %p333, %p334
      %p337 = scmp.ne.s32.totalorder %s320, %s336
      %p338 = scmp.eq.s32.totalorder %s40, 0
      %p339 = por %p337, %p338
      %s340 = ssub.s32 %s42, %s49
      %p341 = scmp.eq.s32.totalorder %s340, 0
      %s343 = sadd.s32 %s342, 1
      %s344 = scalar_select %p341, %s342, %s343
      %p347 = pneg %p341
      %p348 = scmp.eq.s32.totalorder %s34, 3
      %p349 = por %p347, %p348
      %p350 = scmp.ne.s32.totalorder %s342, %s345
      %p351 = scmp.eq.s32.totalorder %s34, 0
      %p352 = por %p350, %p351
      %p353 = scmp.ne.s32.totalorder %s342, %s345
      %p354 = scmp.eq.s32.totalorder %s39, 3
      %p355 = por %p353, %p354
      %p356 = scmp.ne.s32.totalorder %s345, %s346
      %p357 = scmp.eq.s32.totalorder %s39, 0
      %p358 = por %p356, %p357
      %p359 = scmp.ne.s32.totalorder %s345, %s346
      %p360 = scmp.eq.s32.totalorder %s40, 3
      %p361 = por %p359, %p360
      %p363 = scmp.ne.s32.totalorder %s346, %s362
      %p364 = scmp.eq.s32.totalorder %s40, 0
      %p365 = por %p363, %p364
      %s366 = ssub.s32 %s42, %s49
      %p367 = scmp.eq.s32.totalorder %s366, 0
      %s369 = sadd.s32 %s368, 1
      %s370 = scalar_select %p367, %s368, %s369
      %p373 = pneg %p367
      %p374 = scmp.eq.s32.totalorder %s34, 3
      %p375 = por %p373, %p374
      %p376 = scmp.ne.s32.totalorder %s368, %s371
      %p377 = scmp.eq.s32.totalorder %s34, 0
      %p378 = por %p376, %p377
      %p379 = scmp.ne.s32.totalorder %s368, %s371
      %p380 = scmp.eq.s32.totalorder %s39, 3
      %p381 = por %p379, %p380
      %p382 = scmp.ne.s32.totalorder %s371, %s372
      %p383 = scmp.eq.s32.totalorder %s39, 0
      %p384 = por %p382, %p383
      %p385 = scmp.ne.s32.totalorder %s371, %s372
      %p386 = scmp.eq.s32.totalorder %s40, 3
      %p387 = por %p385, %p386
      %p389 = scmp.ne.s32.totalorder %s372, %s388
      %p390 = scmp.eq.s32.totalorder %s40, 0
      %p391 = por %p389, %p390
      %s392 = ssub.s32 %s41, %s53
      %p393 = scmp.eq.s32.totalorder %s392, 0
      %s395 = sadd.s32 %s394, 1
      %s396 = scalar_select %p393, %s394, %s395
      %p399 = pneg %p393
      %p400 = scmp.eq.s32.totalorder %s34, 3
      %p401 = por %p399, %p400
      %p402 = scmp.ne.s32.totalorder %s394, %s397
      %p403 = scmp.eq.s32.totalorder %s34, 0
      %p404 = por %p402, %p403
      %p405 = scmp.ne.s32.totalorder %s394, %s397
      %p406 = scmp.eq.s32.totalorder %s39, 3
      %p407 = por %p405, %p406
      %p408 = scmp.ne.s32.totalorder %s397, %s398
      %p409 = scmp.eq.s32.totalorder %s39, 0
      %p410 = por %p408, %p409
      %p411 = scmp.ne.s32.totalorder %s397, %s398
      %p412 = scmp.eq.s32.totalorder %s40, 3
      %p413 = por %p411, %p412
      %p415 = scmp.ne.s32.totalorder %s398, %s414
      %p416 = scmp.eq.s32.totalorder %s40, 0
      %p417 = por %p415, %p416
      %p418 = scmp.le.s32.totalorder 1, %s34
      %p419 = scmp.lt.s32.totalorder %s34, 5
      %p420 = pnand %p418, %p419
      %p421 = pneg %p420
      // Predicated region
      $region9: #{tpu_custom_call.1} parent=5 // pred_check
        _
      $region10: #{tpu_custom_call.1} parent=5 // pred_check_branch
        %423 = sbr.rel (%p420) target = $region12
      $region11: #{tpu_custom_call.1} parent=5 // pred_region
        %s424 = ssub.s32 %s34, 1
      $region12: #{tpu_custom_call.1} parent=5 // pred_fallthru
        _
      %p425 = scmp.lt.s32.totalorder %s34, 4
      // Predicated region
      $region13: #{tpu_custom_call.1} parent=5 // pred_check
        %p426 = pneg %p425
      $region14: #{tpu_custom_call.1} parent=5 // pred_check_branch
        %428 = sbr.rel (%p426) target = $region16
      $region15: #{tpu_custom_call.1} parent=5 // pred_region
        // Predicated region
        $region17: #{tpu_custom_call.1} parent=15 // pred_check
          %p429 = pneg %p66
        $region18: #{tpu_custom_call.1} parent=15 // pred_check_branch
          %431 = sbr.rel (%p429) target = $region20
        $region19: #{tpu_custom_call.1} parent=15 // pred_region
          %s432 = sand.u32 %s56, 1
          %s433 = scalar_lea.sflag [#allocation4], %s432
          %s434 = sand.u32 %s56, 1
          %s435 = smul.addr %s434, 16
          %s436 = scalar_lea.vmem [#allocation3], %s435
          %s437 = smul.u32 2, %s41
          %s439 = ssub.s32 256, 256
          %440 = vsyncadd %s433, %s439
          %s441 = smul.addr %s437, 128
          %s442 = scalar_lea.hbm %s0, %s441
          %s443 = sshll.u32 %s436, 4
          %s444 = int_to_ptr.vmem [resolvable:$true] %s443
          %449 = dma.hbm_to_vmem [thread:$0]  %s442, 256, %s444, %s433, 128, 128, 8
        $region20: #{tpu_custom_call.1} parent=15 // pred_fallthru
          _
        // Predicated region
        $region21: #{tpu_custom_call.1} parent=15 // pred_check
          %p450 = pneg %p92
        $region22: #{tpu_custom_call.1} parent=15 // pred_check_branch
          %452 = sbr.rel (%p450) target = $region24
        $region23: #{tpu_custom_call.1} parent=15 // pred_region
          %s453 = sand.u32 %s34, 1
          %s454 = scalar_lea.sflag [#allocation7], %s453
          %s455 = sand.u32 %s82, 1
          %s456 = smul.addr %s455, 16
          %s457 = scalar_lea.vmem [#allocation6], %s456
          %s458 = smul.u32 2, %s41
          %s460 = ssub.s32 256, 256
          %461 = vsyncadd %s454, %s460
          %s462 = smul.addr %s458, 128
          %s463 = scalar_lea.hbm %s1, %s462
          %s464 = sshll.u32 %s457, 4
          %s465 = int_to_ptr.vmem [resolvable:$true] %s464
          %470 = dma.hbm_to_vmem [thread:$0]  %s463, 256, %s465, %s454, 128, 128, 8
        $region24: #{tpu_custom_call.1} parent=15 // pred_fallthru
          _
        // Predicated region
        $region25: #{tpu_custom_call.1} parent=15 // pred_check
          %p471 = pneg %p118
        $region26: #{tpu_custom_call.1} parent=15 // pred_check_branch
          %473 = sbr.rel (%p471) target = $region28
        $region27: #{tpu_custom_call.1} parent=15 // pred_region
          %p474 = scmp.lt.s32.totalorder %s42, 1
          %s475 = scalar_select %p474, %s42, 1
          %s476 = scalar_lea.vmem %s2, %s475
        $region28: #{tpu_custom_call.1} parent=15 // pred_fallthru
          _
        // Predicated region
        $region29: #{tpu_custom_call.1} parent=15 // pred_check
          %p477 = pneg %p144
        $region30: #{tpu_custom_call.1} parent=15 // pred_check_branch
          %479 = sbr.rel (%p477) target = $region32
        $region31: #{tpu_custom_call.1} parent=15 // pred_region
          %p480 = scmp.lt.s32.totalorder %s42, 1
          %s481 = scalar_select %p480, %s42, 1
          %s482 = scalar_lea.vmem %s3, %s481
        $region32: #{tpu_custom_call.1} parent=15 // pred_fallthru
          _
        // Predicated region
        $region33: #{tpu_custom_call.1} parent=15 // pred_check
          %p483 = pneg %p170
        $region34: #{tpu_custom_call.1} parent=15 // pred_check_branch
          %485 = sbr.rel (%p483) target = $region36
        $region35: #{tpu_custom_call.1} parent=15 // pred_region
          %s486 = sand.u32 %s34, 1
          %s487 = scalar_lea.sflag [#allocation7], %s486
          %s488 = sand.u32 %s160, 1
          %s489 = smul.addr %s488, 192
          %s490 = scalar_lea.vmem [#allocation8], %s489
          %s492 = ssub.s32 3072, 3072
          %493 = vsyncadd %s487, %s492
          %s494 = smul.addr %s42, 48
          %s495 = smul.addr %s494, 64
          %s496 = scalar_lea.hbm %s4, %s495
          %s497 = sshll.u32 %s490, 4
          %s498 = int_to_ptr.vmem [resolvable:$true] %s497
          %503 = dma.hbm_to_vmem [thread:$0]  %s496, 3072, %s498, %s487, 192, 192, 12
        $region36: #{tpu_custom_call.1} parent=15 // pred_fallthru
          _
        // Predicated region
        $region37: #{tpu_custom_call.1} parent=15 // pred_check
          %p504 = pneg %p196
        $region38: #{tpu_custom_call.1} parent=15 // pred_check_branch
          %506 = sbr.rel (%p504) target = $region40
        $region39: #{tpu_custom_call.1} parent=15 // pred_region
          %s507 = sand.u32 %s34, 1
          %s508 = scalar_lea.sflag [#allocation10], %s507
          %s509 = sand.u32 %s186, 1
          %s510 = smul.addr %s509, 64
          %s511 = scalar_lea.vmem [#allocation9], %s510
          %s513 = ssub.s32 1024, 1024
          %514 = vsyncadd %s508, %s513
          %s515 = smul.addr %s42, 16
          %s516 = smul.addr %s515, 64
          %s517 = scalar_lea.hbm %s5, %s516
          %s518 = sshll.u32 %s511, 4
          %s519 = int_to_ptr.vmem [resolvable:$true] %s518
          %524 = dma.hbm_to_vmem [thread:$0]  %s517, 1024, %s519, %s508, 64, 64, 4
        $region40: #{tpu_custom_call.1} parent=15 // pred_fallthru
          _
        // Predicated region
        $region41: #{tpu_custom_call.1} parent=15 // pred_check
          %p525 = pneg %p222
        $region42: #{tpu_custom_call.1} parent=15 // pred_check_branch
          %527 = sbr.rel (%p525) target = $region44
        $region43: #{tpu_custom_call.1} parent=15 // pred_region
          %p528 = scmp.lt.s32.totalorder %s42, 1
          %s529 = scalar_select %p528, %s42, 1
          %s530 = scalar_lea.vmem %s6, %s529
        $region44: #{tpu_custom_call.1} parent=15 // pred_fallthru
          _
        // Predicated region
        $region45: #{tpu_custom_call.1} parent=15 // pred_check
          %p531 = pneg %p248
        $region46: #{tpu_custom_call.1} parent=15 // pred_check_branch
          %533 = sbr.rel (%p531) target = $region48
        $region47: #{tpu_custom_call.1} parent=15 // pred_region
          %p534 = scmp.lt.s32.totalorder %s42, 1
          %s535 = scalar_select %p534, %s42, 1
          %s536 = scalar_lea.vmem %s7, %s535
        $region48: #{tpu_custom_call.1} parent=15 // pred_fallthru
          _
        // Predicated region
        $region49: #{tpu_custom_call.1} parent=15 // pred_check
          %p537 = pneg %p274
        $region50: #{tpu_custom_call.1} parent=15 // pred_check_branch
          %539 = sbr.rel (%p537) target = $region52
        $region51: #{tpu_custom_call.1} parent=15 // pred_region
          %s540 = sand.u32 %s34, 1
          %s541 = scalar_lea.sflag [#allocation10], %s540
          %s542 = sand.u32 %s264, 1
          %s543 = scalar_lea.vmem [#allocation11], %s542
          %s545 = ssub.s32 16, 16
          %546 = vsyncadd %s541, %s545
          %s547 = smul.addr %s42, 16
          %s548 = scalar_lea.hbm %s8, %s547
          %s550 = sshll.u32 %s543, 4
          %s551 = int_to_ptr.vmem [resolvable:$true] %s550
          %553 = dma.hbm_to_vmem [thread:$0]  %s548, 16, %s551, %s541
        $region52: #{tpu_custom_call.1} parent=15 // pred_fallthru
          _
        // Predicated region
        $region53: #{tpu_custom_call.1} parent=15 // pred_check
          %p554 = pneg %p300
        $region54: #{tpu_custom_call.1} parent=15 // pred_check_branch
          %556 = sbr.rel (%p554) target = $region56
        $region55: #{tpu_custom_call.1} parent=15 // pred_region
          %s557 = sand.u32 %s34, 1
          %s558 = scalar_lea.sflag [#allocation13], %s557
          %s559 = sand.u32 %s290, 1
          %s560 = smul.addr %s559, 256
          %s561 = scalar_lea.vmem [#allocation12], %s560
          %s563 = ssub.s32 4096, 4096
          %564 = vsyncadd %s558, %s563
          %s565 = smul.addr %s42, 64
          %s566 = smul.addr %s565, 64
          %s567 = scalar_lea.hbm %s9, %s566
          %s568 = sshll.u32 %s561, 4
          %s569 = int_to_ptr.vmem [resolvable:$true] %s568
          %574 = dma.hbm_to_vmem [thread:$0]  %s567, 4096, %s569, %s558, 256, 256, 16
        $region56: #{tpu_custom_call.1} parent=15 // pred_fallthru
          _
        // Predicated region
        $region57: #{tpu_custom_call.1} parent=15 // pred_check
          %p575 = pneg %p326
        $region58: #{tpu_custom_call.1} parent=15 // pred_check_branch
          %577 = sbr.rel (%p575) target = $region60
        $region59: #{tpu_custom_call.1} parent=15 // pred_region
          %p578 = scmp.lt.s32.totalorder %s42, 1
          %s579 = scalar_select %p578, %s42, 1
          %s580 = smul.addr %s579, 4
          %s581 = scalar_lea.vmem %s10, %s580
        $region60: #{tpu_custom_call.1} parent=15 // pred_fallthru
          _
        // Predicated region
        $region61: #{tpu_custom_call.1} parent=15 // pred_check
          %p582 = pneg %p352
        $region62: #{tpu_custom_call.1} parent=15 // pred_check_branch
          %584 = sbr.rel (%p582) target = $region64
        $region63: #{tpu_custom_call.1} parent=15 // pred_region
          %s585 = sand.u32 %s34, 1
          %s586 = scalar_lea.sflag [#allocation13], %s585
          %s587 = sand.u32 %s342, 1
          %s588 = smul.addr %s587, 256
          %s589 = scalar_lea.vmem [#allocation14], %s588
          %s591 = ssub.s32 4096, 4096
          %592 = vsyncadd %s586, %s591
          %s593 = smul.addr %s42, 64
          %s594 = smul.addr %s593, 64
          %s595 = scalar_lea.hbm %s11, %s594
          %s596 = sshll.u32 %s589, 4
          %s597 = int_to_ptr.vmem [resolvable:$true] %s596
          %602 = dma.hbm_to_vmem [thread:$0]  %s595, 4096, %s597, %s586, 64, 64, 4
        $region64: #{tpu_custom_call.1} parent=15 // pred_fallthru
          _
        // Predicated region
        $region65: #{tpu_custom_call.1} parent=15 // pred_check
          %p603 = pneg %p378
        $region66: #{tpu_custom_call.1} parent=15 // pred_check_branch
          %605 = sbr.rel (%p603) target = $region68
        $region67: #{tpu_custom_call.1} parent=15 // pred_region
          %p606 = scmp.lt.s32.totalorder %s42, 1
          %s607 = scalar_select %p606, %s42, 1
          %s608 = scalar_lea.vmem %s12, %s607
        $region68: #{tpu_custom_call.1} parent=15 // pred_fallthru
          _
      $region16: #{tpu_custom_call.1} parent=5 // pred_fallthru
        _
      %p609 = scmp.le.s32.totalorder 1, %s34
      %p610 = scmp.lt.s32.totalorder %s34, 5
      %p611 = pnand %p609, %p610
      %p612 = pneg %p611
      // Predicated region
      $region69: #{tpu_custom_call.1} parent=5 // pred_check
        _
      $region70: #{tpu_custom_call.1} parent=5 // pred_check_branch
        %614 = sbr.rel (%p611) target = $region72
      $region71: #{tpu_custom_call.1} parent=5 // pred_region
        %s615 = ssub.s32 %s34, 1
        %s616 = sand.u32 %s59, 1
        %s617 = scalar_lea.sflag [#allocation4], %s616
        %s618 = sand.u32 %s59, 1
        %s619 = smul.addr %s618, 16
        %s620 = scalar_lea.vmem [#allocation3], %s619
        // Predicated region
        $region73: #{tpu_custom_call.1} parent=71 // pred_check
          %p621 = pneg %p72
        $region74: #{tpu_custom_call.1} parent=71 // pred_check_branch
          %623 = sbr.rel (%p621) target = $region76
        $region75: #{tpu_custom_call.1} parent=71 // pred_region
          %624 = dma.done %s617, 256
        $region76: #{tpu_custom_call.1} parent=71 // pred_fallthru
          _
        %s625 = sand.u32 %s39, 1
        %s626 = scalar_lea.sflag [#allocation7], %s625
        %s627 = sand.u32 %s85, 1
        %s628 = smul.addr %s627, 16
        %s629 = scalar_lea.vmem [#allocation6], %s628
        // Predicated region
        $region77: #{tpu_custom_call.1} parent=71 // pred_check
          %p630 = pneg %p98
        $region78: #{tpu_custom_call.1} parent=71 // pred_check_branch
          %632 = sbr.rel (%p630) target = $region80
        $region79: #{tpu_custom_call.1} parent=71 // pred_region
          %633 = dma.done %s626, 256
        $region80: #{tpu_custom_call.1} parent=71 // pred_fallthru
          _
        %s634 = sand.u32 %s39, 1
        %s635 = scalar_lea.sflag [#allocation7], %s634
        %s636 = sand.u32 %s163, 1
        %s637 = smul.addr %s636, 192
        %s638 = scalar_lea.vmem [#allocation8], %s637
        // Predicated region
        $region81: #{tpu_custom_call.1} parent=71 // pred_check
          %p639 = pneg %p176
        $region82: #{tpu_custom_call.1} parent=71 // pred_check_branch
          %641 = sbr.rel (%p639) target = $region84
        $region83: #{tpu_custom_call.1} parent=71 // pred_region
          %642 = dma.done %s635, 3072
        $region84: #{tpu_custom_call.1} parent=71 // pred_fallthru
          _
        %s643 = sand.u32 %s39, 1
        %s644 = scalar_lea.sflag [#allocation10], %s643
        %s645 = sand.u32 %s189, 1
        %s646 = smul.addr %s645, 64
        %s647 = scalar_lea.vmem [#allocation9], %s646
        // Predicated region
        $region85: #{tpu_custom_call.1} parent=71 // pred_check
          %p648 = pneg %p202
        $region86: #{tpu_custom_call.1} parent=71 // pred_check_branch
          %650 = sbr.rel (%p648) target = $region88
        $region87: #{tpu_custom_call.1} parent=71 // pred_region
          %651 = dma.done %s644, 1024
        $region88: #{tpu_custom_call.1} parent=71 // pred_fallthru
          _
        %s652 = sand.u32 %s39, 1
        %s653 = scalar_lea.sflag [#allocation10], %s652
        %s654 = sand.u32 %s267, 1
        %s655 = scalar_lea.vmem [#allocation11], %s654
        // Predicated region
        $region89: #{tpu_custom_call.1} parent=71 // pred_check
          %p656 = pneg %p280
        $region90: #{tpu_custom_call.1} parent=71 // pred_check_branch
          %658 = sbr.rel (%p656) target = $region92
        $region91: #{tpu_custom_call.1} parent=71 // pred_region
          %659 = dma.done %s653, 16
        $region92: #{tpu_custom_call.1} parent=71 // pred_fallthru
          _
        %s660 = sand.u32 %s39, 1
        %s661 = scalar_lea.sflag [#allocation13], %s660
        %s662 = sand.u32 %s293, 1
        %s663 = smul.addr %s662, 256
        %s664 = scalar_lea.vmem [#allocation12], %s663
        // Predicated region
        $region93: #{tpu_custom_call.1} parent=71 // pred_check
          %p665 = pneg %p306
        $region94: #{tpu_custom_call.1} parent=71 // pred_check_branch
          %667 = sbr.rel (%p665) target = $region96
        $region95: #{tpu_custom_call.1} parent=71 // pred_region
          %668 = dma.done %s661, 4096
        $region96: #{tpu_custom_call.1} parent=71 // pred_fallthru
          _
        %s669 = sand.u32 %s39, 1
        %s670 = scalar_lea.sflag [#allocation13], %s669
        %s671 = sand.u32 %s345, 1
        %s672 = smul.addr %s671, 256
        %s673 = scalar_lea.vmem [#allocation14], %s672
        // Predicated region
        $region97: #{tpu_custom_call.1} parent=71 // pred_check
          %p674 = pneg %p358
        $region98: #{tpu_custom_call.1} parent=71 // pred_check_branch
          %676 = sbr.rel (%p674) target = $region100
        $region99: #{tpu_custom_call.1} parent=71 // pred_region
          %677 = dma.done %s670, 4096
        $region100: #{tpu_custom_call.1} parent=71 // pred_fallthru
          _
        %s678 = sand.u32 %s59, 1
        %s679 = scalar_lea.sflag [#allocation4], %s678
        %s680 = sand.u32 %s59, 1
        %s681 = smul.addr %s680, 16
        %s682 = scalar_lea.vmem [#allocation3], %s681
        %p683 = pneg %p72
        %p684 = pneg %p69
        %s685 = sand.u32 %s39, 1
        %s686 = scalar_lea.sflag [#allocation7], %s685
        %s687 = sand.u32 %s85, 1
        %s688 = smul.addr %s687, 16
        %s689 = scalar_lea.vmem [#allocation6], %s688
        %p690 = pneg %p98
        %p691 = pneg %p95
        %p692 = scmp.lt.s32.totalorder %s44, 1
        %s693 = scalar_select %p692, %s44, 1
        %s694 = scalar_lea.vmem %s2, %s693
        %p695 = pneg %p124
        %p696 = pneg %p121
        %p697 = scmp.lt.s32.totalorder %s44, 1
        %s698 = scalar_select %p697, %s44, 1
        %s699 = scalar_lea.vmem %s3, %s698
        %p700 = pneg %p150
        %p701 = pneg %p147
        %s702 = sand.u32 %s39, 1
        %s703 = scalar_lea.sflag [#allocation7], %s702
        %s704 = sand.u32 %s163, 1
        %s705 = smul.addr %s704, 192
        %s706 = scalar_lea.vmem [#allocation8], %s705
        %p707 = pneg %p176
        %p708 = pneg %p173
        %s709 = sand.u32 %s39, 1
        %s710 = scalar_lea.sflag [#allocation10], %s709
        %s711 = sand.u32 %s189, 1
        %s712 = smul.addr %s711, 64
        %s713 = scalar_lea.vmem [#allocation9], %s712
        %p714 = pneg %p202
        %p715 = pneg %p199
        %p716 = scmp.lt.s32.totalorder %s44, 1
        %s717 = scalar_select %p716, %s44, 1
        %s718 = scalar_lea.vmem %s6, %s717
        %p719 = pneg %p228
        %p720 = pneg %p225
        %p721 = scmp.lt.s32.totalorder %s44, 1
        %s722 = scalar_select %p721, %s44, 1
        %s723 = scalar_lea.vmem %s7, %s722
        %p724 = pneg %p254
        %p725 = pneg %p251
        %s726 = sand.u32 %s39, 1
        %s727 = scalar_lea.sflag [#allocation10], %s726
        %s728 = sand.u32 %s267, 1
        %s729 = scalar_lea.vmem [#allocation11], %s728
        %p730 = pneg %p280
        %p731 = pneg %p277
        %s732 = sand.u32 %s39, 1
        %s733 = scalar_lea.sflag [#allocation13], %s732
        %s734 = sand.u32 %s293, 1
        %s735 = smul.addr %s734, 256
        %s736 = scalar_lea.vmem [#allocation12], %s735
        %p737 = pneg %p306
        %p738 = pneg %p303
        %p739 = scmp.lt.s32.totalorder %s44, 1
        %s740 = scalar_select %p739, %s44, 1
        %s741 = smul.addr %s740, 4
        %s742 = scalar_lea.vmem %s10, %s741
        %p743 = pneg %p332
        %p744 = pneg %p329
        %s745 = sand.u32 %s39, 1
        %s746 = scalar_lea.sflag [#allocation13], %s745
        %s747 = sand.u32 %s345, 1
        %s748 = smul.addr %s747, 256
        %s749 = scalar_lea.vmem [#allocation14], %s748
        %p750 = pneg %p358
        %p751 = pneg %p355
        %p752 = scmp.lt.s32.totalorder %s44, 1
        %s753 = scalar_select %p752, %s44, 1
        %s754 = scalar_lea.vmem %s12, %s753
        %p755 = pneg %p384
        %p756 = pneg %p381
        %p757 = pneg %p410
        %p758 = pneg %p407
        %s759 = sand.u32 %s397, 1
        %s760 = scalar_lea.sflag [#allocation5], %s759
        %s761 = sand.u32 %s397, 1
        %s762 = smul.addr %s761, 16
        %s763 = scalar_lea.vmem [#allocation15], %s762
        %s764 = smul.u32 2, %s43
        %s765 = smul.u32 2, %s43
        %p766 = scmp.lt.s32.totalorder %s44, 1
        %s767 = scalar_select %p766, %s44, 1
        %s768 = scalar_lea.vmem %s2, %s767
        %p769 = scmp.lt.s32.totalorder %s44, 1
        %s770 = scalar_select %p769, %s44, 1
        %s771 = scalar_lea.vmem %s3, %s770
        %p772 = scmp.lt.s32.totalorder %s44, 1
        %s773 = scalar_select %p772, %s44, 1
        %s774 = scalar_lea.vmem %s6, %s773
        %p775 = scmp.lt.s32.totalorder %s44, 1
        %s776 = scalar_select %p775, %s44, 1
        %s777 = scalar_lea.vmem %s7, %s776
        %p778 = scmp.lt.s32.totalorder %s44, 1
        %s779 = scalar_select %p778, %s44, 1
        %s780 = smul.addr %s779, 4
        %s781 = scalar_lea.vmem %s10, %s780
        %p782 = scmp.lt.s32.totalorder %s44, 1
        %s783 = scalar_select %p782, %s44, 1
        %s784 = scalar_lea.vmem %s12, %s783
        %s785 = smul.u32 2, %s43
        %p787 = scmp.eq.s32.totalorder %s44, 0
        // Predicated region
        $region101: #{tpu_custom_call.1} parent=71 // pred_check
          %p788 = pneg %p787
        $region102: #{tpu_custom_call.1} parent=71 // pred_check_branch
          %790 = sbr.rel (%p788) target = $region104
        $region103: #{tpu_custom_call.1} parent=71 // pred_region
          %v791 = vld [vmem:[%s620] sm:$0xff]
          %v792 = vld [vmem:[%s620 + $0x8] sm:$0xff]
          %793 = vst [vmem:[#allocation2] sm:$0xff] %v791
          %794 = vst [vmem:[#allocation2 + $0x8] sm:$0xff] %v792
        $region104: #{tpu_custom_call.1} parent=71 // pred_fallthru
          _
        %v795 = vld [vmem:[#allocation2] sm:$0xff]
        %v796 = vld [vmem:[#allocation2 + $0x8] sm:$0xff]
        %v797 = vld [vmem:[%s629] sm:$0xff]
        %v798 = vld [vmem:[%s629 + $0x8] sm:$0xff]
        %v799 = vadd.f32 %v795, %v797
        %v800 = vadd.f32 %v796, %v798
        %v801 = vld [vmem:[%s768] sm:$0x1]
        %v802 = vld [vmem:[%s771] sm:$0x1]
        %803 = vadd.xlane.f32.xlu0 %v799
        %v804 = vpop.xlane.xlu0 %803
        %805 = vadd.xlane.f32.xlu0 %v800
        %v806 = vpop.xlane.xlu0 %805
        %v807 = vrcp.pop 128.0
        %v808 = vmul.f32 %v804, %v807
        %v809 = vmul.f32 %v806, %v807
        %v810 = vsub.f32 %v799, %v808
        %v811 = vsub.f32 %v800, %v809
        %v812 = vmul.f32 %v810, %v810
        %v813 = vmul.f32 %v811, %v811
        %814 = vadd.xlane.f32.xlu0 %v812
        %v815 = vpop.xlane.xlu0 %814
        %816 = vadd.xlane.f32.xlu0 %v813
        %v817 = vpop.xlane.xlu0 %816
        %v818 = vmul.f32 %v815, %v807
        %v819 = vmul.f32 %v817, %v807
        %v820 = vadd.f32 %v818, 1e-05
        %v821 = vadd.f32 %v819, 1e-05
        %v822 = vrsqrt.pop %v820
        %v823 = vrsqrt.pop %v821
        %v824 = vmul.f32 %v810, %v822
        %v825 = vmul.f32 %v811, %v823
        %v827 = vlaneseq
        %v828 = vshrl.u32 %v827, 7
        %v829 = vsub.s32 0, %v828
        %v830 = vrot.slane %v801, %v829
        %v832 = vmul.f32 %v824, %v830
        %v833 = vmul.f32 %v825, %v830
        %v835 = vlaneseq
        %v836 = vshrl.u32 %v835, 7
        %v837 = vsub.s32 0, %v836
        %v838 = vrot.slane %v802, %v837
        %v840 = vadd.f32 %v832, %v838
        %v841 = vadd.f32 %v833, %v838
        %v842 = vpack.c.bf16 %v841, %v840
        %v843 = vld [vmem:[%s638] sm:$0xff]
        %v844 = vld [vmem:[%s638 + $0x8] sm:$0xf]
        %v845 = vld [vmem:[%s638 + $0xc] sm:$0xff]
        %v846 = vld [vmem:[%s638 + $0x14] sm:$0xf]
        %v847 = vld [vmem:[%s638 + $0x18] sm:$0xff]
        %v848 = vld [vmem:[%s638 + $0x20] sm:$0xf]
        %v849 = vld [vmem:[%s638 + $0x24] sm:$0xff]
        %v850 = vld [vmem:[%s638 + $0x2c] sm:$0xf]
        %v851 = vld [vmem:[%s638 + $0x30] sm:$0xff]
        %v852 = vld [vmem:[%s638 + $0x38] sm:$0xf]
        %v853 = vld [vmem:[%s638 + $0x3c] sm:$0xff]
        %v854 = vld [vmem:[%s638 + $0x44] sm:$0xf]
        %v855 = vld [vmem:[%s638 + $0x48] sm:$0xff]
        %v856 = vld [vmem:[%s638 + $0x50] sm:$0xf]
        %v857 = vld [vmem:[%s638 + $0x54] sm:$0xff]
        %v858 = vld [vmem:[%s638 + $0x5c] sm:$0xf]
        %v859 = vld [vmem:[%s638 + $0x60] sm:$0xff]
        %v860 = vld [vmem:[%s638 + $0x68] sm:$0xf]
        %v861 = vld [vmem:[%s638 + $0x6c] sm:$0xff]
        %v862 = vld [vmem:[%s638 + $0x74] sm:$0xf]
        %v863 = vld [vmem:[%s638 + $0x78] sm:$0xff]
        %v864 = vld [vmem:[%s638 + $0x80] sm:$0xf]
        %v865 = vld [vmem:[%s638 + $0x84] sm:$0xff]
        %v866 = vld [vmem:[%s638 + $0x8c] sm:$0xf]
        %v867 = vld [vmem:[%s638 + $0x90] sm:$0xff]
        %v868 = vld [vmem:[%s638 + $0x98] sm:$0xf]
        %v869 = vld [vmem:[%s638 + $0x9c] sm:$0xff]
        %v870 = vld [vmem:[%s638 + $0xa4] sm:$0xf]
        %v871 = vld [vmem:[%s638 + $0xa8] sm:$0xff]
        %v872 = vld [vmem:[%s638 + $0xb0] sm:$0xf]
        %v873 = vld [vmem:[%s638 + $0xb4] sm:$0xff]
        %v874 = vld [vmem:[%s638 + $0xbc] sm:$0xf]
        %v907 = vunpack.c.l.b16 %v843
        %v908 = vunpack.c.h.b16 %v843
        %v909 = vunpack.c.l.b16 %v844
        %v910 = vunpack.c.l.b16 %v845
        %v911 = vunpack.c.h.b16 %v845
        %v912 = vunpack.c.l.b16 %v846
        %v913 = vunpack.c.l.b16 %v847
        %v914 = vunpack.c.h.b16 %v847
        %v915 = vunpack.c.l.b16 %v848
        %v916 = vunpack.c.l.b16 %v849
        %v917 = vunpack.c.h.b16 %v849
        %v918 = vunpack.c.l.b16 %v850
        %v919 = vunpack.c.l.b16 %v851
        %v920 = vunpack.c.h.b16 %v851
        %v921 = vunpack.c.l.b16 %v852
        %v922 = vunpack.c.l.b16 %v853
        %v923 = vunpack.c.h.b16 %v853
        %v924 = vunpack.c.l.b16 %v854
        %v925 = vunpack.c.l.b16 %v855
        %v926 = vunpack.c.h.b16 %v855
        %v927 = vunpack.c.l.b16 %v856
        %v928 = vunpack.c.l.b16 %v857
        %v929 = vunpack.c.h.b16 %v857
        %v930 = vunpack.c.l.b16 %v858
        %v931 = vunpack.c.l.b16 %v859
        %v932 = vunpack.c.h.b16 %v859
        %v933 = vunpack.c.l.b16 %v860
        %v934 = vunpack.c.l.b16 %v861
        %v935 = vunpack.c.h.b16 %v861
        %v936 = vunpack.c.l.b16 %v862
        %v937 = vunpack.c.l.b16 %v863
        %v938 = vunpack.c.h.b16 %v863
        %v939 = vunpack.c.l.b16 %v864
        %v940 = vunpack.c.l.b16 %v865
        %v941 = vunpack.c.h.b16 %v865
        %v942 = vunpack.c.l.b16 %v866
        %v943 = vunpack.c.l.b16 %v867
        %v944 = vunpack.c.h.b16 %v867
        %v945 = vunpack.c.l.b16 %v868
        %v946 = vunpack.c.l.b16 %v869
        %v947 = vunpack.c.h.b16 %v869
        %v948 = vunpack.c.l.b16 %v870
        %v949 = vunpack.c.l.b16 %v871
        %v950 = vunpack.c.h.b16 %v871
        %v951 = vunpack.c.l.b16 %v872
        %v952 = vunpack.c.l.b16 %v873
        %v953 = vunpack.c.h.b16 %v873
        %v954 = vunpack.c.l.b16 %v874
        %v955 = vpack.c.b16 %v910, %v907
        %v956 = vpack.c.b16 %v911, %v908
        %v957 = vpack.c.b16 %v912, %v909
        %v958 = vpack.c.b16 %v916, %v913
        %v959 = vpack.c.b16 %v917, %v914
        %v960 = vpack.c.b16 %v918, %v915
        %v961 = vpack.c.b16 %v922, %v919
        %v962 = vpack.c.b16 %v923, %v920
        %v963 = vpack.c.b16 %v924, %v921
        %v964 = vpack.c.b16 %v928, %v925
        %v965 = vpack.c.b16 %v929, %v926
        %v966 = vpack.c.b16 %v930, %v927
        %v967 = vpack.c.b16 %v934, %v931
        %v968 = vpack.c.b16 %v935, %v932
        %v969 = vpack.c.b16 %v936, %v933
        %v970 = vpack.c.b16 %v940, %v937
        %v971 = vpack.c.b16 %v941, %v938
        %v972 = vpack.c.b16 %v942, %v939
        %v973 = vpack.c.b16 %v946, %v943
        %v974 = vpack.c.b16 %v947, %v944
        %v975 = vpack.c.b16 %v948, %v945
        %v976 = vpack.c.b16 %v952, %v949
        %v977 = vpack.c.b16 %v953, %v950
        %v978 = vpack.c.b16 %v954, %v951
        %1003 = vmatprep.subr.bf16.mxu0 %v977
        %1004 = vmatpush1.bf16.msra.mxu0 %v976
        %1005 = vmatprep.subr.bf16.mxu0 %v974
        %1006 = vmatpush1.bf16.msra.mxu0 %v973
        %1007 = vmatprep.subr.bf16.mxu0 %v971
        %1008 = vmatpush1.bf16.msra.mxu0 %v970
        %1009 = vmatprep.subr.bf16.mxu0 %v968
        %1010 = vmatpush1.bf16.msra.mxu0 %v967
        %1011 = vmatprep.subr.bf16.mxu0 %v965
        %1012 = vmatpush1.bf16.msra.mxu0 %v964
        %1013 = vmatprep.subr.bf16.mxu0 %v962
        %1014 = vmatpush1.bf16.msra.mxu0 %v961
        %1015 = vmatprep.subr.bf16.mxu0 %v959
        %1016 = vmatpush1.bf16.msra.mxu0 %v958
        %1017 = vmatprep.subr.bf16.mxu0 %v956
        %1018 = vmatpush1.bf16.msra.mxu0 %v955
        %1019 = vmatprep.subr.bf16.mxu0 0
        %1020 = vmatpush2.bf16.msra.mxu0 0
        %1021 = vmatprep.subr.bf16.mxu0 0
        %1022 = vmatpush2.bf16.msra.mxu0 0
        %1023 = vmatprep.subr.bf16.mxu0 0
        %1024 = vmatpush2.bf16.msra.mxu0 0
        %1025 = vmatprep.subr.bf16.mxu0 0
        %1026 = vmatpush2.bf16.msra.mxu0 0
        %1027 = vmatprep.subr.bf16.mxu0 0
        %1028 = vmatpush2.bf16.msra.mxu0 0
        %1029 = vmatprep.subr.bf16.mxu0 0
        %1030 = vmatpush2.bf16.msra.mxu0 0
        %1031 = vmatprep.subr.bf16.mxu0 0
        %1032 = vmatpush2.bf16.msra.mxu0 0
        %1033 = vmatprep.subr.bf16.mxu0 0
        %1034 = vmatpush2.bf16.msra.mxu0 0
        %1035 = vmatprep.mubr.bf16.mxu0 0
        %1036 = vmatmul.mubr.bf16.gmra.mxu0 %v842
        %v1037 = vpop.f32.mrf.mxu0
        %v1038 = vadd.f32 0.0, %v1037
        %v1039 = vpop.f32.mrf.mxu0
        %v1040 = vadd.f32 0.0, %v1039
        %v1041 = vpop.f32.mrf.mxu0
        %v1042 = vadd.f32 0.0, %v1041
        %v1043 = vpop.f32.mrf.mxu0
        %v1044 = vadd.f32 0.0, %v1043
        %1045 = vdwg.mxu0
        %1046 = vmatprep.subr.bf16.mxu0 0
        %1047 = vmatpush1.bf16.msra.mxu0 %v978
        %1048 = vmatprep.subr.bf16.mxu0 0
        %1049 = vmatpush1.bf16.msra.mxu0 %v975
        %1050 = vmatprep.subr.bf16.mxu0 0
        %1051 = vmatpush1.bf16.msra.mxu0 %v972
        %1052 = vmatprep.subr.bf16.mxu0 0
        %1053 = vmatpush1.bf16.msra.mxu0 %v969
        %1054 = vmatprep.subr.bf16.mxu0 0
        %1055 = vmatpush1.bf16.msra.mxu0 %v966
        %1056 = vmatprep.subr.bf16.mxu0 0
        %1057 = vmatpush1.bf16.msra.mxu0 %v963
        %1058 = vmatprep.subr.bf16.mxu0 0
        %1059 = vmatpush1.bf16.msra.mxu0 %v960
        %1060 = vmatprep.subr.bf16.mxu0 0
        %1061 = vmatpush1.bf16.msra.mxu0 %v957
        %1062 = vmatprep.subr.bf16.mxu0 0
        %1063 = vmatpush2.bf16.msra.mxu0 0
        %1064 = vmatprep.subr.bf16.mxu0 0
        %1065 = vmatpush2.bf16.msra.mxu0 0
        %1066 = vmatprep.subr.bf16.mxu0 0
        %1067 = vmatpush2.bf16.msra.mxu0 0
        %1068 = vmatprep.subr.bf16.mxu0 0
        %1069 = vmatpush2.bf16.msra.mxu0 0
        %1070 = vmatprep.subr.bf16.mxu0 0
        %1071 = vmatpush2.bf16.msra.mxu0 0
        %1072 = vmatprep.subr.bf16.mxu0 0
        %1073 = vmatpush2.bf16.msra.mxu0 0
        %1074 = vmatprep.subr.bf16.mxu0 0
        %1075 = vmatpush2.bf16.msra.mxu0 0
        %1076 = vmatprep.subr.bf16.mxu0 0
        %1077 = vmatpush2.bf16.msra.mxu0 0
        %1078 = vmatprep.mubr.bf16.mxu0 0
        %1079 = vmatmul.mubr.bf16.gmra.mxu0 %v842
        %v1080 = vpop.f32.mrf.mxu0
        %v1081 = vadd.f32 0.0, %v1080
        %v1082 = vpop.f32.mrf.mxu0
        %v1083 = vpop.f32.mrf.mxu0
        %v1084 = vadd.f32 0.0, %v1083
        %v1085 = vpop.f32.mrf.mxu0
        %1086 = vdwg.mxu0
        %v1087 = vmul.f32 %v1038, 0.17677669
        %v1088 = vmul.f32 %v1042, 0.17677669
        %1091 = vrot.lane.b32.xlu0 %v1087, 96
        %v1092 = vpop.permute.xlu0 %1091
        %1093 = vrot.lane.b32.xlu0 %v1088, 96
        %v1094 = vpop.permute.xlu0 %1093
        %1097 = vrot.lane.b32.xlu0 %v1087, 64
        %v1098 = vpop.permute.xlu0 %1097
        %1099 = vrot.lane.b32.xlu0 %v1088, 64
        %v1100 = vpop.permute.xlu0 %1099
        %1103 = vrot.lane.b32.xlu0 %v1087, 32
        %v1104 = vpop.permute.xlu0 %1103
        %1105 = vrot.lane.b32.xlu0 %v1088, 32
        %v1106 = vpop.permute.xlu0 %1105
        %v1109 = vcombine.low %v1087, %v1098
        %v1110 = vcombine.high %v1087, %v1098
        %v1112 = vunpack.c.l.s4 1983009808
        %v1113 = vunpack.c.0.s8 %v1112
        %v1114 = vlaneseq
        %v1115 = vshrl.u32 %v1114, 7
        %v1116 = vsub.s32 %v1113, %v1115
        %v1117 = vrot.slane %v1109, %v1116
        %v1119 = vunpack.c.l.s4 1983009808
        %v1120 = vunpack.c.0.s8 %v1119
        %v1121 = vlaneseq
        %v1122 = vshrl.u32 %v1121, 7
        %v1123 = vsub.s32 %v1120, %v1122
        %v1124 = vrot.slane %v1110, %v1123
        %v1125 = vcombine.low %v1092, %v1104
        %v1126 = vcombine.high %v1092, %v1104
        %v1128 = vunpack.c.l.s4 1983009808
        %v1129 = vunpack.c.0.s8 %v1128
        %v1130 = vlaneseq
        %v1131 = vshrl.u32 %v1130, 7
        %v1132 = vsub.s32 %v1129, %v1131
        %v1133 = vrot.slane %v1125, %v1132
        %v1135 = vunpack.c.l.s4 1983009808
        %v1136 = vunpack.c.0.s8 %v1135
        %v1137 = vlaneseq
        %v1138 = vshrl.u32 %v1137, 7
        %v1139 = vsub.s32 %v1136, %v1138
        %v1140 = vrot.slane %v1126, %v1139
        %v1141 = vcombine.low %v1117, %v1133
        %v1142 = vcombine.high %v1117, %v1133
        %v1144 = vunpack.c.l.s4 1934713408
        %v1145 = vunpack.c.0.s8 %v1144
        %v1146 = vlaneseq
        %v1147 = vshrl.u32 %v1146, 7
        %v1148 = vsub.s32 %v1145, %v1147
        %v1149 = vrot.slane %v1141, %v1148
        %v1151 = vunpack.c.l.s4 1934713408
        %v1152 = vunpack.c.0.s8 %v1151
        %v1153 = vlaneseq
        %v1154 = vshrl.u32 %v1153, 7
        %v1155 = vsub.s32 %v1152, %v1154
        %v1156 = vrot.slane %v1142, %v1155
        %v1157 = vcombine.low %v1124, %v1140
        %v1158 = vcombine.high %v1124, %v1140
        %v1160 = vunpack.c.l.s4 1934713408
        %v1161 = vunpack.c.0.s8 %v1160
        %v1162 = vlaneseq
        %v1163 = vshrl.u32 %v1162, 7
        %v1164 = vsub.s32 %v1161, %v1163
        %v1165 = vrot.slane %v1157, %v1164
        %v1167 = vunpack.c.l.s4 1934713408
        %v1168 = vunpack.c.0.s8 %v1167
        %v1169 = vlaneseq
        %v1170 = vshrl.u32 %v1169, 7
        %v1171 = vsub.s32 %v1168, %v1170
        %v1172 = vrot.slane %v1158, %v1171
        %v1173 = vcombine.high %v1149, 0.0
        %v1174 = vcombine.high %v1156, 0.0
        %v1175 = vcombine.high %v1165, 0.0
        %v1176 = vcombine.high %v1172, 0.0
        %v1177 = vcombine.low %v1088, %v1100
        %v1178 = vcombine.high %v1088, %v1100
        %v1180 = vunpack.c.l.s4 1983009808
        %v1181 = vunpack.c.0.s8 %v1180
        %v1182 = vlaneseq
        %v1183 = vshrl.u32 %v1182, 7
        %v1184 = vsub.s32 %v1181, %v1183
        %v1185 = vrot.slane %v1177, %v1184
        %v1187 = vunpack.c.l.s4 1983009808
        %v1188 = vunpack.c.0.s8 %v1187
        %v1189 = vlaneseq
        %v1190 = vshrl.u32 %v1189, 7
        %v1191 = vsub.s32 %v1188, %v1190
        %v1192 = vrot.slane %v1178, %v1191
        %v1193 = vcombine.low %v1094, %v1106
        %v1194 = vcombine.high %v1094, %v1106
        %v1196 = vunpack.c.l.s4 1983009808
        %v1197 = vunpack.c.0.s8 %v1196
        %v1198 = vlaneseq
        %v1199 = vshrl.u32 %v1198, 7
        %v1200 = vsub.s32 %v1197, %v1199
        %v1201 = vrot.slane %v1193, %v1200
        %v1203 = vunpack.c.l.s4 1983009808
        %v1204 = vunpack.c.0.s8 %v1203
        %v1205 = vlaneseq
        %v1206 = vshrl.u32 %v1205, 7
        %v1207 = vsub.s32 %v1204, %v1206
        %v1208 = vrot.slane %v1194, %v1207
        %v1209 = vcombine.low %v1185, %v1201
        %v1210 = vcombine.high %v1185, %v1201
        %v1212 = vunpack.c.l.s4 1934713408
        %v1213 = vunpack.c.0.s8 %v1212
        %v1214 = vlaneseq
        %v1215 = vshrl.u32 %v1214, 7
        %v1216 = vsub.s32 %v1213, %v1215
        %v1217 = vrot.slane %v1209, %v1216
        %v1219 = vunpack.c.l.s4 1934713408
        %v1220 = vunpack.c.0.s8 %v1219
        %v1221 = vlaneseq
        %v1222 = vshrl.u32 %v1221, 7
        %v1223 = vsub.s32 %v1220, %v1222
        %v1224 = vrot.slane %v1210, %v1223
        %v1225 = vcombine.low %v1192, %v1208
        %v1226 = vcombine.high %v1192, %v1208
        %v1228 = vunpack.c.l.s4 1934713408
        %v1229 = vunpack.c.0.s8 %v1228
        %v1230 = vlaneseq
        %v1231 = vshrl.u32 %v1230, 7
        %v1232 = vsub.s32 %v1229, %v1231
        %v1233 = vrot.slane %v1225, %v1232
        %v1235 = vunpack.c.l.s4 1934713408
        %v1236 = vunpack.c.0.s8 %v1235
        %v1237 = vlaneseq
        %v1238 = vshrl.u32 %v1237, 7
        %v1239 = vsub.s32 %v1236, %v1238
        %v1240 = vrot.slane %v1226, %v1239
        %v1241 = vcombine.high %v1217, 0.0
        %v1242 = vcombine.high %v1224, 0.0
        %v1243 = vcombine.high %v1233, 0.0
        %v1244 = vcombine.high %v1240, 0.0
        %v1245 = vcombine.low %v1149, %v1156
        %v1247 = vunpack.c.l.s4 1983009808
        %v1248 = vunpack.c.0.s8 %v1247
        %v1249 = vlaneseq
        %v1250 = vshrl.u32 %v1249, 7
        %v1251 = vsub.s32 %v1248, %v1250
        %v1252 = vrot.slane %v1245, %v1251
        %v1253 = vcombine.low %v1173, %v1174
        %v1255 = vunpack.c.l.s4 1983009808
        %v1256 = vunpack.c.0.s8 %v1255
        %v1257 = vlaneseq
        %v1258 = vshrl.u32 %v1257, 7
        %v1259 = vsub.s32 %v1256, %v1258
        %v1260 = vrot.slane %v1253, %v1259
        %v1261 = vcombine.low %v1165, %v1172
        %v1263 = vunpack.c.l.s4 1983009808
        %v1264 = vunpack.c.0.s8 %v1263
        %v1265 = vlaneseq
        %v1266 = vshrl.u32 %v1265, 7
        %v1267 = vsub.s32 %v1264, %v1266
        %v1268 = vrot.slane %v1261, %v1267
        %v1269 = vcombine.low %v1175, %v1176
        %v1271 = vunpack.c.l.s4 1983009808
        %v1272 = vunpack.c.0.s8 %v1271
        %v1273 = vlaneseq
        %v1274 = vshrl.u32 %v1273, 7
        %v1275 = vsub.s32 %v1272, %v1274
        %v1276 = vrot.slane %v1269, %v1275
        %v1277 = vcombine.low %v1252, %v1260
        %v1278 = vcombine.high %v1252, %v1260
        %v1280 = vunpack.c.l.s4 1934713408
        %v1281 = vunpack.c.0.s8 %v1280
        %v1282 = vlaneseq
        %v1283 = vshrl.u32 %v1282, 7
        %v1284 = vsub.s32 %v1281, %v1283
        %v1285 = vrot.slane %v1277, %v1284
        %v1287 = vunpack.c.l.s4 1934713408
        %v1288 = vunpack.c.0.s8 %v1287
        %v1289 = vlaneseq
        %v1290 = vshrl.u32 %v1289, 7
        %v1291 = vsub.s32 %v1288, %v1290
        %v1292 = vrot.slane %v1278, %v1291
        %v1293 = vcombine.low %v1268, %v1276
        %v1294 = vcombine.high %v1268, %v1276
        %v1296 = vunpack.c.l.s4 1934713408
        %v1297 = vunpack.c.0.s8 %v1296
        %v1298 = vlaneseq
        %v1299 = vshrl.u32 %v1298, 7
        %v1300 = vsub.s32 %v1297, %v1299
        %v1301 = vrot.slane %v1293, %v1300
        %v1303 = vunpack.c.l.s4 1934713408
        %v1304 = vunpack.c.0.s8 %v1303
        %v1305 = vlaneseq
        %v1306 = vshrl.u32 %v1305, 7
        %v1307 = vsub.s32 %v1304, %v1306
        %v1308 = vrot.slane %v1294, %v1307
        %v1309 = vcombine.low %v1285, %v1301
        %v1310 = vcombine.high %v1285, %v1301
        %v1311 = vcombine.low %v1292, %v1308
        %v1312 = vcombine.high %v1292, %v1308
        %v1313 = vcombine.low %v1217, %v1224
        %v1315 = vunpack.c.l.s4 1983009808
        %v1316 = vunpack.c.0.s8 %v1315
        %v1317 = vlaneseq
        %v1318 = vshrl.u32 %v1317, 7
        %v1319 = vsub.s32 %v1316, %v1318
        %v1320 = vrot.slane %v1313, %v1319
        %v1321 = vcombine.low %v1241, %v1242
        %v1323 = vunpack.c.l.s4 1983009808
        %v1324 = vunpack.c.0.s8 %v1323
        %v1325 = vlaneseq
        %v1326 = vshrl.u32 %v1325, 7
        %v1327 = vsub.s32 %v1324, %v1326
        %v1328 = vrot.slane %v1321, %v1327
        %v1329 = vcombine.low %v1233, %v1240
        %v1331 = vunpack.c.l.s4 1983009808
        %v1332 = vunpack.c.0.s8 %v1331
        %v1333 = vlaneseq
        %v1334 = vshrl.u32 %v1333, 7
        %v1335 = vsub.s32 %v1332, %v1334
        %v1336 = vrot.slane %v1329, %v1335
        %v1337 = vcombine.low %v1243, %v1244
        %v1339 = vunpack.c.l.s4 1983009808
        %v1340 = vunpack.c.0.s8 %v1339
        %v1341 = vlaneseq
        %v1342 = vshrl.u32 %v1341, 7
        %v1343 = vsub.s32 %v1340, %v1342
        %v1344 = vrot.slane %v1337, %v1343
        %v1345 = vcombine.low %v1320, %v1328
        %v1346 = vcombine.high %v1320, %v1328
        %v1348 = vunpack.c.l.s4 1934713408
        %v1349 = vunpack.c.0.s8 %v1348
        %v1350 = vlaneseq
        %v1351 = vshrl.u32 %v1350, 7
        %v1352 = vsub.s32 %v1349, %v1351
        %v1353 = vrot.slane %v1345, %v1352
        %v1355 = vunpack.c.l.s4 1934713408
        %v1356 = vunpack.c.0.s8 %v1355
        %v1357 = vlaneseq
        %v1358 = vshrl.u32 %v1357, 7
        %v1359 = vsub.s32 %v1356, %v1358
        %v1360 = vrot.slane %v1346, %v1359
        %v1361 = vcombine.low %v1336, %v1344
        %v1362 = vcombine.high %v1336, %v1344
        %v1364 = vunpack.c.l.s4 1934713408
        %v1365 = vunpack.c.0.s8 %v1364
        %v1366 = vlaneseq
        %v1367 = vshrl.u32 %v1366, 7
        %v1368 = vsub.s32 %v1365, %v1367
        %v1369 = vrot.slane %v1361, %v1368
        %v1371 = vunpack.c.l.s4 1934713408
        %v1372 = vunpack.c.0.s8 %v1371
        %v1373 = vlaneseq
        %v1374 = vshrl.u32 %v1373, 7
        %v1375 = vsub.s32 %v1372, %v1374
        %v1376 = vrot.slane %v1362, %v1375
        %v1377 = vcombine.low %v1353, %v1369
        %v1378 = vcombine.high %v1353, %v1369
        %v1379 = vcombine.low %v1360, %v1376
        %v1380 = vcombine.high %v1360, %v1376
        %v1381 = vpack.c.bf16 %v1377, %v1309
        %v1382 = vpack.c.bf16 %v1378, %v1310
        %v1383 = vpack.c.bf16 %v1379, %v1311
        %v1384 = vpack.c.bf16 %v1380, %v1312
        %1387 = vrot.lane.b32.xlu0 %v1040, 96
        %v1388 = vpop.permute.xlu0 %1387
        %1389 = vrot.lane.b32.xlu0 %v1044, 96
        %v1390 = vpop.permute.xlu0 %1389
        %1393 = vrot.lane.b32.xlu0 %v1040, 64
        %v1394 = vpop.permute.xlu0 %1393
        %1395 = vrot.lane.b32.xlu0 %v1044, 64
        %v1396 = vpop.permute.xlu0 %1395
        %1399 = vrot.lane.b32.xlu0 %v1040, 32
        %v1400 = vpop.permute.xlu0 %1399
        %1401 = vrot.lane.b32.xlu0 %v1044, 32
        %v1402 = vpop.permute.xlu0 %1401
        %v1405 = vcombine.low %v1040, %v1394
        %v1406 = vcombine.high %v1040, %v1394
        %v1408 = vunpack.c.l.s4 1983009808
        %v1409 = vunpack.c.0.s8 %v1408
        %v1410 = vlaneseq
        %v1411 = vshrl.u32 %v1410, 7
        %v1412 = vsub.s32 %v1409, %v1411
        %v1413 = vrot.slane %v1405, %v1412
        %v1415 = vunpack.c.l.s4 1983009808
        %v1416 = vunpack.c.0.s8 %v1415
        %v1417 = vlaneseq
        %v1418 = vshrl.u32 %v1417, 7
        %v1419 = vsub.s32 %v1416, %v1418
        %v1420 = vrot.slane %v1406, %v1419
        %v1421 = vcombine.low %v1388, %v1400
        %v1422 = vcombine.high %v1388, %v1400
        %v1424 = vunpack.c.l.s4 1983009808
        %v1425 = vunpack.c.0.s8 %v1424
        %v1426 = vlaneseq
        %v1427 = vshrl.u32 %v1426, 7
        %v1428 = vsub.s32 %v1425, %v1427
        %v1429 = vrot.slane %v1421, %v1428
        %v1431 = vunpack.c.l.s4 1983009808
        %v1432 = vunpack.c.0.s8 %v1431
        %v1433 = vlaneseq
        %v1434 = vshrl.u32 %v1433, 7
        %v1435 = vsub.s32 %v1432, %v1434
        %v1436 = vrot.slane %v1422, %v1435
        %v1437 = vcombine.low %v1413, %v1429
        %v1438 = vcombine.high %v1413, %v1429
        %v1440 = vunpack.c.l.s4 1934713408
        %v1441 = vunpack.c.0.s8 %v1440
        %v1442 = vlaneseq
        %v1443 = vshrl.u32 %v1442, 7
        %v1444 = vsub.s32 %v1441, %v1443
        %v1445 = vrot.slane %v1437, %v1444
        %v1447 = vunpack.c.l.s4 1934713408
        %v1448 = vunpack.c.0.s8 %v1447
        %v1449 = vlaneseq
        %v1450 = vshrl.u32 %v1449, 7
        %v1451 = vsub.s32 %v1448, %v1450
        %v1452 = vrot.slane %v1438, %v1451
        %v1453 = vcombine.low %v1420, %v1436
        %v1454 = vcombine.high %v1420, %v1436
        %v1456 = vunpack.c.l.s4 1934713408
        %v1457 = vunpack.c.0.s8 %v1456
        %v1458 = vlaneseq
        %v1459 = vshrl.u32 %v1458, 7
        %v1460 = vsub.s32 %v1457, %v1459
        %v1461 = vrot.slane %v1453, %v1460
        %v1463 = vunpack.c.l.s4 1934713408
        %v1464 = vunpack.c.0.s8 %v1463
        %v1465 = vlaneseq
        %v1466 = vshrl.u32 %v1465, 7
        %v1467 = vsub.s32 %v1464, %v1466
        %v1468 = vrot.slane %v1454, %v1467
        %v1469 = vcombine.high %v1445, 0.0
        %v1470 = vcombine.high %v1452, 0.0
        %v1471 = vcombine.high %v1461, 0.0
        %v1472 = vcombine.high %v1468, 0.0
        %v1473 = vcombine.low %v1044, %v1396
        %v1474 = vcombine.high %v1044, %v1396
        %v1476 = vunpack.c.l.s4 1983009808
        %v1477 = vunpack.c.0.s8 %v1476
        %v1478 = vlaneseq
        %v1479 = vshrl.u32 %v1478, 7
        %v1480 = vsub.s32 %v1477, %v1479
        %v1481 = vrot.slane %v1473, %v1480
        %v1483 = vunpack.c.l.s4 1983009808
        %v1484 = vunpack.c.0.s8 %v1483
        %v1485 = vlaneseq
        %v1486 = vshrl.u32 %v1485, 7
        %v1487 = vsub.s32 %v1484, %v1486
        %v1488 = vrot.slane %v1474, %v1487
        %v1489 = vcombine.low %v1390, %v1402
        %v1490 = vcombine.high %v1390, %v1402
        %v1492 = vunpack.c.l.s4 1983009808
        %v1493 = vunpack.c.0.s8 %v1492
        %v1494 = vlaneseq
        %v1495 = vshrl.u32 %v1494, 7
        %v1496 = vsub.s32 %v1493, %v1495
        %v1497 = vrot.slane %v1489, %v1496
        %v1499 = vunpack.c.l.s4 1983009808
        %v1500 = vunpack.c.0.s8 %v1499
        %v1501 = vlaneseq
        %v1502 = vshrl.u32 %v1501, 7
        %v1503 = vsub.s32 %v1500, %v1502
        %v1504 = vrot.slane %v1490, %v1503
        %v1505 = vcombine.low %v1481, %v1497
        %v1506 = vcombine.high %v1481, %v1497
        %v1508 = vunpack.c.l.s4 1934713408
        %v1509 = vunpack.c.0.s8 %v1508
        %v1510 = vlaneseq
        %v1511 = vshrl.u32 %v1510, 7
        %v1512 = vsub.s32 %v1509, %v1511
        %v1513 = vrot.slane %v1505, %v1512
        %v1515 = vunpack.c.l.s4 1934713408
        %v1516 = vunpack.c.0.s8 %v1515
        %v1517 = vlaneseq
        %v1518 = vshrl.u32 %v1517, 7
        %v1519 = vsub.s32 %v1516, %v1518
        %v1520 = vrot.slane %v1506, %v1519
        %v1521 = vcombine.low %v1488, %v1504
        %v1522 = vcombine.high %v1488, %v1504
        %v1524 = vunpack.c.l.s4 1934713408
        %v1525 = vunpack.c.0.s8 %v1524
        %v1526 = vlaneseq
        %v1527 = vshrl.u32 %v1526, 7
        %v1528 = vsub.s32 %v1525, %v1527
        %v1529 = vrot.slane %v1521, %v1528
        %v1531 = vunpack.c.l.s4 1934713408
        %v1532 = vunpack.c.0.s8 %v1531
        %v1533 = vlaneseq
        %v1534 = vshrl.u32 %v1533, 7
        %v1535 = vsub.s32 %v1532, %v1534
        %v1536 = vrot.slane %v1522, %v1535
        %v1537 = vcombine.high %v1513, 0.0
        %v1538 = vcombine.high %v1520, 0.0
        %v1539 = vcombine.high %v1529, 0.0
        %v1540 = vcombine.high %v1536, 0.0
        %v1541 = vcombine.low %v1445, %v1452
        %v1543 = vunpack.c.l.s4 1983009808
        %v1544 = vunpack.c.0.s8 %v1543
        %v1545 = vlaneseq
        %v1546 = vshrl.u32 %v1545, 7
        %v1547 = vsub.s32 %v1544, %v1546
        %v1548 = vrot.slane %v1541, %v1547
        %v1549 = vcombine.low %v1469, %v1470
        %v1551 = vunpack.c.l.s4 1983009808
        %v1552 = vunpack.c.0.s8 %v1551
        %v1553 = vlaneseq
        %v1554 = vshrl.u32 %v1553, 7
        %v1555 = vsub.s32 %v1552, %v1554
        %v1556 = vrot.slane %v1549, %v1555
        %v1557 = vcombine.low %v1461, %v1468
        %v1559 = vunpack.c.l.s4 1983009808
        %v1560 = vunpack.c.0.s8 %v1559
        %v1561 = vlaneseq
        %v1562 = vshrl.u32 %v1561, 7
        %v1563 = vsub.s32 %v1560, %v1562
        %v1564 = vrot.slane %v1557, %v1563
        %v1565 = vcombine.low %v1471, %v1472
        %v1567 = vunpack.c.l.s4 1983009808
        %v1568 = vunpack.c.0.s8 %v1567
        %v1569 = vlaneseq
        %v1570 = vshrl.u32 %v1569, 7
        %v1571 = vsub.s32 %v1568, %v1570
        %v1572 = vrot.slane %v1565, %v1571
        %v1573 = vcombine.low %v1548, %v1556
        %v1574 = vcombine.high %v1548, %v1556
        %v1576 = vunpack.c.l.s4 1934713408
        %v1577 = vunpack.c.0.s8 %v1576
        %v1578 = vlaneseq
        %v1579 = vshrl.u32 %v1578, 7
        %v1580 = vsub.s32 %v1577, %v1579
        %v1581 = vrot.slane %v1573, %v1580
        %v1583 = vunpack.c.l.s4 1934713408
        %v1584 = vunpack.c.0.s8 %v1583
        %v1585 = vlaneseq
        %v1586 = vshrl.u32 %v1585, 7
        %v1587 = vsub.s32 %v1584, %v1586
        %v1588 = vrot.slane %v1574, %v1587
        %v1589 = vcombine.low %v1564, %v1572
        %v1590 = vcombine.high %v1564, %v1572
        %v1592 = vunpack.c.l.s4 1934713408
        %v1593 = vunpack.c.0.s8 %v1592
        %v1594 = vlaneseq
        %v1595 = vshrl.u32 %v1594, 7
        %v1596 = vsub.s32 %v1593, %v1595
        %v1597 = vrot.slane %v1589, %v1596
        %v1599 = vunpack.c.l.s4 1934713408
        %v1600 = vunpack.c.0.s8 %v1599
        %v1601 = vlaneseq
        %v1602 = vshrl.u32 %v1601, 7
        %v1603 = vsub.s32 %v1600, %v1602
        %v1604 = vrot.slane %v1590, %v1603
        %v1605 = vcombine.low %v1581, %v1597
        %v1606 = vcombine.high %v1581, %v1597
        %v1607 = vcombine.low %v1588, %v1604
        %v1608 = vcombine.high %v1588, %v1604
        %v1609 = vcombine.low %v1513, %v1520
        %v1611 = vunpack.c.l.s4 1983009808
        %v1612 = vunpack.c.0.s8 %v1611
        %v1613 = vlaneseq
        %v1614 = vshrl.u32 %v1613, 7
        %v1615 = vsub.s32 %v1612, %v1614
        %v1616 = vrot.slane %v1609, %v1615
        %v1617 = vcombine.low %v1537, %v1538
        %v1619 = vunpack.c.l.s4 1983009808
        %v1620 = vunpack.c.0.s8 %v1619
        %v1621 = vlaneseq
        %v1622 = vshrl.u32 %v1621, 7
        %v1623 = vsub.s32 %v1620, %v1622
        %v1624 = vrot.slane %v1617, %v1623
        %v1625 = vcombine.low %v1529, %v1536
        %v1627 = vunpack.c.l.s4 1983009808
        %v1628 = vunpack.c.0.s8 %v1627
        %v1629 = vlaneseq
        %v1630 = vshrl.u32 %v1629, 7
        %v1631 = vsub.s32 %v1628, %v1630
        %v1632 = vrot.slane %v1625, %v1631
        %v1633 = vcombine.low %v1539, %v1540
        %v1635 = vunpack.c.l.s4 1983009808
        %v1636 = vunpack.c.0.s8 %v1635
        %v1637 = vlaneseq
        %v1638 = vshrl.u32 %v1637, 7
        %v1639 = vsub.s32 %v1636, %v1638
        %v1640 = vrot.slane %v1633, %v1639
        %v1641 = vcombine.low %v1616, %v1624
        %v1642 = vcombine.high %v1616, %v1624
        %v1644 = vunpack.c.l.s4 1934713408
        %v1645 = vunpack.c.0.s8 %v1644
        %v1646 = vlaneseq
        %v1647 = vshrl.u32 %v1646, 7
        %v1648 = vsub.s32 %v1645, %v1647
        %v1649 = vrot.slane %v1641, %v1648
        %v1651 = vunpack.c.l.s4 1934713408
        %v1652 = vunpack.c.0.s8 %v1651
        %v1653 = vlaneseq
        %v1654 = vshrl.u32 %v1653, 7
        %v1655 = vsub.s32 %v1652, %v1654
        %v1656 = vrot.slane %v1642, %v1655
        %v1657 = vcombine.low %v1632, %v1640
        %v1658 = vcombine.high %v1632, %v1640
        %v1660 = vunpack.c.l.s4 1934713408
        %v1661 = vunpack.c.0.s8 %v1660
        %v1662 = vlaneseq
        %v1663 = vshrl.u32 %v1662, 7
        %v1664 = vsub.s32 %v1661, %v1663
        %v1665 = vrot.slane %v1657, %v1664
        %v1667 = vunpack.c.l.s4 1934713408
        %v1668 = vunpack.c.0.s8 %v1667
        %v1669 = vlaneseq
        %v1670 = vshrl.u32 %v1669, 7
        %v1671 = vsub.s32 %v1668, %v1670
        %v1672 = vrot.slane %v1658, %v1671
        %v1673 = vcombine.low %v1649, %v1665
        %v1674 = vcombine.high %v1649, %v1665
        %v1675 = vcombine.low %v1656, %v1672
        %v1676 = vcombine.high %v1656, %v1672
        %v1677 = vpack.c.bf16 %v1673, %v1605
        %v1678 = vpack.c.bf16 %v1674, %v1606
        %v1679 = vpack.c.bf16 %v1675, %v1607
        %v1680 = vpack.c.bf16 %v1676, %v1608
        %1683 = vrot.lane.b32.xlu0 %v1081, 96
        %v1684 = vpop.permute.xlu0 %1683
        %1685 = vrot.lane.b32.xlu0 %v1084, 96
        %v1686 = vpop.permute.xlu0 %1685
        %1689 = vrot.lane.b32.xlu0 %v1081, 64
        %v1690 = vpop.permute.xlu0 %1689
        %1691 = vrot.lane.b32.xlu0 %v1084, 64
        %v1692 = vpop.permute.xlu0 %1691
        %1695 = vrot.lane.b32.xlu0 %v1081, 32
        %v1696 = vpop.permute.xlu0 %1695
        %1697 = vrot.lane.b32.xlu0 %v1084, 32
        %v1698 = vpop.permute.xlu0 %1697
        %v1701 = vcombine.low %v1081, %v1690
        %v1702 = vcombine.high %v1081, %v1690
        %v1704 = vunpack.c.l.s4 1983009808
        %v1705 = vunpack.c.0.s8 %v1704
        %v1706 = vlaneseq
        %v1707 = vshrl.u32 %v1706, 7
        %v1708 = vsub.s32 %v1705, %v1707
        %v1709 = vrot.slane %v1701, %v1708
        %v1711 = vunpack.c.l.s4 1983009808
        %v1712 = vunpack.c.0.s8 %v1711
        %v1713 = vlaneseq
        %v1714 = vshrl.u32 %v1713, 7
        %v1715 = vsub.s32 %v1712, %v1714
        %v1716 = vrot.slane %v1702, %v1715
        %v1717 = vcombine.low %v1684, %v1696
        %v1718 = vcombine.high %v1684, %v1696
        %v1720 = vunpack.c.l.s4 1983009808
        %v1721 = vunpack.c.0.s8 %v1720
        %v1722 = vlaneseq
        %v1723 = vshrl.u32 %v1722, 7
        %v1724 = vsub.s32 %v1721, %v1723
        %v1725 = vrot.slane %v1717, %v1724
        %v1727 = vunpack.c.l.s4 1983009808
        %v1728 = vunpack.c.0.s8 %v1727
        %v1729 = vlaneseq
        %v1730 = vshrl.u32 %v1729, 7
        %v1731 = vsub.s32 %v1728, %v1730
        %v1732 = vrot.slane %v1718, %v1731
        %v1733 = vcombine.low %v1709, %v1725
        %v1734 = vcombine.high %v1709, %v1725
        %v1736 = vunpack.c.l.s4 1934713408
        %v1737 = vunpack.c.0.s8 %v1736
        %v1738 = vlaneseq
        %v1739 = vshrl.u32 %v1738, 7
        %v1740 = vsub.s32 %v1737, %v1739
        %v1741 = vrot.slane %v1733, %v1740
        %v1743 = vunpack.c.l.s4 1934713408
        %v1744 = vunpack.c.0.s8 %v1743
        %v1745 = vlaneseq
        %v1746 = vshrl.u32 %v1745, 7
        %v1747 = vsub.s32 %v1744, %v1746
        %v1748 = vrot.slane %v1734, %v1747
        %v1749 = vcombine.low %v1716, %v1732
        %v1750 = vcombine.high %v1716, %v1732
        %v1752 = vunpack.c.l.s4 1934713408
        %v1753 = vunpack.c.0.s8 %v1752
        %v1754 = vlaneseq
        %v1755 = vshrl.u32 %v1754, 7
        %v1756 = vsub.s32 %v1753, %v1755
        %v1757 = vrot.slane %v1749, %v1756
        %v1759 = vunpack.c.l.s4 1934713408
        %v1760 = vunpack.c.0.s8 %v1759
        %v1761 = vlaneseq
        %v1762 = vshrl.u32 %v1761, 7
        %v1763 = vsub.s32 %v1760, %v1762
        %v1764 = vrot.slane %v1750, %v1763
        %v1765 = vcombine.high %v1741, 0.0
        %v1766 = vcombine.high %v1748, 0.0
        %v1767 = vcombine.high %v1757, 0.0
        %v1768 = vcombine.high %v1764, 0.0
        %v1769 = vcombine.low %v1084, %v1692
        %v1770 = vcombine.high %v1084, %v1692
        %v1772 = vunpack.c.l.s4 1983009808
        %v1773 = vunpack.c.0.s8 %v1772
        %v1774 = vlaneseq
        %v1775 = vshrl.u32 %v1774, 7
        %v1776 = vsub.s32 %v1773, %v1775
        %v1777 = vrot.slane %v1769, %v1776
        %v1779 = vunpack.c.l.s4 1983009808
        %v1780 = vunpack.c.0.s8 %v1779
        %v1781 = vlaneseq
        %v1782 = vshrl.u32 %v1781, 7
        %v1783 = vsub.s32 %v1780, %v1782
        %v1784 = vrot.slane %v1770, %v1783
        %v1785 = vcombine.low %v1686, %v1698
        %v1786 = vcombine.high %v1686, %v1698
        %v1788 = vunpack.c.l.s4 1983009808
        %v1789 = vunpack.c.0.s8 %v1788
        %v1790 = vlaneseq
        %v1791 = vshrl.u32 %v1790, 7
        %v1792 = vsub.s32 %v1789, %v1791
        %v1793 = vrot.slane %v1785, %v1792
        %v1795 = vunpack.c.l.s4 1983009808
        %v1796 = vunpack.c.0.s8 %v1795
        %v1797 = vlaneseq
        %v1798 = vshrl.u32 %v1797, 7
        %v1799 = vsub.s32 %v1796, %v1798
        %v1800 = vrot.slane %v1786, %v1799
        %v1801 = vcombine.low %v1777, %v1793
        %v1802 = vcombine.high %v1777, %v1793
        %v1804 = vunpack.c.l.s4 1934713408
        %v1805 = vunpack.c.0.s8 %v1804
        %v1806 = vlaneseq
        %v1807 = vshrl.u32 %v1806, 7
        %v1808 = vsub.s32 %v1805, %v1807
        %v1809 = vrot.slane %v1801, %v1808
        %v1811 = vunpack.c.l.s4 1934713408
        %v1812 = vunpack.c.0.s8 %v1811
        %v1813 = vlaneseq
        %v1814 = vshrl.u32 %v1813, 7
        %v1815 = vsub.s32 %v1812, %v1814
        %v1816 = vrot.slane %v1802, %v1815
        %v1817 = vcombine.low %v1784, %v1800
        %v1818 = vcombine.high %v1784, %v1800
        %v1820 = vunpack.c.l.s4 1934713408
        %v1821 = vunpack.c.0.s8 %v1820
        %v1822 = vlaneseq
        %v1823 = vshrl.u32 %v1822, 7
        %v1824 = vsub.s32 %v1821, %v1823
        %v1825 = vrot.slane %v1817, %v1824
        %v1827 = vunpack.c.l.s4 1934713408
        %v1828 = vunpack.c.0.s8 %v1827
        %v1829 = vlaneseq
        %v1830 = vshrl.u32 %v1829, 7
        %v1831 = vsub.s32 %v1828, %v1830
        %v1832 = vrot.slane %v1818, %v1831
        %v1833 = vcombine.high %v1809, 0.0
        %v1834 = vcombine.high %v1816, 0.0
        %v1835 = vcombine.high %v1825, 0.0
        %v1836 = vcombine.high %v1832, 0.0
        %v1837 = vcombine.low %v1741, %v1748
        %v1839 = vunpack.c.l.s4 1983009808
        %v1840 = vunpack.c.0.s8 %v1839
        %v1841 = vlaneseq
        %v1842 = vshrl.u32 %v1841, 7
        %v1843 = vsub.s32 %v1840, %v1842
        %v1844 = vrot.slane %v1837, %v1843
        %v1845 = vcombine.low %v1765, %v1766
        %v1847 = vunpack.c.l.s4 1983009808
        %v1848 = vunpack.c.0.s8 %v1847
        %v1849 = vlaneseq
        %v1850 = vshrl.u32 %v1849, 7
        %v1851 = vsub.s32 %v1848, %v1850
        %v1852 = vrot.slane %v1845, %v1851
        %v1853 = vcombine.low %v1757, %v1764
        %v1855 = vunpack.c.l.s4 1983009808
        %v1856 = vunpack.c.0.s8 %v1855
        %v1857 = vlaneseq
        %v1858 = vshrl.u32 %v1857, 7
        %v1859 = vsub.s32 %v1856, %v1858
        %v1860 = vrot.slane %v1853, %v1859
        %v1861 = vcombine.low %v1767, %v1768
        %v1863 = vunpack.c.l.s4 1983009808
        %v1864 = vunpack.c.0.s8 %v1863
        %v1865 = vlaneseq
        %v1866 = vshrl.u32 %v1865, 7
        %v1867 = vsub.s32 %v1864, %v1866
        %v1868 = vrot.slane %v1861, %v1867
        %v1869 = vcombine.low %v1844, %v1852
        %v1870 = vcombine.high %v1844, %v1852
        %v1872 = vunpack.c.l.s4 1934713408
        %v1873 = vunpack.c.0.s8 %v1872
        %v1874 = vlaneseq
        %v1875 = vshrl.u32 %v1874, 7
        %v1876 = vsub.s32 %v1873, %v1875
        %v1877 = vrot.slane %v1869, %v1876
        %v1879 = vunpack.c.l.s4 1934713408
        %v1880 = vunpack.c.0.s8 %v1879
        %v1881 = vlaneseq
        %v1882 = vshrl.u32 %v1881, 7
        %v1883 = vsub.s32 %v1880, %v1882
        %v1884 = vrot.slane %v1870, %v1883
        %v1885 = vcombine.low %v1860, %v1868
        %v1886 = vcombine.high %v1860, %v1868
        %v1888 = vunpack.c.l.s4 1934713408
        %v1889 = vunpack.c.0.s8 %v1888
        %v1890 = vlaneseq
        %v1891 = vshrl.u32 %v1890, 7
        %v1892 = vsub.s32 %v1889, %v1891
        %v1893 = vrot.slane %v1885, %v1892
        %v1895 = vunpack.c.l.s4 1934713408
        %v1896 = vunpack.c.0.s8 %v1895
        %v1897 = vlaneseq
        %v1898 = vshrl.u32 %v1897, 7
        %v1899 = vsub.s32 %v1896, %v1898
        %v1900 = vrot.slane %v1886, %v1899
        %v1901 = vcombine.low %v1877, %v1893
        %v1902 = vcombine.high %v1877, %v1893
        %v1903 = vcombine.low %v1884, %v1900
        %v1904 = vcombine.high %v1884, %v1900
        %v1905 = vcombine.low %v1809, %v1816
        %v1907 = vunpack.c.l.s4 1983009808
        %v1908 = vunpack.c.0.s8 %v1907
        %v1909 = vlaneseq
        %v1910 = vshrl.u32 %v1909, 7
        %v1911 = vsub.s32 %v1908, %v1910
        %v1912 = vrot.slane %v1905, %v1911
        %v1913 = vcombine.low %v1833, %v1834
        %v1915 = vunpack.c.l.s4 1983009808
        %v1916 = vunpack.c.0.s8 %v1915
        %v1917 = vlaneseq
        %v1918 = vshrl.u32 %v1917, 7
        %v1919 = vsub.s32 %v1916, %v1918
        %v1920 = vrot.slane %v1913, %v1919
        %v1921 = vcombine.low %v1825, %v1832
        %v1923 = vunpack.c.l.s4 1983009808
        %v1924 = vunpack.c.0.s8 %v1923
        %v1925 = vlaneseq
        %v1926 = vshrl.u32 %v1925, 7
        %v1927 = vsub.s32 %v1924, %v1926
        %v1928 = vrot.slane %v1921, %v1927
        %v1929 = vcombine.low %v1835, %v1836
        %v1931 = vunpack.c.l.s4 1983009808
        %v1932 = vunpack.c.0.s8 %v1931
        %v1933 = vlaneseq
        %v1934 = vshrl.u32 %v1933, 7
        %v1935 = vsub.s32 %v1932, %v1934
        %v1936 = vrot.slane %v1929, %v1935
        %v1937 = vcombine.low %v1912, %v1920
        %v1938 = vcombine.high %v1912, %v1920
        %v1940 = vunpack.c.l.s4 1934713408
        %v1941 = vunpack.c.0.s8 %v1940
        %v1942 = vlaneseq
        %v1943 = vshrl.u32 %v1942, 7
        %v1944 = vsub.s32 %v1941, %v1943
        %v1945 = vrot.slane %v1937, %v1944
        %v1947 = vunpack.c.l.s4 1934713408
        %v1948 = vunpack.c.0.s8 %v1947
        %v1949 = vlaneseq
        %v1950 = vshrl.u32 %v1949, 7
        %v1951 = vsub.s32 %v1948, %v1950
        %v1952 = vrot.slane %v1938, %v1951
        %v1953 = vcombine.low %v1928, %v1936
        %v1954 = vcombine.high %v1928, %v1936
        %v1956 = vunpack.c.l.s4 1934713408
        %v1957 = vunpack.c.0.s8 %v1956
        %v1958 = vlaneseq
        %v1959 = vshrl.u32 %v1958, 7
        %v1960 = vsub.s32 %v1957, %v1959
        %v1961 = vrot.slane %v1953, %v1960
        %v1963 = vunpack.c.l.s4 1934713408
        %v1964 = vunpack.c.0.s8 %v1963
        %v1965 = vlaneseq
        %v1966 = vshrl.u32 %v1965, 7
        %v1967 = vsub.s32 %v1964, %v1966
        %v1968 = vrot.slane %v1954, %v1967
        %v1969 = vcombine.low %v1945, %v1961
        %v1970 = vcombine.high %v1945, %v1961
        %v1971 = vcombine.low %v1952, %v1968
        %v1972 = vcombine.high %v1952, %v1968
        %v1973 = vpack.c.bf16 %v1969, %v1901
        %v1974 = vpack.c.bf16 %v1970, %v1902
        %v1975 = vpack.c.bf16 %v1971, %v1903
        %v1976 = vpack.c.bf16 %v1972, %v1904
        %vm1977 = vcmask 261120
        %v1979 = vsel %vm1977, %v1381, 0
        %v1982 = vsel %vm1977, %v1677, 0
        %1984 = vmatprep.subr.bf16.mxu0 0
        %1985 = vmatpush1.bf16.xpose.msra.mxu0 0
        %1986 = vmatprep.subr.bf16.mxu0 0
        %1987 = vmatpush1.bf16.xpose.msra.mxu0 0
        %1988 = vmatprep.subr.bf16.mxu0 0
        %1989 = vmatpush1.bf16.xpose.msra.mxu0 0
        %1990 = vmatprep.subr.bf16.mxu0 0
        %1991 = vmatpush1.bf16.xpose.msra.mxu0 0
        %1992 = vmatprep.subr.bf16.mxu0 0
        %1993 = vmatpush1.bf16.xpose.msra.mxu0 0
        %1994 = vmatprep.subr.bf16.mxu0 0
        %1995 = vmatpush1.bf16.xpose.msra.mxu0 0
        %1996 = vmatprep.subr.bf16.mxu0 0
        %1997 = vmatpush1.bf16.xpose.msra.mxu0 0
        %1998 = vmatprep.subr.bf16.mxu0 0
        %1999 = vmatpush1.bf16.xpose.msra.mxu0 %v1982
        %2000 = vmatprep.subr.bf16.mxu0 0
        %2001 = vmatpush2.bf16.xpose.msra.mxu0 0
        %2002 = vmatprep.subr.bf16.mxu0 0
        %2003 = vmatpush2.bf16.xpose.msra.mxu0 0
        %2004 = vmatprep.subr.bf16.mxu0 0
        %2005 = vmatpush2.bf16.xpose.msra.mxu0 0
        %2006 = vmatprep.subr.bf16.mxu0 0
        %2007 = vmatpush2.bf16.xpose.msra.mxu0 0
        %2008 = vmatprep.subr.bf16.mxu0 0
        %2009 = vmatpush2.bf16.xpose.msra.mxu0 0
        %2010 = vmatprep.subr.bf16.mxu0 0
        %2011 = vmatpush2.bf16.xpose.msra.mxu0 0
        %2012 = vmatprep.subr.bf16.mxu0 0
        %2013 = vmatpush2.bf16.xpose.msra.mxu0 0
        %2014 = vmatprep.subr.bf16.mxu0 0
        %2015 = vmatpush2.bf16.xpose.msra.mxu0 0
        %2016 = vmatprep.mubr.bf16.mxu0 0
        %2017 = vmatmul.mubr.bf16.gmra.mxu0 %v1979
        %v2018 = vpop.f32.mrf.mxu0
        %v2019 = vadd.f32 0.0, %v2018
        %v2020 = vpop.f32.mrf.mxu0
        %v2021 = vpop.f32.mrf.mxu0
        %v2022 = vadd.f32 0.0, %v2021
        %v2023 = vpop.f32.mrf.mxu0
        %2024 = vdwg.mxu0
        %v2026 = vsel %vm1977, %v1382, 0
        %v2029 = vsel %vm1977, %v1678, 0
        %2031 = vmatprep.subr.bf16.mxu0 0
        %2032 = vmatpush1.bf16.xpose.msra.mxu0 0
        %2033 = vmatprep.subr.bf16.mxu0 0
        %2034 = vmatpush1.bf16.xpose.msra.mxu0 0
        %2035 = vmatprep.subr.bf16.mxu0 0
        %2036 = vmatpush1.bf16.xpose.msra.mxu0 0
        %2037 = vmatprep.subr.bf16.mxu0 0
        %2038 = vmatpush1.bf16.xpose.msra.mxu0 0
        %2039 = vmatprep.subr.bf16.mxu0 0
        %2040 = vmatpush1.bf16.xpose.msra.mxu0 0
        %2041 = vmatprep.subr.bf16.mxu0 0
        %2042 = vmatpush1.bf16.xpose.msra.mxu0 0
        %2043 = vmatprep.subr.bf16.mxu0 0
        %2044 = vmatpush1.bf16.xpose.msra.mxu0 0
        %2045 = vmatprep.subr.bf16.mxu0 0
        %2046 = vmatpush1.bf16.xpose.msra.mxu0 %v2029
        %2047 = vmatprep.subr.bf16.mxu0 0
        %2048 = vmatpush2.bf16.xpose.msra.mxu0 0
        %2049 = vmatprep.subr.bf16.mxu0 0
        %2050 = vmatpush2.bf16.xpose.msra.mxu0 0
        %2051 = vmatprep.subr.bf16.mxu0 0
        %2052 = vmatpush2.bf16.xpose.msra.mxu0 0
        %2053 = vmatprep.subr.bf16.mxu0 0
        %2054 = vmatpush2.bf16.xpose.msra.mxu0 0
        %2055 = vmatprep.subr.bf16.mxu0 0
        %2056 = vmatpush2.bf16.xpose.msra.mxu0 0
        %2057 = vmatprep.subr.bf16.mxu0 0
        %2058 = vmatpush2.bf16.xpose.msra.mxu0 0
        %2059 = vmatprep.subr.bf16.mxu0 0
        %2060 = vmatpush2.bf16.xpose.msra.mxu0 0
        %2061 = vmatprep.subr.bf16.mxu0 0
        %2062 = vmatpush2.bf16.xpose.msra.mxu0 0
        %2063 = vmatprep.mubr.bf16.mxu0 0
        %2064 = vmatmul.mubr.bf16.gmra.mxu0 %v2026
        %v2065 = vpop.f32.mrf.mxu0
        %v2066 = vadd.f32 0.0, %v2065
        %v2067 = vpop.f32.mrf.mxu0
        %v2068 = vpop.f32.mrf.mxu0
        %v2069 = vadd.f32 0.0, %v2068
        %v2070 = vpop.f32.mrf.mxu0
        %2071 = vdwg.mxu0
        %v2073 = vsel %vm1977, %v1383, 0
        %v2076 = vsel %vm1977, %v1679, 0
        %2078 = vmatprep.subr.bf16.mxu0 0
        %2079 = vmatpush1.bf16.xpose.msra.mxu0 0
        %2080 = vmatprep.subr.bf16.mxu0 0
        %2081 = vmatpush1.bf16.xpose.msra.mxu0 0
        %2082 = vmatprep.subr.bf16.mxu0 0
        %2083 = vmatpush1.bf16.xpose.msra.mxu0 0
        %2084 = vmatprep.subr.bf16.mxu0 0
        %2085 = vmatpush1.bf16.xpose.msra.mxu0 0
        %2086 = vmatprep.subr.bf16.mxu0 0
        %2087 = vmatpush1.bf16.xpose.msra.mxu0 0
        %2088 = vmatprep.subr.bf16.mxu0 0
        %2089 = vmatpush1.bf16.xpose.msra.mxu0 0
        %2090 = vmatprep.subr.bf16.mxu0 0
        %2091 = vmatpush1.bf16.xpose.msra.mxu0 0
        %2092 = vmatprep.subr.bf16.mxu0 0
        %2093 = vmatpush1.bf16.xpose.msra.mxu0 %v2076
        %2094 = vmatprep.subr.bf16.mxu0 0
        %2095 = vmatpush2.bf16.xpose.msra.mxu0 0
        %2096 = vmatprep.subr.bf16.mxu0 0
        %2097 = vmatpush2.bf16.xpose.msra.mxu0 0
        %2098 = vmatprep.subr.bf16.mxu0 0
        %2099 = vmatpush2.bf16.xpose.msra.mxu0 0
        %2100 = vmatprep.subr.bf16.mxu0 0
        %2101 = vmatpush2.bf16.xpose.msra.mxu0 0
        %2102 = vmatprep.subr.bf16.mxu0 0
        %2103 = vmatpush2.bf16.xpose.msra.mxu0 0
        %2104 = vmatprep.subr.bf16.mxu0 0
        %2105 = vmatpush2.bf16.xpose.msra.mxu0 0
        %2106 = vmatprep.subr.bf16.mxu0 0
        %2107 = vmatpush2.bf16.xpose.msra.mxu0 0
        %2108 = vmatprep.subr.bf16.mxu0 0
        %2109 = vmatpush2.bf16.xpose.msra.mxu0 0
        %2110 = vmatprep.mubr.bf16.mxu0 0
        %2111 = vmatmul.mubr.bf16.gmra.mxu0 %v2073
        %v2112 = vpop.f32.mrf.mxu0
        %v2113 = vadd.f32 0.0, %v2112
        %v2114 = vpop.f32.mrf.mxu0
        %v2115 = vpop.f32.mrf.mxu0
        %v2116 = vadd.f32 0.0, %v2115
        %v2117 = vpop.f32.mrf.mxu0
        %2118 = vdwg.mxu0
        %v2120 = vsel %vm1977, %v1384, 0
        %v2123 = vsel %vm1977, %v1680, 0
        %2125 = vmatprep.subr.bf16.mxu0 0
        %2126 = vmatpush1.bf16.xpose.msra.mxu0 0
        %2127 = vmatprep.subr.bf16.mxu0 0
        %2128 = vmatpush1.bf16.xpose.msra.mxu0 0
        %2129 = vmatprep.subr.bf16.mxu0 0
        %2130 = vmatpush1.bf16.xpose.msra.mxu0 0
        %2131 = vmatprep.subr.bf16.mxu0 0
        %2132 = vmatpush1.bf16.xpose.msra.mxu0 0
        %2133 = vmatprep.subr.bf16.mxu0 0
        %2134 = vmatpush1.bf16.xpose.msra.mxu0 0
        %2135 = vmatprep.subr.bf16.mxu0 0
        %2136 = vmatpush1.bf16.xpose.msra.mxu0 0
        %2137 = vmatprep.subr.bf16.mxu0 0
        %2138 = vmatpush1.bf16.xpose.msra.mxu0 0
        %2139 = vmatprep.subr.bf16.mxu0 0
        %2140 = vmatpush1.bf16.xpose.msra.mxu0 %v2123
        %2141 = vmatprep.subr.bf16.mxu0 0
        %2142 = vmatpush2.bf16.xpose.msra.mxu0 0
        %2143 = vmatprep.subr.bf16.mxu0 0
        %2144 = vmatpush2.bf16.xpose.msra.mxu0 0
        %2145 = vmatprep.subr.bf16.mxu0 0
        %2146 = vmatpush2.bf16.xpose.msra.mxu0 0
        %2147 = vmatprep.subr.bf16.mxu0 0
        %2148 = vmatpush2.bf16.xpose.msra.mxu0 0
        %2149 = vmatprep.subr.bf16.mxu0 0
        %2150 = vmatpush2.bf16.xpose.msra.mxu0 0
        %2151 = vmatprep.subr.bf16.mxu0 0
        %2152 = vmatpush2.bf16.xpose.msra.mxu0 0
        %2153 = vmatprep.subr.bf16.mxu0 0
        %2154 = vmatpush2.bf16.xpose.msra.mxu0 0
        %2155 = vmatprep.subr.bf16.mxu0 0
        %2156 = vmatpush2.bf16.xpose.msra.mxu0 0
        %2157 = vmatprep.mubr.bf16.mxu0 0
        %2158 = vmatmul.mubr.bf16.gmra.mxu0 %v2120
        %v2159 = vpop.f32.mrf.mxu0
        %v2160 = vadd.f32 0.0, %v2159
        %v2161 = vpop.f32.mrf.mxu0
        %v2162 = vpop.f32.mrf.mxu0
        %v2163 = vadd.f32 0.0, %v2162
        %v2164 = vpop.f32.mrf.mxu0
        %2165 = vdwg.mxu0
        %vm2166 = vcmask 130048
        %v2167 = vsel %vm2166, %v2019, -inf
        %2168 = vmax.xlane.f32.xlu0 %v2167
        %v2169 = vpop.xlane.xlu0 %2168
        %v2170 = vsel %vm2166, %v2022, -inf
        %2171 = vmax.xlane.f32.xlu0 %v2170
        %v2172 = vpop.xlane.xlu0 %2171
        %v2173 = vsel %vm2166, %v2066, -inf
        %2174 = vmax.xlane.f32.xlu0 %v2173
        %v2175 = vpop.xlane.xlu0 %2174
        %v2176 = vsel %vm2166, %v2069, -inf
        %2177 = vmax.xlane.f32.xlu0 %v2176
        %v2178 = vpop.xlane.xlu0 %2177
        %v2179 = vsel %vm2166, %v2113, -inf
        %2180 = vmax.xlane.f32.xlu0 %v2179
        %v2181 = vpop.xlane.xlu0 %2180
        %v2182 = vsel %vm2166, %v2116, -inf
        %2183 = vmax.xlane.f32.xlu0 %v2182
        %v2184 = vpop.xlane.xlu0 %2183
        %v2185 = vsel %vm2166, %v2160, -inf
        %2186 = vmax.xlane.f32.xlu0 %v2185
        %v2187 = vpop.xlane.xlu0 %2186
        %v2188 = vsel %vm2166, %v2163, -inf
        %2189 = vmax.xlane.f32.xlu0 %v2188
        %v2190 = vpop.xlane.xlu0 %2189
        %v2191 = vsub.f32 %v2019, %v2169
        %v2192 = vsub.f32 %v2022, %v2172
        %v2193 = vsub.f32 %v2066, %v2175
        %v2194 = vsub.f32 %v2069, %v2178
        %v2195 = vsub.f32 %v2113, %v2181
        %v2196 = vsub.f32 %v2116, %v2184
        %v2197 = vsub.f32 %v2160, %v2187
        %v2198 = vsub.f32 %v2163, %v2190
        %v2199 = vmul.f32 %v2191, 1.442695
        %v2200 = vpow.pop %v2199
        %v2201 = vmul.f32 %v2192, 1.442695
        %v2202 = vpow.pop %v2201
        %v2203 = vmul.f32 %v2193, 1.442695
        %v2204 = vpow.pop %v2203
        %v2205 = vmul.f32 %v2194, 1.442695
        %v2206 = vpow.pop %v2205
        %v2207 = vmul.f32 %v2195, 1.442695
        %v2208 = vpow.pop %v2207
        %v2209 = vmul.f32 %v2196, 1.442695
        %v2210 = vpow.pop %v2209
        %v2211 = vmul.f32 %v2197, 1.442695
        %v2212 = vpow.pop %v2211
        %v2213 = vmul.f32 %v2198, 1.442695
        %v2214 = vpow.pop %v2213
        %v2215 = vsel %vm2166, %v2200, 0.0
        %2216 = vadd.xlane.f32.xlu0 %v2215
        %v2217 = vpop.xlane.xlu0 %2216
        %v2218 = vsel %vm2166, %v2202, 0.0
        %2219 = vadd.xlane.f32.xlu0 %v2218
        %v2220 = vpop.xlane.xlu0 %2219
        %v2221 = vsel %vm2166, %v2204, 0.0
        %2222 = vadd.xlane.f32.xlu0 %v2221
        %v2223 = vpop.xlane.xlu0 %2222
        %v2224 = vsel %vm2166, %v2206, 0.0
        %2225 = vadd.xlane.f32.xlu0 %v2224
        %v2226 = vpop.xlane.xlu0 %2225
        %v2227 = vsel %vm2166, %v2208, 0.0
        %2228 = vadd.xlane.f32.xlu0 %v2227
        %v2229 = vpop.xlane.xlu0 %2228
        %v2230 = vsel %vm2166, %v2210, 0.0
        %2231 = vadd.xlane.f32.xlu0 %v2230
        %v2232 = vpop.xlane.xlu0 %2231
        %v2233 = vsel %vm2166, %v2212, 0.0
        %2234 = vadd.xlane.f32.xlu0 %v2233
        %v2235 = vpop.xlane.xlu0 %2234
        %v2236 = vsel %vm2166, %v2214, 0.0
        %2237 = vadd.xlane.f32.xlu0 %v2236
        %v2238 = vpop.xlane.xlu0 %2237
        %v2239 = vrcp.pop %v2217
        %v2240 = vrcp.pop %v2220
        %v2241 = vrcp.pop %v2223
        %v2242 = vrcp.pop %v2226
        %v2243 = vrcp.pop %v2229
        %v2244 = vrcp.pop %v2232
        %v2245 = vrcp.pop %v2235
        %v2246 = vrcp.pop %v2238
        %v2247 = vmul.f32 %v2200, %v2239
        %v2248 = vmul.f32 %v2202, %v2240
        %v2249 = vmul.f32 %v2204, %v2241
        %v2250 = vmul.f32 %v2206, %v2242
        %v2251 = vmul.f32 %v2208, %v2243
        %v2252 = vmul.f32 %v2210, %v2244
        %v2253 = vmul.f32 %v2212, %v2245
        %v2254 = vmul.f32 %v2214, %v2246
        %v2255 = vpack.c.bf16 %v2248, %v2247
        %v2256 = vpack.c.bf16 %v2250, %v2249
        %v2257 = vpack.c.bf16 %v2252, %v2251
        %v2258 = vpack.c.bf16 %v2254, %v2253
        %v2260 = vsel %vm2166, %v2255, 0
        %2262 = vmatprep.subr.bf16.mxu0 0
        %2263 = vmatpush1.bf16.msra.mxu0 0
        %2264 = vmatprep.subr.bf16.mxu0 0
        %2265 = vmatpush1.bf16.msra.mxu0 0
        %2266 = vmatprep.subr.bf16.mxu0 0
        %2267 = vmatpush1.bf16.msra.mxu0 0
        %2268 = vmatprep.subr.bf16.mxu0 0
        %2269 = vmatpush1.bf16.msra.mxu0 0
        %2270 = vmatprep.subr.bf16.mxu0 0
        %2271 = vmatpush1.bf16.msra.mxu0 0
        %2272 = vmatprep.subr.bf16.mxu0 0
        %2273 = vmatpush1.bf16.msra.mxu0 0
        %2274 = vmatprep.subr.bf16.mxu0 0
        %2275 = vmatpush1.bf16.msra.mxu0 0
        %2276 = vmatprep.subr.bf16.mxu0 0
        %2277 = vmatpush1.bf16.msra.mxu0 %v1973
        %2278 = vmatprep.subr.bf16.mxu0 0
        %2279 = vmatpush2.bf16.msra.mxu0 0
        %2280 = vmatprep.subr.bf16.mxu0 0
        %2281 = vmatpush2.bf16.msra.mxu0 0
        %2282 = vmatprep.subr.bf16.mxu0 0
        %2283 = vmatpush2.bf16.msra.mxu0 0
        %2284 = vmatprep.subr.bf16.mxu0 0
        %2285 = vmatpush2.bf16.msra.mxu0 0
        %2286 = vmatprep.subr.bf16.mxu0 0
        %2287 = vmatpush2.bf16.msra.mxu0 0
        %2288 = vmatprep.subr.bf16.mxu0 0
        %2289 = vmatpush2.bf16.msra.mxu0 0
        %2290 = vmatprep.subr.bf16.mxu0 0
        %2291 = vmatpush2.bf16.msra.mxu0 0
        %2292 = vmatprep.subr.bf16.mxu0 0
        %2293 = vmatpush2.bf16.msra.mxu0 0
        %2294 = vmatprep.mubr.bf16.mxu0 0
        %2295 = vmatmul.mubr.bf16.gmra.mxu0 %v2260
        %v2296 = vpop.f32.mrf.mxu0
        %v2297 = vadd.f32 0.0, %v2296
        %v2298 = vpop.f32.mrf.mxu0
        %v2299 = vpop.f32.mrf.mxu0
        %v2300 = vadd.f32 0.0, %v2299
        %v2301 = vpop.f32.mrf.mxu0
        %2302 = vdwg.mxu0
        %v2304 = vsel %vm2166, %v2256, 0
        %2306 = vmatprep.subr.bf16.mxu0 0
        %2307 = vmatpush1.bf16.msra.mxu0 0
        %2308 = vmatprep.subr.bf16.mxu0 0
        %2309 = vmatpush1.bf16.msra.mxu0 0
        %2310 = vmatprep.subr.bf16.mxu0 0
        %2311 = vmatpush1.bf16.msra.mxu0 0
        %2312 = vmatprep.subr.bf16.mxu0 0
        %2313 = vmatpush1.bf16.msra.mxu0 0
        %2314 = vmatprep.subr.bf16.mxu0 0
        %2315 = vmatpush1.bf16.msra.mxu0 0
        %2316 = vmatprep.subr.bf16.mxu0 0
        %2317 = vmatpush1.bf16.msra.mxu0 0
        %2318 = vmatprep.subr.bf16.mxu0 0
        %2319 = vmatpush1.bf16.msra.mxu0 0
        %2320 = vmatprep.subr.bf16.mxu0 0
        %2321 = vmatpush1.bf16.msra.mxu0 %v1974
        %2322 = vmatprep.subr.bf16.mxu0 0
        %2323 = vmatpush2.bf16.msra.mxu0 0
        %2324 = vmatprep.subr.bf16.mxu0 0
        %2325 = vmatpush2.bf16.msra.mxu0 0
        %2326 = vmatprep.subr.bf16.mxu0 0
        %2327 = vmatpush2.bf16.msra.mxu0 0
        %2328 = vmatprep.subr.bf16.mxu0 0
        %2329 = vmatpush2.bf16.msra.mxu0 0
        %2330 = vmatprep.subr.bf16.mxu0 0
        %2331 = vmatpush2.bf16.msra.mxu0 0
        %2332 = vmatprep.subr.bf16.mxu0 0
        %2333 = vmatpush2.bf16.msra.mxu0 0
        %2334 = vmatprep.subr.bf16.mxu0 0
        %2335 = vmatpush2.bf16.msra.mxu0 0
        %2336 = vmatprep.subr.bf16.mxu0 0
        %2337 = vmatpush2.bf16.msra.mxu0 0
        %2338 = vmatprep.mubr.bf16.mxu0 0
        %2339 = vmatmul.mubr.bf16.gmra.mxu0 %v2304
        %v2340 = vpop.f32.mrf.mxu0
        %v2341 = vadd.f32 0.0, %v2340
        %v2342 = vpop.f32.mrf.mxu0
        %v2343 = vpop.f32.mrf.mxu0
        %v2344 = vadd.f32 0.0, %v2343
        %v2345 = vpop.f32.mrf.mxu0
        %2346 = vdwg.mxu0
        %v2348 = vsel %vm2166, %v2257, 0
        %2350 = vmatprep.subr.bf16.mxu0 0
        %2351 = vmatpush1.bf16.msra.mxu0 0
        %2352 = vmatprep.subr.bf16.mxu0 0
        %2353 = vmatpush1.bf16.msra.mxu0 0
        %2354 = vmatprep.subr.bf16.mxu0 0
        %2355 = vmatpush1.bf16.msra.mxu0 0
        %2356 = vmatprep.subr.bf16.mxu0 0
        %2357 = vmatpush1.bf16.msra.mxu0 0
        %2358 = vmatprep.subr.bf16.mxu0 0
        %2359 = vmatpush1.bf16.msra.mxu0 0
        %2360 = vmatprep.subr.bf16.mxu0 0
        %2361 = vmatpush1.bf16.msra.mxu0 0
        %2362 = vmatprep.subr.bf16.mxu0 0
        %2363 = vmatpush1.bf16.msra.mxu0 0
        %2364 = vmatprep.subr.bf16.mxu0 0
        %2365 = vmatpush1.bf16.msra.mxu0 %v1975
        %2366 = vmatprep.subr.bf16.mxu0 0
        %2367 = vmatpush2.bf16.msra.mxu0 0
        %2368 = vmatprep.subr.bf16.mxu0 0
        %2369 = vmatpush2.bf16.msra.mxu0 0
        %2370 = vmatprep.subr.bf16.mxu0 0
        %2371 = vmatpush2.bf16.msra.mxu0 0
        %2372 = vmatprep.subr.bf16.mxu0 0
        %2373 = vmatpush2.bf16.msra.mxu0 0
        %2374 = vmatprep.subr.bf16.mxu0 0
        %2375 = vmatpush2.bf16.msra.mxu0 0
        %2376 = vmatprep.subr.bf16.mxu0 0
        %2377 = vmatpush2.bf16.msra.mxu0 0
        %2378 = vmatprep.subr.bf16.mxu0 0
        %2379 = vmatpush2.bf16.msra.mxu0 0
        %2380 = vmatprep.subr.bf16.mxu0 0
        %2381 = vmatpush2.bf16.msra.mxu0 0
        %2382 = vmatprep.mubr.bf16.mxu0 0
        %2383 = vmatmul.mubr.bf16.gmra.mxu0 %v2348
        %v2384 = vpop.f32.mrf.mxu0
        %v2385 = vadd.f32 0.0, %v2384
        %v2386 = vpop.f32.mrf.mxu0
        %v2387 = vpop.f32.mrf.mxu0
        %v2388 = vadd.f32 0.0, %v2387
        %v2389 = vpop.f32.mrf.mxu0
        %2390 = vdwg.mxu0
        %v2392 = vsel %vm2166, %v2258, 0
        %2394 = vmatprep.subr.bf16.mxu0 0
        %2395 = vmatpush1.bf16.msra.mxu0 0
        %2396 = vmatprep.subr.bf16.mxu0 0
        %2397 = vmatpush1.bf16.msra.mxu0 0
        %2398 = vmatprep.subr.bf16.mxu0 0
        %2399 = vmatpush1.bf16.msra.mxu0 0
        %2400 = vmatprep.subr.bf16.mxu0 0
        %2401 = vmatpush1.bf16.msra.mxu0 0
        %2402 = vmatprep.subr.bf16.mxu0 0
        %2403 = vmatpush1.bf16.msra.mxu0 0
        %2404 = vmatprep.subr.bf16.mxu0 0
        %2405 = vmatpush1.bf16.msra.mxu0 0
        %2406 = vmatprep.subr.bf16.mxu0 0
        %2407 = vmatpush1.bf16.msra.mxu0 0
        %2408 = vmatprep.subr.bf16.mxu0 0
        %2409 = vmatpush1.bf16.msra.mxu0 %v1976
        %2410 = vmatprep.subr.bf16.mxu0 0
        %2411 = vmatpush2.bf16.msra.mxu0 0
        %2412 = vmatprep.subr.bf16.mxu0 0
        %2413 = vmatpush2.bf16.msra.mxu0 0
        %2414 = vmatprep.subr.bf16.mxu0 0
        %2415 = vmatpush2.bf16.msra.mxu0 0
        %2416 = vmatprep.subr.bf16.mxu0 0
        %2417 = vmatpush2.bf16.msra.mxu0 0
        %2418 = vmatprep.subr.bf16.mxu0 0
        %2419 = vmatpush2.bf16.msra.mxu0 0
        %2420 = vmatprep.subr.bf16.mxu0 0
        %2421 = vmatpush2.bf16.msra.mxu0 0
        %2422 = vmatprep.subr.bf16.mxu0 0
        %2423 = vmatpush2.bf16.msra.mxu0 0
        %2424 = vmatprep.subr.bf16.mxu0 0
        %2425 = vmatpush2.bf16.msra.mxu0 0
        %2426 = vmatprep.mubr.bf16.mxu0 0
        %2427 = vmatmul.mubr.bf16.gmra.mxu0 %v2392
        %v2428 = vpop.f32.mrf.mxu0
        %v2429 = vadd.f32 0.0, %v2428
        %v2430 = vpop.f32.mrf.mxu0
        %v2431 = vpop.f32.mrf.mxu0
        %v2432 = vadd.f32 0.0, %v2431
        %v2433 = vpop.f32.mrf.mxu0
        %2434 = vdwg.mxu0
        %v2435 = vcombine.low %v2297, %v2385
        %v2436 = vcombine.high %v2297, %v2385
        %v2438 = vunpack.c.l.s4 1983009808
        %v2439 = vunpack.c.0.s8 %v2438
        %v2440 = vlaneseq
        %v2441 = vshrl.u32 %v2440, 7
        %v2442 = vsub.s32 %v2439, %v2441
        %v2443 = vrot.slane %v2435, %v2442
        %v2445 = vunpack.c.l.s4 1983009808
        %v2446 = vunpack.c.0.s8 %v2445
        %v2447 = vlaneseq
        %v2448 = vshrl.u32 %v2447, 7
        %v2449 = vsub.s32 %v2446, %v2448
        %v2450 = vrot.slane %v2436, %v2449
        %v2451 = vcombine.low %v2341, %v2429
        %v2452 = vcombine.high %v2341, %v2429
        %v2454 = vunpack.c.l.s4 1983009808
        %v2455 = vunpack.c.0.s8 %v2454
        %v2456 = vlaneseq
        %v2457 = vshrl.u32 %v2456, 7
        %v2458 = vsub.s32 %v2455, %v2457
        %v2459 = vrot.slane %v2451, %v2458
        %v2461 = vunpack.c.l.s4 1983009808
        %v2462 = vunpack.c.0.s8 %v2461
        %v2463 = vlaneseq
        %v2464 = vshrl.u32 %v2463, 7
        %v2465 = vsub.s32 %v2462, %v2464
        %v2466 = vrot.slane %v2452, %v2465
        %v2467 = vcombine.low %v2443, %v2459
        %v2468 = vcombine.high %v2443, %v2459
        %v2470 = vunpack.c.l.s4 1934713408
        %v2471 = vunpack.c.0.s8 %v2470
        %v2472 = vlaneseq
        %v2473 = vshrl.u32 %v2472, 7
        %v2474 = vsub.s32 %v2471, %v2473
        %v2475 = vrot.slane %v2467, %v2474
        %v2477 = vunpack.c.l.s4 1934713408
        %v2478 = vunpack.c.0.s8 %v2477
        %v2479 = vlaneseq
        %v2480 = vshrl.u32 %v2479, 7
        %v2481 = vsub.s32 %v2478, %v2480
        %v2482 = vrot.slane %v2468, %v2481
        %v2483 = vcombine.low %v2450, %v2466
        %v2484 = vcombine.high %v2450, %v2466
        %v2486 = vunpack.c.l.s4 1934713408
        %v2487 = vunpack.c.0.s8 %v2486
        %v2488 = vlaneseq
        %v2489 = vshrl.u32 %v2488, 7
        %v2490 = vsub.s32 %v2487, %v2489
        %v2491 = vrot.slane %v2483, %v2490
        %v2493 = vunpack.c.l.s4 1934713408
        %v2494 = vunpack.c.0.s8 %v2493
        %v2495 = vlaneseq
        %v2496 = vshrl.u32 %v2495, 7
        %v2497 = vsub.s32 %v2494, %v2496
        %v2498 = vrot.slane %v2484, %v2497
        %v2499 = vcombine.high %v2475, 0.0
        %v2500 = vcombine.high %v2482, 0.0
        %v2501 = vcombine.high %v2491, 0.0
        %v2502 = vcombine.high %v2498, 0.0
        %v2503 = vcombine.low %v2300, %v2388
        %v2504 = vcombine.high %v2300, %v2388
        %v2506 = vunpack.c.l.s4 1983009808
        %v2507 = vunpack.c.0.s8 %v2506
        %v2508 = vlaneseq
        %v2509 = vshrl.u32 %v2508, 7
        %v2510 = vsub.s32 %v2507, %v2509
        %v2511 = vrot.slane %v2503, %v2510
        %v2513 = vunpack.c.l.s4 1983009808
        %v2514 = vunpack.c.0.s8 %v2513
        %v2515 = vlaneseq
        %v2516 = vshrl.u32 %v2515, 7
        %v2517 = vsub.s32 %v2514, %v2516
        %v2518 = vrot.slane %v2504, %v2517
        %v2519 = vcombine.low %v2344, %v2432
        %v2520 = vcombine.high %v2344, %v2432
        %v2522 = vunpack.c.l.s4 1983009808
        %v2523 = vunpack.c.0.s8 %v2522
        %v2524 = vlaneseq
        %v2525 = vshrl.u32 %v2524, 7
        %v2526 = vsub.s32 %v2523, %v2525
        %v2527 = vrot.slane %v2519, %v2526
        %v2529 = vunpack.c.l.s4 1983009808
        %v2530 = vunpack.c.0.s8 %v2529
        %v2531 = vlaneseq
        %v2532 = vshrl.u32 %v2531, 7
        %v2533 = vsub.s32 %v2530, %v2532
        %v2534 = vrot.slane %v2520, %v2533
        %v2535 = vcombine.low %v2511, %v2527
        %v2536 = vcombine.high %v2511, %v2527
        %v2538 = vunpack.c.l.s4 1934713408
        %v2539 = vunpack.c.0.s8 %v2538
        %v2540 = vlaneseq
        %v2541 = vshrl.u32 %v2540, 7
        %v2542 = vsub.s32 %v2539, %v2541
        %v2543 = vrot.slane %v2535, %v2542
        %v2545 = vunpack.c.l.s4 1934713408
        %v2546 = vunpack.c.0.s8 %v2545
        %v2547 = vlaneseq
        %v2548 = vshrl.u32 %v2547, 7
        %v2549 = vsub.s32 %v2546, %v2548
        %v2550 = vrot.slane %v2536, %v2549
        %v2551 = vcombine.low %v2518, %v2534
        %v2552 = vcombine.high %v2518, %v2534
        %v2554 = vunpack.c.l.s4 1934713408
        %v2555 = vunpack.c.0.s8 %v2554
        %v2556 = vlaneseq
        %v2557 = vshrl.u32 %v2556, 7
        %v2558 = vsub.s32 %v2555, %v2557
        %v2559 = vrot.slane %v2551, %v2558
        %v2561 = vunpack.c.l.s4 1934713408
        %v2562 = vunpack.c.0.s8 %v2561
        %v2563 = vlaneseq
        %v2564 = vshrl.u32 %v2563, 7
        %v2565 = vsub.s32 %v2562, %v2564
        %v2566 = vrot.slane %v2552, %v2565
        %v2567 = vcombine.high %v2543, 0.0
        %v2568 = vcombine.high %v2550, 0.0
        %v2569 = vcombine.high %v2559, 0.0
        %v2570 = vcombine.high %v2566, 0.0
        %v2571 = vcombine.low %v2475, %v2482
        %v2573 = vunpack.c.l.s4 1983009808
        %v2574 = vunpack.c.0.s8 %v2573
        %v2575 = vlaneseq
        %v2576 = vshrl.u32 %v2575, 7
        %v2577 = vsub.s32 %v2574, %v2576
        %v2578 = vrot.slane %v2571, %v2577
        %v2579 = vcombine.low %v2499, %v2500
        %v2581 = vunpack.c.l.s4 1983009808
        %v2582 = vunpack.c.0.s8 %v2581
        %v2583 = vlaneseq
        %v2584 = vshrl.u32 %v2583, 7
        %v2585 = vsub.s32 %v2582, %v2584
        %v2586 = vrot.slane %v2579, %v2585
        %v2587 = vcombine.low %v2491, %v2498
        %v2589 = vunpack.c.l.s4 1983009808
        %v2590 = vunpack.c.0.s8 %v2589
        %v2591 = vlaneseq
        %v2592 = vshrl.u32 %v2591, 7
        %v2593 = vsub.s32 %v2590, %v2592
        %v2594 = vrot.slane %v2587, %v2593
        %v2595 = vcombine.low %v2501, %v2502
        %v2597 = vunpack.c.l.s4 1983009808
        %v2598 = vunpack.c.0.s8 %v2597
        %v2599 = vlaneseq
        %v2600 = vshrl.u32 %v2599, 7
        %v2601 = vsub.s32 %v2598, %v2600
        %v2602 = vrot.slane %v2595, %v2601
        %v2603 = vcombine.low %v2578, %v2586
        %v2604 = vcombine.high %v2578, %v2586
        %v2606 = vunpack.c.l.s4 1934713408
        %v2607 = vunpack.c.0.s8 %v2606
        %v2608 = vlaneseq
        %v2609 = vshrl.u32 %v2608, 7
        %v2610 = vsub.s32 %v2607, %v2609
        %v2611 = vrot.slane %v2603, %v2610
        %v2613 = vunpack.c.l.s4 1934713408
        %v2614 = vunpack.c.0.s8 %v2613
        %v2615 = vlaneseq
        %v2616 = vshrl.u32 %v2615, 7
        %v2617 = vsub.s32 %v2614, %v2616
        %v2618 = vrot.slane %v2604, %v2617
        %v2619 = vcombine.low %v2594, %v2602
        %v2620 = vcombine.high %v2594, %v2602
        %v2622 = vunpack.c.l.s4 1934713408
        %v2623 = vunpack.c.0.s8 %v2622
        %v2624 = vlaneseq
        %v2625 = vshrl.u32 %v2624, 7
        %v2626 = vsub.s32 %v2623, %v2625
        %v2627 = vrot.slane %v2619, %v2626
        %v2629 = vunpack.c.l.s4 1934713408
        %v2630 = vunpack.c.0.s8 %v2629
        %v2631 = vlaneseq
        %v2632 = vshrl.u32 %v2631, 7
        %v2633 = vsub.s32 %v2630, %v2632
        %v2634 = vrot.slane %v2620, %v2633
        %v2635 = vcombine.low %v2611, %v2627
        %v2636 = vcombine.high %v2611, %v2627
        %v2637 = vcombine.low %v2618, %v2634
        %v2638 = vcombine.high %v2618, %v2634
        %v2639 = vcombine.low %v2543, %v2550
        %v2641 = vunpack.c.l.s4 1983009808
        %v2642 = vunpack.c.0.s8 %v2641
        %v2643 = vlaneseq
        %v2644 = vshrl.u32 %v2643, 7
        %v2645 = vsub.s32 %v2642, %v2644
        %v2646 = vrot.slane %v2639, %v2645
        %v2647 = vcombine.low %v2567, %v2568
        %v2649 = vunpack.c.l.s4 1983009808
        %v2650 = vunpack.c.0.s8 %v2649
        %v2651 = vlaneseq
        %v2652 = vshrl.u32 %v2651, 7
        %v2653 = vsub.s32 %v2650, %v2652
        %v2654 = vrot.slane %v2647, %v2653
        %v2655 = vcombine.low %v2559, %v2566
        %v2657 = vunpack.c.l.s4 1983009808
        %v2658 = vunpack.c.0.s8 %v2657
        %v2659 = vlaneseq
        %v2660 = vshrl.u32 %v2659, 7
        %v2661 = vsub.s32 %v2658, %v2660
        %v2662 = vrot.slane %v2655, %v2661
        %v2663 = vcombine.low %v2569, %v2570
        %v2665 = vunpack.c.l.s4 1983009808
        %v2666 = vunpack.c.0.s8 %v2665
        %v2667 = vlaneseq
        %v2668 = vshrl.u32 %v2667, 7
        %v2669 = vsub.s32 %v2666, %v2668
        %v2670 = vrot.slane %v2663, %v2669
        %v2671 = vcombine.low %v2646, %v2654
        %v2672 = vcombine.high %v2646, %v2654
        %v2674 = vunpack.c.l.s4 1934713408
        %v2675 = vunpack.c.0.s8 %v2674
        %v2676 = vlaneseq
        %v2677 = vshrl.u32 %v2676, 7
        %v2678 = vsub.s32 %v2675, %v2677
        %v2679 = vrot.slane %v2671, %v2678
        %v2681 = vunpack.c.l.s4 1934713408
        %v2682 = vunpack.c.0.s8 %v2681
        %v2683 = vlaneseq
        %v2684 = vshrl.u32 %v2683, 7
        %v2685 = vsub.s32 %v2682, %v2684
        %v2686 = vrot.slane %v2672, %v2685
        %v2687 = vcombine.low %v2662, %v2670
        %v2688 = vcombine.high %v2662, %v2670
        %v2690 = vunpack.c.l.s4 1934713408
        %v2691 = vunpack.c.0.s8 %v2690
        %v2692 = vlaneseq
        %v2693 = vshrl.u32 %v2692, 7
        %v2694 = vsub.s32 %v2691, %v2693
        %v2695 = vrot.slane %v2687, %v2694
        %v2697 = vunpack.c.l.s4 1934713408
        %v2698 = vunpack.c.0.s8 %v2697
        %v2699 = vlaneseq
        %v2700 = vshrl.u32 %v2699, 7
        %v2701 = vsub.s32 %v2698, %v2700
        %v2702 = vrot.slane %v2688, %v2701
        %v2703 = vcombine.low %v2679, %v2695
        %v2704 = vcombine.high %v2679, %v2695
        %v2705 = vcombine.low %v2686, %v2702
        %v2706 = vcombine.high %v2686, %v2702
        %2709 = vrot.lane.b32.xlu0 %v2636, 32
        %v2710 = vpop.permute.xlu0 %2709
        %2711 = vrot.lane.b32.xlu0 %v2704, 32
        %v2712 = vpop.permute.xlu0 %2711
        %2717 = vrot.lane.b32.xlu0 %v2637, 64
        %v2718 = vpop.permute.xlu0 %2717
        %2719 = vrot.lane.b32.xlu0 %v2705, 64
        %v2720 = vpop.permute.xlu0 %2719
        %2725 = vrot.lane.b32.xlu0 %v2638, 96
        %v2726 = vpop.permute.xlu0 %2725
        %2727 = vrot.lane.b32.xlu0 %v2706, 96
        %v2728 = vpop.permute.xlu0 %2727
        %v2731 = vsel %vm1977, %v2635, %v2710
        %v2732 = vsel %vm1977, %v2703, %v2712
        %vm2733 = vcmask 523264
        %v2734 = vsel %vm2733, %v2731, %v2718
        %v2735 = vsel %vm2733, %v2732, %v2720
        %vm2736 = vcmask 785408
        %v2737 = vsel %vm2736, %v2734, %v2726
        %v2738 = vsel %vm2736, %v2735, %v2728
        %v2739 = vpack.c.bf16 %v2738, %v2737
        %v2740 = vld [vmem:[%s647] sm:$0xf]
        %v2741 = vld [vmem:[%s647 + $0x4] sm:$0xf]
        %v2742 = vld [vmem:[%s647 + $0x8] sm:$0xf]
        %v2743 = vld [vmem:[%s647 + $0xc] sm:$0xf]
        %v2744 = vld [vmem:[%s647 + $0x10] sm:$0xf]
        %v2745 = vld [vmem:[%s647 + $0x14] sm:$0xf]
        %v2746 = vld [vmem:[%s647 + $0x18] sm:$0xf]
        %v2747 = vld [vmem:[%s647 + $0x1c] sm:$0xf]
        %v2748 = vld [vmem:[%s647 + $0x20] sm:$0xf]
        %v2749 = vld [vmem:[%s647 + $0x24] sm:$0xf]
        %v2750 = vld [vmem:[%s647 + $0x28] sm:$0xf]
        %v2751 = vld [vmem:[%s647 + $0x2c] sm:$0xf]
        %v2752 = vld [vmem:[%s647 + $0x30] sm:$0xf]
        %v2753 = vld [vmem:[%s647 + $0x34] sm:$0xf]
        %v2754 = vld [vmem:[%s647 + $0x38] sm:$0xf]
        %v2755 = vld [vmem:[%s647 + $0x3c] sm:$0xf]
        %v2756 = vld [vmem:[%s774] sm:$0x1]
        %v2758 = vlaneseq
        %v2759 = vshrl.u32 %v2758, 7
        %v2760 = vsub.s32 0, %v2759
        %v2761 = vrot.slane %v2756, %v2760
        %v2779 = vunpack.c.l.b16 %v2740
        %v2780 = vunpack.c.l.b16 %v2741
        %v2781 = vunpack.c.l.b16 %v2742
        %v2782 = vunpack.c.l.b16 %v2743
        %v2783 = vunpack.c.l.b16 %v2744
        %v2784 = vunpack.c.l.b16 %v2745
        %v2785 = vunpack.c.l.b16 %v2746
        %v2786 = vunpack.c.l.b16 %v2747
        %v2787 = vunpack.c.l.b16 %v2748
        %v2788 = vunpack.c.l.b16 %v2749
        %v2789 = vunpack.c.l.b16 %v2750
        %v2790 = vunpack.c.l.b16 %v2751
        %v2791 = vunpack.c.l.b16 %v2752
        %v2792 = vunpack.c.l.b16 %v2753
        %v2793 = vunpack.c.l.b16 %v2754
        %v2794 = vunpack.c.l.b16 %v2755
        %v2795 = vpack.c.b16 %v2780, %v2779
        %v2796 = vpack.c.b16 %v2782, %v2781
        %v2797 = vpack.c.b16 %v2784, %v2783
        %v2798 = vpack.c.b16 %v2786, %v2785
        %v2799 = vpack.c.b16 %v2788, %v2787
        %v2800 = vpack.c.b16 %v2790, %v2789
        %v2801 = vpack.c.b16 %v2792, %v2791
        %v2802 = vpack.c.b16 %v2794, %v2793
        %2811 = vmatprep.subr.bf16.mxu0 0
        %2812 = vmatpush1.bf16.msra.mxu0 %v2802
        %2813 = vmatprep.subr.bf16.mxu0 0
        %2814 = vmatpush1.bf16.msra.mxu0 %v2801
        %2815 = vmatprep.subr.bf16.mxu0 0
        %2816 = vmatpush1.bf16.msra.mxu0 %v2800
        %2817 = vmatprep.subr.bf16.mxu0 0
        %2818 = vmatpush1.bf16.msra.mxu0 %v2799
        %2819 = vmatprep.subr.bf16.mxu0 0
        %2820 = vmatpush1.bf16.msra.mxu0 %v2798
        %2821 = vmatprep.subr.bf16.mxu0 0
        %2822 = vmatpush1.bf16.msra.mxu0 %v2797
        %2823 = vmatprep.subr.bf16.mxu0 0
        %2824 = vmatpush1.bf16.msra.mxu0 %v2796
        %2825 = vmatprep.subr.bf16.mxu0 0
        %2826 = vmatpush1.bf16.msra.mxu0 %v2795
        %2827 = vmatprep.subr.bf16.mxu0 0
        %2828 = vmatpush2.bf16.msra.mxu0 0
        %2829 = vmatprep.subr.bf16.mxu0 0
        %2830 = vmatpush2.bf16.msra.mxu0 0
        %2831 = vmatprep.subr.bf16.mxu0 0
        %2832 = vmatpush2.bf16.msra.mxu0 0
        %2833 = vmatprep.subr.bf16.mxu0 0
        %2834 = vmatpush2.bf16.msra.mxu0 0
        %2835 = vmatprep.subr.bf16.mxu0 0
        %2836 = vmatpush2.bf16.msra.mxu0 0
        %2837 = vmatprep.subr.bf16.mxu0 0
        %2838 = vmatpush2.bf16.msra.mxu0 0
        %2839 = vmatprep.subr.bf16.mxu0 0
        %2840 = vmatpush2.bf16.msra.mxu0 0
        %2841 = vmatprep.subr.bf16.mxu0 0
        %2842 = vmatpush2.bf16.msra.mxu0 0
        %2843 = vmatprep.mubr.bf16.mxu0 0
        %2844 = vmatmul.mubr.bf16.gmra.mxu0 %v2739
        %v2845 = vpop.f32.mrf.mxu0
        %v2846 = vadd.f32 %v2761, %v2845
        %v2847 = vpop.f32.mrf.mxu0
        %v2848 = vpop.f32.mrf.mxu0
        %v2849 = vadd.f32 %v2761, %v2848
        %v2850 = vpop.f32.mrf.mxu0
        %2851 = vdwg.mxu0
        %v2852 = vadd.f32 %v799, %v2846
        %v2853 = vadd.f32 %v800, %v2849
        %v2854 = vld [vmem:[%s777] sm:$0x1]
        %v2855 = vld [vmem:[%s655] sm:$0x1]
        %2856 = vadd.xlane.f32.xlu0 %v2852
        %v2857 = vpop.xlane.xlu0 %2856
        %2858 = vadd.xlane.f32.xlu0 %v2853
        %v2859 = vpop.xlane.xlu0 %2858
        %v2860 = vmul.f32 %v2857, %v807
        %v2861 = vmul.f32 %v2859, %v807
        %v2862 = vsub.f32 %v2852, %v2860
        %v2863 = vsub.f32 %v2853, %v2861
        %v2864 = vmul.f32 %v2862, %v2862
        %v2865 = vmul.f32 %v2863, %v2863
        %2866 = vadd.xlane.f32.xlu0 %v2864
        %v2867 = vpop.xlane.xlu0 %2866
        %2868 = vadd.xlane.f32.xlu0 %v2865
        %v2869 = vpop.xlane.xlu0 %2868
        %v2870 = vmul.f32 %v2867, %v807
        %v2871 = vmul.f32 %v2869, %v807
        %v2872 = vadd.f32 %v2870, 1e-05
        %v2873 = vadd.f32 %v2871, 1e-05
        %v2874 = vrsqrt.pop %v2872
        %v2875 = vrsqrt.pop %v2873
        %v2876 = vmul.f32 %v2862, %v2874
        %v2877 = vmul.f32 %v2863, %v2875
        %v2879 = vlaneseq
        %v2880 = vshrl.u32 %v2879, 7
        %v2881 = vsub.s32 0, %v2880
        %v2882 = vrot.slane %v2854, %v2881
        %v2884 = vmul.f32 %v2876, %v2882
        %v2885 = vmul.f32 %v2877, %v2882
        %v2887 = vlaneseq
        %v2888 = vshrl.u32 %v2887, 7
        %v2889 = vsub.s32 0, %v2888
        %v2890 = vrot.slane %v2855, %v2889
        %v2892 = vadd.f32 %v2884, %v2890
        %v2893 = vadd.f32 %v2885, %v2890
        %v2894 = vpack.c.bf16 %v2893, %v2892
        %v2895 = vld [vmem:[%s664] sm:$0xff]
        %v2896 = vld [vmem:[%s664 + $0x8] sm:$0xff]
        %v2897 = vld [vmem:[%s664 + $0x10] sm:$0xff]
        %v2898 = vld [vmem:[%s664 + $0x18] sm:$0xff]
        %v2899 = vld [vmem:[%s664 + $0x20] sm:$0xff]
        %v2900 = vld [vmem:[%s664 + $0x28] sm:$0xff]
        %v2901 = vld [vmem:[%s664 + $0x30] sm:$0xff]
        %v2902 = vld [vmem:[%s664 + $0x38] sm:$0xff]
        %v2903 = vld [vmem:[%s664 + $0x40] sm:$0xff]
        %v2904 = vld [vmem:[%s664 + $0x48] sm:$0xff]
        %v2905 = vld [vmem:[%s664 + $0x50] sm:$0xff]
        %v2906 = vld [vmem:[%s664 + $0x58] sm:$0xff]
        %v2907 = vld [vmem:[%s664 + $0x60] sm:$0xff]
        %v2908 = vld [vmem:[%s664 + $0x68] sm:$0xff]
        %v2909 = vld [vmem:[%s664 + $0x70] sm:$0xff]
        %v2910 = vld [vmem:[%s664 + $0x78] sm:$0xff]
        %v2911 = vld [vmem:[%s664 + $0x80] sm:$0xff]
        %v2912 = vld [vmem:[%s664 + $0x88] sm:$0xff]
        %v2913 = vld [vmem:[%s664 + $0x90] sm:$0xff]
        %v2914 = vld [vmem:[%s664 + $0x98] sm:$0xff]
        %v2915 = vld [vmem:[%s664 + $0xa0] sm:$0xff]
        %v2916 = vld [vmem:[%s664 + $0xa8] sm:$0xff]
        %v2917 = vld [vmem:[%s664 + $0xb0] sm:$0xff]
        %v2918 = vld [vmem:[%s664 + $0xb8] sm:$0xff]
        %v2919 = vld [vmem:[%s664 + $0xc0] sm:$0xff]
        %v2920 = vld [vmem:[%s664 + $0xc8] sm:$0xff]
        %v2921 = vld [vmem:[%s664 + $0xd0] sm:$0xff]
        %v2922 = vld [vmem:[%s664 + $0xd8] sm:$0xff]
        %v2923 = vld [vmem:[%s664 + $0xe0] sm:$0xff]
        %v2924 = vld [vmem:[%s664 + $0xe8] sm:$0xff]
        %v2925 = vld [vmem:[%s664 + $0xf0] sm:$0xff]
        %v2926 = vld [vmem:[%s664 + $0xf8] sm:$0xff]
        %v2927 = vld [vmem:[%s781] sm:$0xf]
        %v2929 = vlaneseq
        %v2930 = vshrl.u32 %v2929, 7
        %v2931 = vsub.s32 0, %v2930
        %v2932 = vrot.slane %v2927, %v2931
        %v2933 = vlaneseq
        %v2934 = vshrl.u32 %v2933, 7
        %v2935 = vsub.s32 1, %v2934
        %v2936 = vrot.slane %v2927, %v2935
        %v2937 = vlaneseq
        %v2938 = vshrl.u32 %v2937, 7
        %v2939 = vsub.s32 2, %v2938
        %v2940 = vrot.slane %v2927, %v2939
        %v2941 = vlaneseq
        %v2942 = vshrl.u32 %v2941, 7
        %v2943 = vsub.s32 3, %v2942
        %v2944 = vrot.slane %v2927, %v2943
        %v2981 = vunpack.c.l.b16 %v2895
        %v2982 = vunpack.c.h.b16 %v2895
        %v2983 = vunpack.c.l.b16 %v2896
        %v2984 = vunpack.c.h.b16 %v2896
        %v2985 = vunpack.c.l.b16 %v2897
        %v2986 = vunpack.c.h.b16 %v2897
        %v2987 = vunpack.c.l.b16 %v2898
        %v2988 = vunpack.c.h.b16 %v2898
        %v2989 = vunpack.c.l.b16 %v2899
        %v2990 = vunpack.c.h.b16 %v2899
        %v2991 = vunpack.c.l.b16 %v2900
        %v2992 = vunpack.c.h.b16 %v2900
        %v2993 = vunpack.c.l.b16 %v2901
        %v2994 = vunpack.c.h.b16 %v2901
        %v2995 = vunpack.c.l.b16 %v2902
        %v2996 = vunpack.c.h.b16 %v2902
        %v2997 = vunpack.c.l.b16 %v2903
        %v2998 = vunpack.c.h.b16 %v2903
        %v2999 = vunpack.c.l.b16 %v2904
        %v3000 = vunpack.c.h.b16 %v2904
        %v3001 = vunpack.c.l.b16 %v2905
        %v3002 = vunpack.c.h.b16 %v2905
        %v3003 = vunpack.c.l.b16 %v2906
        %v3004 = vunpack.c.h.b16 %v2906
        %v3005 = vunpack.c.l.b16 %v2907
        %v3006 = vunpack.c.h.b16 %v2907
        %v3007 = vunpack.c.l.b16 %v2908
        %v3008 = vunpack.c.h.b16 %v2908
        %v3009 = vunpack.c.l.b16 %v2909
        %v3010 = vunpack.c.h.b16 %v2909
        %v3011 = vunpack.c.l.b16 %v2910
        %v3012 = vunpack.c.h.b16 %v2910
        %v3013 = vunpack.c.l.b16 %v2911
        %v3014 = vunpack.c.h.b16 %v2911
        %v3015 = vunpack.c.l.b16 %v2912
        %v3016 = vunpack.c.h.b16 %v2912
        %v3017 = vunpack.c.l.b16 %v2913
        %v3018 = vunpack.c.h.b16 %v2913
        %v3019 = vunpack.c.l.b16 %v2914
        %v3020 = vunpack.c.h.b16 %v2914
        %v3021 = vunpack.c.l.b16 %v2915
        %v3022 = vunpack.c.h.b16 %v2915
        %v3023 = vunpack.c.l.b16 %v2916
        %v3024 = vunpack.c.h.b16 %v2916
        %v3025 = vunpack.c.l.b16 %v2917
        %v3026 = vunpack.c.h.b16 %v2917
        %v3027 = vunpack.c.l.b16 %v2918
        %v3028 = vunpack.c.h.b16 %v2918
        %v3029 = vunpack.c.l.b16 %v2919
        %v3030 = vunpack.c.h.b16 %v2919
        %v3031 = vunpack.c.l.b16 %v2920
        %v3032 = vunpack.c.h.b16 %v2920
        %v3033 = vunpack.c.l.b16 %v2921
        %v3034 = vunpack.c.h.b16 %v2921
        %v3035 = vunpack.c.l.b16 %v2922
        %v3036 = vunpack.c.h.b16 %v2922
        %v3037 = vunpack.c.l.b16 %v2923
        %v3038 = vunpack.c.h.b16 %v2923
        %v3039 = vunpack.c.l.b16 %v2924
        %v3040 = vunpack.c.h.b16 %v2924
        %v3041 = vunpack.c.l.b16 %v2925
        %v3042 = vunpack.c.h.b16 %v2925
        %v3043 = vunpack.c.l.b16 %v2926
        %v3044 = vunpack.c.h.b16 %v2926
        %v3045 = vpack.c.b16 %v2985, %v2981
        %v3046 = vpack.c.b16 %v2986, %v2982
        %v3047 = vpack.c.b16 %v2987, %v2983
        %v3048 = vpack.c.b16 %v2988, %v2984
        %v3049 = vpack.c.b16 %v2993, %v2989
        %v3050 = vpack.c.b16 %v2994, %v2990
        %v3051 = vpack.c.b16 %v2995, %v2991
        %v3052 = vpack.c.b16 %v2996, %v2992
        %v3053 = vpack.c.b16 %v3001, %v2997
        %v3054 = vpack.c.b16 %v3002, %v2998
        %v3055 = vpack.c.b16 %v3003, %v2999
        %v3056 = vpack.c.b16 %v3004, %v3000
        %v3057 = vpack.c.b16 %v3009, %v3005
        %v3058 = vpack.c.b16 %v3010, %v3006
        %v3059 = vpack.c.b16 %v3011, %v3007
        %v3060 = vpack.c.b16 %v3012, %v3008
        %v3061 = vpack.c.b16 %v3017, %v3013
        %v3062 = vpack.c.b16 %v3018, %v3014
        %v3063 = vpack.c.b16 %v3019, %v3015
        %v3064 = vpack.c.b16 %v3020, %v3016
        %v3065 = vpack.c.b16 %v3025, %v3021
        %v3066 = vpack.c.b16 %v3026, %v3022
        %v3067 = vpack.c.b16 %v3027, %v3023
        %v3068 = vpack.c.b16 %v3028, %v3024
        %v3069 = vpack.c.b16 %v3033, %v3029
        %v3070 = vpack.c.b16 %v3034, %v3030
        %v3071 = vpack.c.b16 %v3035, %v3031
        %v3072 = vpack.c.b16 %v3036, %v3032
        %v3073 = vpack.c.b16 %v3041, %v3037
        %v3074 = vpack.c.b16 %v3042, %v3038
        %v3075 = vpack.c.b16 %v3043, %v3039
        %v3076 = vpack.c.b16 %v3044, %v3040
        %3109 = vmatprep.subr.bf16.mxu0 %v3074
        %3110 = vmatpush1.bf16.msra.mxu0 %v3073
        %3111 = vmatprep.subr.bf16.mxu0 %v3070
        %3112 = vmatpush1.bf16.msra.mxu0 %v3069
        %3113 = vmatprep.subr.bf16.mxu0 %v3066
        %3114 = vmatpush1.bf16.msra.mxu0 %v3065
        %3115 = vmatprep.subr.bf16.mxu0 %v3062
        %3116 = vmatpush1.bf16.msra.mxu0 %v3061
        %3117 = vmatprep.subr.bf16.mxu0 %v3058
        %3118 = vmatpush1.bf16.msra.mxu0 %v3057
        %3119 = vmatprep.subr.bf16.mxu0 %v3054
        %3120 = vmatpush1.bf16.msra.mxu0 %v3053
        %3121 = vmatprep.subr.bf16.mxu0 %v3050
        %3122 = vmatpush1.bf16.msra.mxu0 %v3049
        %3123 = vmatprep.subr.bf16.mxu0 %v3046
        %3124 = vmatpush1.bf16.msra.mxu0 %v3045
        %3125 = vmatprep.subr.bf16.mxu0 0
        %3126 = vmatpush2.bf16.msra.mxu0 0
        %3127 = vmatprep.subr.bf16.mxu0 0
        %3128 = vmatpush2.bf16.msra.mxu0 0
        %3129 = vmatprep.subr.bf16.mxu0 0
        %3130 = vmatpush2.bf16.msra.mxu0 0
        %3131 = vmatprep.subr.bf16.mxu0 0
        %3132 = vmatpush2.bf16.msra.mxu0 0
        %3133 = vmatprep.subr.bf16.mxu0 0
        %3134 = vmatpush2.bf16.msra.mxu0 0
        %3135 = vmatprep.subr.bf16.mxu0 0
        %3136 = vmatpush2.bf16.msra.mxu0 0
        %3137 = vmatprep.subr.bf16.mxu0 0
        %3138 = vmatpush2.bf16.msra.mxu0 0
        %3139 = vmatprep.subr.bf16.mxu0 0
        %3140 = vmatpush2.bf16.msra.mxu0 0
        %3141 = vmatprep.mubr.bf16.mxu0 0
        %3142 = vmatmul.mubr.bf16.gmra.mxu0 %v2894
        %v3143 = vpop.f32.mrf.mxu0
        %v3144 = vadd.f32 %v2932, %v3143
        %v3145 = vpop.f32.mrf.mxu0
        %v3146 = vadd.f32 %v2936, %v3145
        %v3147 = vpop.f32.mrf.mxu0
        %v3148 = vadd.f32 %v2932, %v3147
        %v3149 = vpop.f32.mrf.mxu0
        %v3150 = vadd.f32 %v2936, %v3149
        %3151 = vdwg.mxu0
        %3152 = vmatprep.subr.bf16.mxu0 %v3076
        %3153 = vmatpush1.bf16.msra.mxu0 %v3075
        %3154 = vmatprep.subr.bf16.mxu0 %v3072
        %3155 = vmatpush1.bf16.msra.mxu0 %v3071
        %3156 = vmatprep.subr.bf16.mxu0 %v3068
        %3157 = vmatpush1.bf16.msra.mxu0 %v3067
        %3158 = vmatprep.subr.bf16.mxu0 %v3064
        %3159 = vmatpush1.bf16.msra.mxu0 %v3063
        %3160 = vmatprep.subr.bf16.mxu0 %v3060
        %3161 = vmatpush1.bf16.msra.mxu0 %v3059
        %3162 = vmatprep.subr.bf16.mxu0 %v3056
        %3163 = vmatpush1.bf16.msra.mxu0 %v3055
        %3164 = vmatprep.subr.bf16.mxu0 %v3052
        %3165 = vmatpush1.bf16.msra.mxu0 %v3051
        %3166 = vmatprep.subr.bf16.mxu0 %v3048
        %3167 = vmatpush1.bf16.msra.mxu0 %v3047
        %3168 = vmatprep.subr.bf16.mxu0 0
        %3169 = vmatpush2.bf16.msra.mxu0 0
        %3170 = vmatprep.subr.bf16.mxu0 0
        %3171 = vmatpush2.bf16.msra.mxu0 0
        %3172 = vmatprep.subr.bf16.mxu0 0
        %3173 = vmatpush2.bf16.msra.mxu0 0
        %3174 = vmatprep.subr.bf16.mxu0 0
        %3175 = vmatpush2.bf16.msra.mxu0 0
        %3176 = vmatprep.subr.bf16.mxu0 0
        %3177 = vmatpush2.bf16.msra.mxu0 0
        %3178 = vmatprep.subr.bf16.mxu0 0
        %3179 = vmatpush2.bf16.msra.mxu0 0
        %3180 = vmatprep.subr.bf16.mxu0 0
        %3181 = vmatpush2.bf16.msra.mxu0 0
        %3182 = vmatprep.subr.bf16.mxu0 0
        %3183 = vmatpush2.bf16.msra.mxu0 0
        %3184 = vmatprep.mubr.bf16.mxu0 0
        %3185 = vmatmul.mubr.bf16.gmra.mxu0 %v2894
        %v3186 = vpop.f32.mrf.mxu0
        %v3187 = vadd.f32 %v2940, %v3186
        %v3188 = vpop.f32.mrf.mxu0
        %v3189 = vadd.f32 %v2944, %v3188
        %v3190 = vpop.f32.mrf.mxu0
        %v3191 = vadd.f32 %v2940, %v3190
        %v3192 = vpop.f32.mrf.mxu0
        %v3193 = vadd.f32 %v2944, %v3192
        %3194 = vdwg.mxu0
        %v3195 = vmul.f32 %v3144, 0.5
        %v3196 = vmul.f32 %v3146, 0.5
        %v3197 = vmul.f32 %v3187, 0.5
        %v3198 = vmul.f32 %v3189, 0.5
        %v3199 = vmul.f32 %v3148, 0.5
        %v3200 = vmul.f32 %v3150, 0.5
        %v3201 = vmul.f32 %v3191, 0.5
        %v3202 = vmul.f32 %v3193, 0.5
        %v3203 = vmul.f32 %v3144, 0.70710677
        %v3204 = vmul.f32 %v3146, 0.70710677
        %v3205 = vmul.f32 %v3187, 0.70710677
        %v3206 = vmul.f32 %v3189, 0.70710677
        %v3207 = vmul.f32 %v3148, 0.70710677
        %v3208 = vmul.f32 %v3150, 0.70710677
        %v3209 = vmul.f32 %v3191, 0.70710677
        %v3210 = vmul.f32 %v3193, 0.70710677
        %v3211 = verf.f32.pop %v3203
        %v3212 = verf.f32.pop %v3204
        %v3213 = verf.f32.pop %v3205
        %v3214 = verf.f32.pop %v3206
        %v3215 = verf.f32.pop %v3207
        %v3216 = verf.f32.pop %v3208
        %v3217 = verf.f32.pop %v3209
        %v3218 = verf.f32.pop %v3210
        %v3219 = vadd.f32 %v3211, 1.0
        %v3220 = vadd.f32 %v3212, 1.0
        %v3221 = vadd.f32 %v3213, 1.0
        %v3222 = vadd.f32 %v3214, 1.0
        %v3223 = vadd.f32 %v3215, 1.0
        %v3224 = vadd.f32 %v3216, 1.0
        %v3225 = vadd.f32 %v3217, 1.0
        %v3226 = vadd.f32 %v3218, 1.0
        %v3227 = vmul.f32 %v3195, %v3219
        %v3228 = vmul.f32 %v3196, %v3220
        %v3229 = vmul.f32 %v3197, %v3221
        %v3230 = vmul.f32 %v3198, %v3222
        %v3231 = vmul.f32 %v3199, %v3223
        %v3232 = vmul.f32 %v3200, %v3224
        %v3233 = vmul.f32 %v3201, %v3225
        %v3234 = vmul.f32 %v3202, %v3226
        %v3235 = vpack.c.bf16 %v3231, %v3227
        %v3236 = vpack.c.bf16 %v3232, %v3228
        %v3237 = vpack.c.bf16 %v3233, %v3229
        %v3238 = vpack.c.bf16 %v3234, %v3230
        %v3239 = vld [vmem:[%s673] sm:$0xf]
        %v3240 = vld [vmem:[%s673 + $0x4] sm:$0xf]
        %v3241 = vld [vmem:[%s673 + $0x8] sm:$0xf]
        %v3242 = vld [vmem:[%s673 + $0xc] sm:$0xf]
        %v3243 = vld [vmem:[%s673 + $0x10] sm:$0xf]
        %v3244 = vld [vmem:[%s673 + $0x14] sm:$0xf]
        %v3245 = vld [vmem:[%s673 + $0x18] sm:$0xf]
        %v3246 = vld [vmem:[%s673 + $0x1c] sm:$0xf]
        %v3247 = vld [vmem:[%s673 + $0x20] sm:$0xf]
        %v3248 = vld [vmem:[%s673 + $0x24] sm:$0xf]
        %v3249 = vld [vmem:[%s673 + $0x28] sm:$0xf]
        %v3250 = vld [vmem:[%s673 + $0x2c] sm:$0xf]
        %v3251 = vld [vmem:[%s673 + $0x30] sm:$0xf]
        %v3252 = vld [vmem:[%s673 + $0x34] sm:$0xf]
        %v3253 = vld [vmem:[%s673 + $0x38] sm:$0xf]
        %v3254 = vld [vmem:[%s673 + $0x3c] sm:$0xf]
        %v3255 = vld [vmem:[%s673 + $0x40] sm:$0xf]
        %v3256 = vld [vmem:[%s673 + $0x44] sm:$0xf]
        %v3257 = vld [vmem:[%s673 + $0x48] sm:$0xf]
        %v3258 = vld [vmem:[%s673 + $0x4c] sm:$0xf]
        %v3259 = vld [vmem:[%s673 + $0x50] sm:$0xf]
        %v3260 = vld [vmem:[%s673 + $0x54] sm:$0xf]
        %v3261 = vld [vmem:[%s673 + $0x58] sm:$0xf]
        %v3262 = vld [vmem:[%s673 + $0x5c] sm:$0xf]
        %v3263 = vld [vmem:[%s673 + $0x60] sm:$0xf]
        %v3264 = vld [vmem:[%s673 + $0x64] sm:$0xf]
        %v3265 = vld [vmem:[%s673 + $0x68] sm:$0xf]
        %v3266 = vld [vmem:[%s673 + $0x6c] sm:$0xf]
        %v3267 = vld [vmem:[%s673 + $0x70] sm:$0xf]
        %v3268 = vld [vmem:[%s673 + $0x74] sm:$0xf]
        %v3269 = vld [vmem:[%s673 + $0x78] sm:$0xf]
        %v3270 = vld [vmem:[%s673 + $0x7c] sm:$0xf]
        %v3271 = vld [vmem:[%s673 + $0x80] sm:$0xf]
        %v3272 = vld [vmem:[%s673 + $0x84] sm:$0xf]
        %v3273 = vld [vmem:[%s673 + $0x88] sm:$0xf]
        %v3274 = vld [vmem:[%s673 + $0x8c] sm:$0xf]
        %v3275 = vld [vmem:[%s673 + $0x90] sm:$0xf]
        %v3276 = vld [vmem:[%s673 + $0x94] sm:$0xf]
        %v3277 = vld [vmem:[%s673 + $0x98] sm:$0xf]
        %v3278 = vld [vmem:[%s673 + $0x9c] sm:$0xf]
        %v3279 = vld [vmem:[%s673 + $0xa0] sm:$0xf]
        %v3280 = vld [vmem:[%s673 + $0xa4] sm:$0xf]
        %v3281 = vld [vmem:[%s673 + $0xa8] sm:$0xf]
        %v3282 = vld [vmem:[%s673 + $0xac] sm:$0xf]
        %v3283 = vld [vmem:[%s673 + $0xb0] sm:$0xf]
        %v3284 = vld [vmem:[%s673 + $0xb4] sm:$0xf]
        %v3285 = vld [vmem:[%s673 + $0xb8] sm:$0xf]
        %v3286 = vld [vmem:[%s673 + $0xbc] sm:$0xf]
        %v3287 = vld [vmem:[%s673 + $0xc0] sm:$0xf]
        %v3288 = vld [vmem:[%s673 + $0xc4] sm:$0xf]
        %v3289 = vld [vmem:[%s673 + $0xc8] sm:$0xf]
        %v3290 = vld [vmem:[%s673 + $0xcc] sm:$0xf]
        %v3291 = vld [vmem:[%s673 + $0xd0] sm:$0xf]
        %v3292 = vld [vmem:[%s673 + $0xd4] sm:$0xf]
        %v3293 = vld [vmem:[%s673 + $0xd8] sm:$0xf]
        %v3294 = vld [vmem:[%s673 + $0xdc] sm:$0xf]
        %v3295 = vld [vmem:[%s673 + $0xe0] sm:$0xf]
        %v3296 = vld [vmem:[%s673 + $0xe4] sm:$0xf]
        %v3297 = vld [vmem:[%s673 + $0xe8] sm:$0xf]
        %v3298 = vld [vmem:[%s673 + $0xec] sm:$0xf]
        %v3299 = vld [vmem:[%s673 + $0xf0] sm:$0xf]
        %v3300 = vld [vmem:[%s673 + $0xf4] sm:$0xf]
        %v3301 = vld [vmem:[%s673 + $0xf8] sm:$0xf]
        %v3302 = vld [vmem:[%s673 + $0xfc] sm:$0xf]
        %v3303 = vld [vmem:[%s784] sm:$0x1]
        %v3305 = vlaneseq
        %v3306 = vshrl.u32 %v3305, 7
        %v3307 = vsub.s32 0, %v3306
        %v3308 = vrot.slane %v3303, %v3307
        %v3374 = vunpack.c.l.b16 %v3239
        %v3375 = vunpack.c.l.b16 %v3240
        %v3376 = vunpack.c.l.b16 %v3241
        %v3377 = vunpack.c.l.b16 %v3242
        %v3378 = vunpack.c.l.b16 %v3243
        %v3379 = vunpack.c.l.b16 %v3244
        %v3380 = vunpack.c.l.b16 %v3245
        %v3381 = vunpack.c.l.b16 %v3246
        %v3382 = vunpack.c.l.b16 %v3247
        %v3383 = vunpack.c.l.b16 %v3248
        %v3384 = vunpack.c.l.b16 %v3249
        %v3385 = vunpack.c.l.b16 %v3250
        %v3386 = vunpack.c.l.b16 %v3251
        %v3387 = vunpack.c.l.b16 %v3252
        %v3388 = vunpack.c.l.b16 %v3253
        %v3389 = vunpack.c.l.b16 %v3254
        %v3390 = vunpack.c.l.b16 %v3255
        %v3391 = vunpack.c.l.b16 %v3256
        %v3392 = vunpack.c.l.b16 %v3257
        %v3393 = vunpack.c.l.b16 %v3258
        %v3394 = vunpack.c.l.b16 %v3259
        %v3395 = vunpack.c.l.b16 %v3260
        %v3396 = vunpack.c.l.b16 %v3261
        %v3397 = vunpack.c.l.b16 %v3262
        %v3398 = vunpack.c.l.b16 %v3263
        %v3399 = vunpack.c.l.b16 %v3264
        %v3400 = vunpack.c.l.b16 %v3265
        %v3401 = vunpack.c.l.b16 %v3266
        %v3402 = vunpack.c.l.b16 %v3267
        %v3403 = vunpack.c.l.b16 %v3268
        %v3404 = vunpack.c.l.b16 %v3269
        %v3405 = vunpack.c.l.b16 %v3270
        %v3406 = vunpack.c.l.b16 %v3271
        %v3407 = vunpack.c.l.b16 %v3272
        %v3408 = vunpack.c.l.b16 %v3273
        %v3409 = vunpack.c.l.b16 %v3274
        %v3410 = vunpack.c.l.b16 %v3275
        %v3411 = vunpack.c.l.b16 %v3276
        %v3412 = vunpack.c.l.b16 %v3277
        %v3413 = vunpack.c.l.b16 %v3278
        %v3414 = vunpack.c.l.b16 %v3279
        %v3415 = vunpack.c.l.b16 %v3280
        %v3416 = vunpack.c.l.b16 %v3281
        %v3417 = vunpack.c.l.b16 %v3282
        %v3418 = vunpack.c.l.b16 %v3283
        %v3419 = vunpack.c.l.b16 %v3284
        %v3420 = vunpack.c.l.b16 %v3285
        %v3421 = vunpack.c.l.b16 %v3286
        %v3422 = vunpack.c.l.b16 %v3287
        %v3423 = vunpack.c.l.b16 %v3288
        %v3424 = vunpack.c.l.b16 %v3289
        %v3425 = vunpack.c.l.b16 %v3290
        %v3426 = vunpack.c.l.b16 %v3291
        %v3427 = vunpack.c.l.b16 %v3292
        %v3428 = vunpack.c.l.b16 %v3293
        %v3429 = vunpack.c.l.b16 %v3294
        %v3430 = vunpack.c.l.b16 %v3295
        %v3431 = vunpack.c.l.b16 %v3296
        %v3432 = vunpack.c.l.b16 %v3297
        %v3433 = vunpack.c.l.b16 %v3298
        %v3434 = vunpack.c.l.b16 %v3299
        %v3435 = vunpack.c.l.b16 %v3300
        %v3436 = vunpack.c.l.b16 %v3301
        %v3437 = vunpack.c.l.b16 %v3302
        %v3438 = vpack.c.b16 %v3375, %v3374
        %v3439 = vpack.c.b16 %v3377, %v3376
        %v3440 = vpack.c.b16 %v3379, %v3378
        %v3441 = vpack.c.b16 %v3381, %v3380
        %v3442 = vpack.c.b16 %v3383, %v3382
        %v3443 = vpack.c.b16 %v3385, %v3384
        %v3444 = vpack.c.b16 %v3387, %v3386
        %v3445 = vpack.c.b16 %v3389, %v3388
        %v3446 = vpack.c.b16 %v3391, %v3390
        %v3447 = vpack.c.b16 %v3393, %v3392
        %v3448 = vpack.c.b16 %v3395, %v3394
        %v3449 = vpack.c.b16 %v3397, %v3396
        %v3450 = vpack.c.b16 %v3399, %v3398
        %v3451 = vpack.c.b16 %v3401, %v3400
        %v3452 = vpack.c.b16 %v3403, %v3402
        %v3453 = vpack.c.b16 %v3405, %v3404
        %v3454 = vpack.c.b16 %v3407, %v3406
        %v3455 = vpack.c.b16 %v3409, %v3408
        %v3456 = vpack.c.b16 %v3411, %v3410
        %v3457 = vpack.c.b16 %v3413, %v3412
        %v3458 = vpack.c.b16 %v3415, %v3414
        %v3459 = vpack.c.b16 %v3417, %v3416
        %v3460 = vpack.c.b16 %v3419, %v3418
        %v3461 = vpack.c.b16 %v3421, %v3420
        %v3462 = vpack.c.b16 %v3423, %v3422
        %v3463 = vpack.c.b16 %v3425, %v3424
        %v3464 = vpack.c.b16 %v3427, %v3426
        %v3465 = vpack.c.b16 %v3429, %v3428
        %v3466 = vpack.c.b16 %v3431, %v3430
        %v3467 = vpack.c.b16 %v3433, %v3432
        %v3468 = vpack.c.b16 %v3435, %v3434
        %v3469 = vpack.c.b16 %v3437, %v3436
        %3502 = vmatprep.subr.bf16.mxu0 0
        %3503 = vmatpush1.bf16.msra.mxu0 %v3445
        %3504 = vmatprep.subr.bf16.mxu0 0
        %3505 = vmatpush1.bf16.msra.mxu0 %v3444
        %3506 = vmatprep.subr.bf16.mxu0 0
        %3507 = vmatpush1.bf16.msra.mxu0 %v3443
        %3508 = vmatprep.subr.bf16.mxu0 0
        %3509 = vmatpush1.bf16.msra.mxu0 %v3442
        %3510 = vmatprep.subr.bf16.mxu0 0
        %3511 = vmatpush1.bf16.msra.mxu0 %v3441
        %3512 = vmatprep.subr.bf16.mxu0 0
        %3513 = vmatpush1.bf16.msra.mxu0 %v3440
        %3514 = vmatprep.subr.bf16.mxu0 0
        %3515 = vmatpush1.bf16.msra.mxu0 %v3439
        %3516 = vmatprep.subr.bf16.mxu0 0
        %3517 = vmatpush1.bf16.msra.mxu0 %v3438
        %3518 = vmatprep.subr.bf16.mxu0 0
        %3519 = vmatpush2.bf16.msra.mxu0 %v3453
        %3520 = vmatprep.subr.bf16.mxu0 0
        %3521 = vmatpush2.bf16.msra.mxu0 %v3452
        %3522 = vmatprep.subr.bf16.mxu0 0
        %3523 = vmatpush2.bf16.msra.mxu0 %v3451
        %3524 = vmatprep.subr.bf16.mxu0 0
        %3525 = vmatpush2.bf16.msra.mxu0 %v3450
        %3526 = vmatprep.subr.bf16.mxu0 0
        %3527 = vmatpush2.bf16.msra.mxu0 %v3449
        %3528 = vmatprep.subr.bf16.mxu0 0
        %3529 = vmatpush2.bf16.msra.mxu0 %v3448
        %3530 = vmatprep.subr.bf16.mxu0 0
        %3531 = vmatpush2.bf16.msra.mxu0 %v3447
        %3532 = vmatprep.subr.bf16.mxu0 0
        %3533 = vmatpush2.bf16.msra.mxu0 %v3446
        %3534 = vmatprep.mubr.bf16.mxu0 %v3236
        %3535 = vmatmul.mubr.bf16.gmra.mxu0 %v3235
        %v3536 = vpop.f32.mrf.mxu0
        %v3537 = vadd.f32 %v3308, %v3536
        %v3538 = vpop.f32.mrf.mxu0
        %v3539 = vpop.f32.mrf.mxu0
        %v3540 = vadd.f32 %v3308, %v3539
        %v3541 = vpop.f32.mrf.mxu0
        %3542 = vdwg.mxu0
        %3543 = vmatprep.subr.bf16.mxu0 0
        %3544 = vmatpush1.bf16.msra.mxu0 %v3461
        %3545 = vmatprep.subr.bf16.mxu0 0
        %3546 = vmatpush1.bf16.msra.mxu0 %v3460
        %3547 = vmatprep.subr.bf16.mxu0 0
        %3548 = vmatpush1.bf16.msra.mxu0 %v3459
        %3549 = vmatprep.subr.bf16.mxu0 0
        %3550 = vmatpush1.bf16.msra.mxu0 %v3458
        %3551 = vmatprep.subr.bf16.mxu0 0
        %3552 = vmatpush1.bf16.msra.mxu0 %v3457
        %3553 = vmatprep.subr.bf16.mxu0 0
        %3554 = vmatpush1.bf16.msra.mxu0 %v3456
        %3555 = vmatprep.subr.bf16.mxu0 0
        %3556 = vmatpush1.bf16.msra.mxu0 %v3455
        %3557 = vmatprep.subr.bf16.mxu0 0
        %3558 = vmatpush1.bf16.msra.mxu0 %v3454
        %3559 = vmatprep.subr.bf16.mxu0 0
        %3560 = vmatpush2.bf16.msra.mxu0 %v3469
        %3561 = vmatprep.subr.bf16.mxu0 0
        %3562 = vmatpush2.bf16.msra.mxu0 %v3468
        %3563 = vmatprep.subr.bf16.mxu0 0
        %3564 = vmatpush2.bf16.msra.mxu0 %v3467
        %3565 = vmatprep.subr.bf16.mxu0 0
        %3566 = vmatpush2.bf16.msra.mxu0 %v3466
        %3567 = vmatprep.subr.bf16.mxu0 0
        %3568 = vmatpush2.bf16.msra.mxu0 %v3465
        %3569 = vmatprep.subr.bf16.mxu0 0
        %3570 = vmatpush2.bf16.msra.mxu0 %v3464
        %3571 = vmatprep.subr.bf16.mxu0 0
        %3572 = vmatpush2.bf16.msra.mxu0 %v3463
        %3573 = vmatprep.subr.bf16.mxu0 0
        %3574 = vmatpush2.bf16.msra.mxu0 %v3462
        %3575 = vmatprep.mubr.bf16.mxu0 %v3238
        %3576 = vmatmul.mubr.bf16.gmra.mxu0 %v3237
        %v3577 = vpop.f32.mrf.mxu0
        %v3578 = vadd.f32 %v3537, %v3577
        %v3579 = vpop.f32.mrf.mxu0
        %v3580 = vpop.f32.mrf.mxu0
        %v3581 = vadd.f32 %v3540, %v3580
        %v3582 = vpop.f32.mrf.mxu0
        %3583 = vdwg.mxu0
        %v3584 = vadd.f32 %v2852, %v3578
        %v3585 = vadd.f32 %v2853, %v3581
        %3586 = vst [vmem:[#allocation2] sm:$0xff] %v3584
        %3587 = vst [vmem:[#allocation2 + $0x8] sm:$0xff] %v3585
        %p3588 = scmp.eq.s32.totalorder %s44, 1
        // Predicated region
        $region105: #{tpu_custom_call.1} parent=71 // pred_check
          %p3589 = pneg %p3588
        $region106: #{tpu_custom_call.1} parent=71 // pred_check_branch
          %3591 = sbr.rel (%p3589) target = $region108
        $region107: #{tpu_custom_call.1} parent=71 // pred_region
          %3592 = vst [vmem:[%s763] sm:$0xff] %v3584
          %3593 = vst [vmem:[%s763 + $0x8] sm:$0xff] %v3585
        $region108: #{tpu_custom_call.1} parent=71 // pred_fallthru
          _
        %s3594 = sand.u32 %s397, 1
        %s3595 = scalar_lea.sflag [#allocation5], %s3594
        %s3596 = sand.u32 %s397, 1
        %s3597 = smul.addr %s3596, 16
        %s3598 = scalar_lea.vmem [#allocation15], %s3597
        // Predicated region
        $region109: #{tpu_custom_call.1} parent=71 // pred_check
          %p3599 = pneg %p407
        $region110: #{tpu_custom_call.1} parent=71 // pred_check_branch
          %3601 = sbr.rel (%p3599) target = $region112
        $region111: #{tpu_custom_call.1} parent=71 // pred_region
          %s3602 = smul.u32 2, %s43
          %s3604 = ssub.s32 256, 256
          %3605 = vsyncadd %s3595, %s3604
          %s3606 = smul.addr %s3602, 128
          %s3607 = scalar_lea.hbm %s13, %s3606
          %s3608 = sshll.u32 %s3598, 4
          %s3609 = int_to_ptr.vmem [resolvable:$true] %s3608
          %3614 = dma.vmem_to_hbm [thread:$0]  %s3609, 256, %s3607, %s3595, 128, 128, 8
        $region112: #{tpu_custom_call.1} parent=71 // pred_fallthru
          _
      $region72: #{tpu_custom_call.1} parent=5 // pred_fallthru
        _
      %p3615 = scmp.le.s32.totalorder 2, %s34
      // Predicated region
      $region113: #{tpu_custom_call.1} parent=5 // pred_check
        %p3616 = pneg %p3615
      $region114: #{tpu_custom_call.1} parent=5 // pred_check_branch
        %3618 = sbr.rel (%p3616) target = $region116
      $region115: #{tpu_custom_call.1} parent=5 // pred_region
        %s3619 = ssub.s32 %s34, 2
        // Predicated region
        $region117: #{tpu_custom_call.1} parent=115 // pred_check
          %p3620 = pneg %p413
        $region118: #{tpu_custom_call.1} parent=115 // pred_check_branch
          %3622 = sbr.rel (%p3620) target = $region120
        $region119: #{tpu_custom_call.1} parent=115 // pred_region
          %s3623 = sand.u32 %s398, 1
          %s3624 = scalar_lea.sflag [#allocation5], %s3623
          %s3625 = sand.u32 %s398, 1
          %s3626 = smul.addr %s3625, 16
          %s3627 = scalar_lea.vmem [#allocation15], %s3626
          %3628 = dma.done %s3624, 256
        $region120: #{tpu_custom_call.1} parent=115 // pred_fallthru
          _
      $region116: #{tpu_custom_call.1} parent=5 // pred_fallthru
        _
    $region6: #{tpu_custom_call.1} parent=1 // loop_footer
      %s38 = sadd.s32 1, %s34
    $region7: #{tpu_custom_call.1} parent=1 // loop_footer_branch
      %33 = sbr.rel target = $region3
    $region8: #{tpu_custom_call.1} parent=1 // loop_exit
      _
    %3629 = vsyncpa [#allocation4], 1
    %s3630 = scalar_lea.sflag [#allocation4], 1
    %3631 = vsyncpa %s3630, 1
    %3632 = vsyncpa [#allocation7], 1
    %s3633 = scalar_lea.sflag [#allocation7], 1
    %3634 = vsyncpa %s3633, 1
    %3635 = vsyncpa [#allocation10], 1
    %s3636 = scalar_lea.sflag [#allocation10], 1
    %3637 = vsyncpa %s3636, 1
    %3638 = vsyncpa [#allocation13], 1
    %s3639 = scalar_lea.sflag [#allocation13], 1
    %3640 = vsyncpa %s3639, 1
    %3641 = vsyncpa [#allocation5], 1
    %s3642 = scalar_lea.sflag [#allocation5], 1
    %3643 = vsyncpa %s3642, 1

</llo_original>
